<compile_context>
chip_gen: v6e
topology: v6e:2x2x1
jax: 0.10.0
libtpu: 0.0.40
codegen_flags: <defaults>
</compile_context>

<pallas_src>
import jax
import jax.numpy as jnp
from jax.experimental import pallas as pl
from jax.experimental.pallas import tpu as pltpu

# ---- small, self-consistent config (downscaled from the PyTorch config) ----
B = 4        # batch
S = 8        # source sequence length
T = 6        # target sequence length
E = 32       # embedding_dim
H = 32       # hidden_dim (encoder_hidden_dim == decoder hidden_dim)
V = 128      # target vocab size (decoder.output_size)
V_SRC = 128  # source vocab size
NH = 4       # attention heads (must divide H)
HD = H // NH


# ======================= fused encoder+decoder kernel =======================
def seq2seq_kernel(emb_src_ref, emb0_ref,
                   enc_wih_ref, enc_whh_ref, enc_b_ref,
                   wq_ref, bq_ref, wkv_ref, bkv_ref,
                   dec_w_ref, dec_b_ref, fc_w_ref, fc_b_ref, embd_ref,
                   out_ref, enc_scratch):
    f32 = jnp.float32
    bf16 = jnp.bfloat16

    def lstm_cell(gates, c):
        # PyTorch gate order i, f, g, o; one full-(B,4H) sigmoid pass, tanh only on g.
        sig = jax.nn.sigmoid(gates)
        i = sig[:, 0:H]
        f = sig[:, H:2 * H]
        o = sig[:, 3 * H:4 * H]
        g = jnp.tanh(gates[:, 2 * H:3 * H])
        c_new = f * c + i * g
        h_new = o * jnp.tanh(c_new)
        return h_new, c_new

    # --------------------------- encoder (unrolled) ---------------------------
    # Hoisted input projection: one batched matmul over all B*S tokens, bias folded in.
    emb_all = emb_src_ref[...]                                          # (B, S, E)
    xw_all = (jnp.dot(emb_all.reshape(B * S, E).astype(bf16), enc_wih_ref[...],
                      preferred_element_type=f32)
              + enc_b_ref[...]).reshape(B, S, 4 * H)                    # (B, S, 4H)
    h = jnp.zeros((B, H), f32)
    c = jnp.zeros((B, H), f32)
    for t in range(S):                           # serial recurrence: only dot(h, whh) per step
        gates = xw_all[:, t, :] + jnp.dot(h.astype(bf16), enc_whh_ref[...],
                                          preferred_element_type=f32)
        h, c = lstm_cell(gates, c)
        enc_scratch[:, t, :] = h                 # direct store, no where-select chain

    # ---- attention K/V projections: one fused (B*S,H)x(H,2H) matmul ----
    enc_flat = enc_scratch[...].reshape(B * S, H)
    kv = (jnp.dot(enc_flat.astype(bf16), wkv_ref[...], preferred_element_type=f32)
          + bkv_ref[...])                                               # (B*S, 2H)
    kp = kv[:, 0:H].reshape(B, S, H)
    vp = kv[:, H:2 * H].reshape(B, S, H)

    # block-diagonal head selector matrices (compile-time constants); 1/sqrt(HD) is
    # pre-folded into wq/bq, so these are pure 0/1 selectors (exact in bf16).
    hs_r = jax.lax.broadcasted_iota(jnp.int32, (H, NH), 0)
    hs_c = jax.lax.broadcasted_iota(jnp.int32, (H, NH), 1)
    head_sum = ((hs_r >= hs_c * HD) & (hs_r < (hs_c + 1) * HD)).astype(bf16)    # (H, NH)
    hb_r = jax.lax.broadcasted_iota(jnp.int32, (NH, H), 0)
    hb_c = jax.lax.broadcasted_iota(jnp.int32, (NH, H), 1)
    head_bcast = ((hb_c >= hb_r * HD) & (hb_c < (hb_r + 1) * HD)).astype(bf16)  # (NH, H)
    lane_v = jax.lax.broadcasted_iota(jnp.int32, (B, V), 1)             # hoisted

    # --------------------------- decoder (unrolled) ---------------------------
    # TODO(synk): reference does hidden.repeat(1, batch_size, 1) producing a shape-inconsistent
    # (1, B*B, H) state (only valid at batch=1); we keep the per-example (B, H) state intent.
    out_ref[:, 0, :] = jnp.zeros((B, V), f32)    # outputs[:, 0] stays 0 as in torch
    emb = emb0_ref[...]                          # (B, E) embedded first target token
    # h, c carry over from the encoder final state (decoder initial state)
    for tt in range(T - 1):
        # --- multihead attention: query = decoder hidden, K/V = encoder outputs ---
        q = jnp.dot(h.astype(bf16), wq_ref[...], preferred_element_type=f32) + bq_ref[...]
        qk = (q[:, None, :] * kp).reshape(B * S, H)
        scores = jnp.dot(qk.astype(bf16), head_sum,
                         preferred_element_type=f32).reshape(B, S, NH)  # per-head q.k
        m = jnp.max(scores, axis=1, keepdims=True)
        e = jnp.exp(scores - m)
        denom = jnp.sum(e, axis=1, keepdims=True)
        w = e * pl.reciprocal(denom, approx=True)                       # softmax over S (EUP)
        wfull = jnp.dot(w.reshape(B * S, NH).astype(bf16), head_bcast,
                        preferred_element_type=f32).reshape(B, S, H)
        ctx = jnp.sum(wfull * vp, axis=1)        # (B, H); wo/bo folded into dec_w/fc_w outside

        # --- decoder LSTM step: fused [emb ; ctx ; h] x (E+2H, 4H) gate matmul ---
        gate_in = jnp.concatenate([emb, ctx, h], axis=-1).astype(bf16)  # (B, E+2H)
        gates = jnp.dot(gate_in, dec_w_ref[...], preferred_element_type=f32) + dec_b_ref[...]
        h, c = lstm_cell(gates, c)

        # --- prediction: fused [h ; ctx] x (2H, V) matmul (wo/bo pre-folded) ---
        fc_in = jnp.concatenate([h, ctx], axis=-1).astype(bf16)         # (B, 2H)
        pred = jnp.dot(fc_in, fc_w_ref[...], preferred_element_type=f32) + fc_b_ref[...]
        out_ref[:, tt + 1, :] = pred             # lane-dense (V=128) whole-row store

        # --- next-token feedback (pointer-gen path) ---
        # TODO(synk): the reference builds combined_dist via scatter_add_ + multinomial; the
        # combined distribution has a single support point (top1), so the sample degenerates
        # to argmax. Deterministic argmax feedback, embedded in-kernel via a one-hot matmul.
        mx = jnp.max(pred, axis=-1, keepdims=True)
        idx = jnp.min(jnp.where(pred == mx, lane_v, V), axis=-1, keepdims=True)  # (B, 1)
        onehot = (lane_v == idx).astype(bf16)                                     # (B, V)
        emb = jnp.dot(onehot, embd_ref[...], preferred_element_type=f32)          # (B, E)


# ====================== wrapper-side weight preparation ======================
def prepare_kernel_params(p):
    """Fold wo/bo into downstream weights, fuse K|V and gate weights, cast to bf16."""
    bf16 = jnp.bfloat16
    scale = 1.0 / (HD ** 0.5)
    # fused K/V projection
    wkv = jnp.concatenate([p['wk'], p['wv']], axis=1)                   # (H, 2H)
    bkv = jnp.concatenate([p['bk'], p['bv']], axis=1)                   # (1, 2H)
    # fold attention out-projection into the decoder gate weight (ctx rows) and bias
    dec_w_ctx = p['wo'] @ p['dec_wih'][E:E + H, :]                      # (H, 4H)
    dec_w = jnp.concatenate([p['dec_wih'][0:E, :], dec_w_ctx, p['dec_whh']], axis=0)  # (E+2H,4H)
    dec_b = p['dec_b'] + p['bo'] @ p['dec_wih'][E:E + H, :]             # (1, 4H)
    # fold attention out-projection into the fc weight (ctx rows) and bias
    fc_w_ctx = p['wo'] @ p['wfc'][H:2 * H, :]                           # (H, V)
    fc_w = jnp.concatenate([p['wfc'][0:H, :], fc_w_ctx], axis=0)        # (2H, V)
    fc_b = p['bfc'] + p['bo'] @ p['wfc'][H:2 * H, :]                    # (1, V)
    return dict(
        enc_wih=p['enc_wih'].astype(bf16),
        enc_whh=p['enc_whh'].astype(bf16),
        enc_b=p['enc_b'],                                # biases / elementwise stay f32
        wq=(p['wq'] * scale).astype(bf16),               # 1/sqrt(HD) folded into q proj
        bq=p['bq'] * scale,
        wkv=wkv.astype(bf16),
        bkv=bkv,
        dec_w=dec_w.astype(bf16),
        dec_b=dec_b,
        fc_w=fc_w.astype(bf16),
        fc_b=fc_b,
        emb_dec=p['emb_dec'].astype(bf16),
    )


# =============================== Seq2Seq forward ===============================
def seq2seq_forward(src, trg, p):
    # embedding gathers + weight folding are cheap glue outside the kernel
    emb_src = p['emb_enc'][src]                          # (B, S, E), batch-first
    emb0 = p['emb_dec'][trg[:, 0]]                       # (B, E) first decoder input embedding
    kp = prepare_kernel_params(p)

    vmem = pltpu.MemorySpace.VMEM
    n_in = 14
    return pl.pallas_call(
        seq2seq_kernel,
        out_shape=jax.ShapeDtypeStruct((B, T, V), jnp.float32),
        in_specs=[pl.BlockSpec(memory_space=vmem) for _ in range(n_in)],
        out_specs=pl.BlockSpec(memory_space=vmem),
        scratch_shapes=[pltpu.VMEM((B, S, H), jnp.float32)],
    )(emb_src, emb0,
      kp['enc_wih'], kp['enc_whh'], kp['enc_b'],
      kp['wq'], kp['bq'], kp['wkv'], kp['bkv'],
      kp['dec_w'], kp['dec_b'], kp['fc_w'], kp['fc_b'], kp['emb_dec'])


def init_params(key):
    ks = jax.random.split(key, 18)
    s = 0.1
    f32 = jnp.float32
    return {
        'emb_enc': (jax.random.normal(ks[0], (V_SRC, E)) * s).astype(f32),
        'emb_dec': (jax.random.normal(ks[1], (V, E)) * s).astype(f32),
        'enc_wih': (jax.random.normal(ks[2], (E, 4 * H)) * s).astype(f32),
        'enc_whh': (jax.random.normal(ks[3], (H, 4 * H)) * s).astype(f32),
        'enc_b':   (jax.random.normal(ks[4], (1, 4 * H)) * s).astype(f32),
        'wq': (jax.random.normal(ks[5], (H, H)) * s).astype(f32),
        'bq': (jax.random.normal(ks[6], (1, H)) * s).astype(f32),
        'wk': (jax.random.normal(ks[7], (H, H)) * s).astype(f32),
        'bk': (jax.random.normal(ks[8], (1, H)) * s).astype(f32),
        'wv': (jax.random.normal(ks[9], (H, H)) * s).astype(f32),
        'bv': (jax.random.normal(ks[10], (1, H)) * s).astype(f32),
        'wo': (jax.random.normal(ks[11], (H, H)) * s).astype(f32),
        'bo': (jax.random.normal(ks[12], (1, H)) * s).astype(f32),
        'dec_wih': (jax.random.normal(ks[13], (E + H, 4 * H)) * s).astype(f32),
        'dec_whh': (jax.random.normal(ks[14], (H, 4 * H)) * s).astype(f32),
        'dec_b':   (jax.random.normal(ks[15], (1, 4 * H)) * s).astype(f32),
        # NOTE: torch LSTM has b_ih + b_hh; porting torch weights requires summing them here.
        'wfc': (jax.random.normal(ks[16], (2 * H, V)) * s).astype(f32),
        'bfc': (jax.random.normal(ks[17], (1, V)) * s).astype(f32),
    }


if __name__ == "__main__":
    key = jax.random.PRNGKey(0)
    k_param, k_src, k_trg = jax.random.split(key, 3)
    params = init_params(k_param)
    src = jax.random.randint(k_src, (B, S), 0, V_SRC, dtype=jnp.int32)
    trg = jax.random.randint(k_trg, (B, T), 0, V, dtype=jnp.int32)

    outputs = jax.jit(seq2seq_forward)(src, trg, params)
    outputs = jax.block_until_ready(outputs)

    assert outputs.shape == (B, T, V), outputs.shape
    assert bool(jnp.all(jnp.isfinite(outputs)))
    assert bool(jnp.all(outputs[:, 0] == 0.0))
    print("KERNEL_OK")
</pallas_src>

<mosaic_0001>
module attributes {stable_mosaic.version = 11 : i64} {
  func.func @seq2seq_kernel(%arg0: memref<4x8x32xf32, #tpu.memory_space<vmem>>, %arg1: memref<4x32xf32, #tpu.memory_space<vmem>>, %arg2: memref<32x128xbf16, #tpu.memory_space<vmem>>, %arg3: memref<32x128xbf16, #tpu.memory_space<vmem>>, %arg4: memref<1x128xf32, #tpu.memory_space<vmem>>, %arg5: memref<32x32xbf16, #tpu.memory_space<vmem>>, %arg6: memref<1x32xf32, #tpu.memory_space<vmem>>, %arg7: memref<32x64xbf16, #tpu.memory_space<vmem>>, %arg8: memref<1x64xf32, #tpu.memory_space<vmem>>, %arg9: memref<96x128xbf16, #tpu.memory_space<vmem>>, %arg10: memref<1x128xf32, #tpu.memory_space<vmem>>, %arg11: memref<64x128xbf16, #tpu.memory_space<vmem>>, %arg12: memref<1x128xf32, #tpu.memory_space<vmem>>, %arg13: memref<128x32xbf16, #tpu.memory_space<vmem>>, %arg14: memref<4x6x128xf32, #tpu.memory_space<vmem>>, %arg15: memref<4x8x32xf32, #tpu.memory_space<vmem>>) attributes {dimension_semantics = [], scalar_prefetch = 0 : i64, scratch_operands = 1 : i64, tpu.core_type = #tpu.core_type<tc>} {
    %c0 = arith.constant 0 : index
    %c0_0 = arith.constant 0 : index
    %c0_1 = arith.constant 0 : index
    %0 = vector.load %arg0[%c0, %c0_0, %c0_1] : memref<4x8x32xf32, #tpu.memory_space<vmem>>, vector<4x8x32xf32>
    %1 = vector.shape_cast %0 : vector<4x8x32xf32> to vector<32x32xf32>
    %2 = arith.truncf %1 : vector<32x32xf32> to vector<32x32xbf16>
    %c0_2 = arith.constant 0 : index
    %c0_3 = arith.constant 0 : index
    %3 = vector.load %arg2[%c0_2, %c0_3] : memref<32x128xbf16, #tpu.memory_space<vmem>>, vector<32x128xbf16>
    %cst = arith.constant dense<0.000000e+00> : vector<32x128xf32>
    %4 = tpu.matmul %2, %3, %cst {dimension_numbers = #tpu.dot_dimension_numbers<[1], [0], [0], [1], [0, 0, 1, 1], [], []>} : vector<32x32xbf16>, vector<32x128xbf16>, vector<32x128xf32> -> vector<32x128xf32>
    %c0_4 = arith.constant 0 : index
    %c0_5 = arith.constant 0 : index
    %5 = vector.load %arg4[%c0_4, %c0_5] : memref<1x128xf32, #tpu.memory_space<vmem>>, vector<1x128xf32>
    %6 = vector.broadcast %5 : vector<1x128xf32> to vector<32x128xf32>
    %7 = arith.addf %4, %6 : vector<32x128xf32>
    %8 = vector.shape_cast %7 : vector<32x128xf32> to vector<4x8x128xf32>
    %cst_6 = arith.constant 0.000000e+00 : f32
    %9 = vector.broadcast %cst_6 : f32 to vector<4x32xf32>
    %cst_7 = arith.constant 0.000000e+00 : f32
    %10 = vector.broadcast %cst_7 : f32 to vector<4x32xf32>
    %11 = vector.extract_strided_slice %8 {offsets = [0, 0, 0], sizes = [4, 1, 128], strides = [1, 1, 1]} : vector<4x8x128xf32> to vector<4x1x128xf32>
    %12 = vector.shape_cast %11 : vector<4x1x128xf32> to vector<4x128xf32>
    %13 = arith.truncf %9 : vector<4x32xf32> to vector<4x32xbf16>
    %c0_8 = arith.constant 0 : index
    %c0_9 = arith.constant 0 : index
    %14 = vector.load %arg3[%c0_8, %c0_9] : memref<32x128xbf16, #tpu.memory_space<vmem>>, vector<32x128xbf16>
    %cst_10 = arith.constant dense<0.000000e+00> : vector<4x128xf32>
    %15 = tpu.matmul %13, %14, %cst_10 {dimension_numbers = #tpu.dot_dimension_numbers<[1], [0], [0], [1], [0, 0, 1, 1], [], []>} : vector<4x32xbf16>, vector<32x128xbf16>, vector<4x128xf32> -> vector<4x128xf32>
    %16 = arith.addf %12, %15 : vector<4x128xf32>
    %17 = arith.negf %16 : vector<4x128xf32>
    %18 = math.exp %17 : vector<4x128xf32>
    %cst_11 = arith.constant 1.000000e+00 : f32
    %19 = vector.broadcast %cst_11 : f32 to vector<4x128xf32>
    %20 = arith.addf %19, %18 : vector<4x128xf32>
    %21 = arith.divf %19, %20 : vector<4x128xf32>
    %22 = vector.extract_strided_slice %21 {offsets = [0, 0], sizes = [4, 32], strides = [1, 1]} : vector<4x128xf32> to vector<4x32xf32>
    %23 = vector.extract_strided_slice %21 {offsets = [0, 32], sizes = [4, 32], strides = [1, 1]} : vector<4x128xf32> to vector<4x32xf32>
    %24 = vector.extract_strided_slice %21 {offsets = [0, 96], sizes = [4, 32], strides = [1, 1]} : vector<4x128xf32> to vector<4x32xf32>
    %25 = vector.extract_strided_slice %16 {offsets = [0, 64], sizes = [4, 32], strides = [1, 1]} : vector<4x128xf32> to vector<4x32xf32>
    %26 = math.tanh %25 : vector<4x32xf32>
    %27 = arith.mulf %23, %10 : vector<4x32xf32>
    %28 = arith.mulf %22, %26 : vector<4x32xf32>
    %29 = arith.addf %27, %28 : vector<4x32xf32>
    %30 = math.tanh %29 : vector<4x32xf32>
    %31 = arith.mulf %24, %30 : vector<4x32xf32>
    %c0_12 = arith.constant 0 : index
    %c0_13 = arith.constant 0 : index
    %c0_14 = arith.constant 0 : index
    %32 = vector.load %arg15[%c0_12, %c0_13, %c0_14] : memref<4x8x32xf32, #tpu.memory_space<vmem>>, vector<4x1x32xf32>
    %33 = vector.shape_cast %32 : vector<4x1x32xf32> to vector<4x32xf32>
    %34 = vector.shape_cast %31 : vector<4x32xf32> to vector<4x1x32xf32>
    tpu.vector_store %arg15[%c0_12, %c0_13, %c0_14], %34 {strides = array<i32>} : memref<4x8x32xf32, #tpu.memory_space<vmem>>, vector<4x1x32xf32>,
    %35 = vector.extract_strided_slice %8 {offsets = [0, 1, 0], sizes = [4, 1, 128], strides = [1, 1, 1]} : vector<4x8x128xf32> to vector<4x1x128xf32>
    %36 = vector.shape_cast %35 : vector<4x1x128xf32> to vector<4x128xf32>
    %37 = arith.truncf %31 : vector<4x32xf32> to vector<4x32xbf16>
    %c0_15 = arith.constant 0 : index
    %c0_16 = arith.constant 0 : index
    %38 = vector.load %arg3[%c0_15, %c0_16] : memref<32x128xbf16, #tpu.memory_space<vmem>>, vector<32x128xbf16>
    %cst_17 = arith.constant dense<0.000000e+00> : vector<4x128xf32>
    %39 = tpu.matmul %37, %38, %cst_17 {dimension_numbers = #tpu.dot_dimension_numbers<[1], [0], [0], [1], [0, 0, 1, 1], [], []>} : vector<4x32xbf16>, vector<32x128xbf16>, vector<4x128xf32> -> vector<4x128xf32>
    %40 = arith.addf %36, %39 : vector<4x128xf32>
    %41 = arith.negf %40 : vector<4x128xf32>
    %42 = math.exp %41 : vector<4x128xf32>
    %cst_18 = arith.constant 1.000000e+00 : f32
    %43 = vector.broadcast %cst_18 : f32 to vector<4x128xf32>
    %44 = arith.addf %43, %42 : vector<4x128xf32>
    %45 = arith.divf %43, %44 : vector<4x128xf32>
    %46 = vector.extract_strided_slice %45 {offsets = [0, 0], sizes = [4, 32], strides = [1, 1]} : vector<4x128xf32> to vector<4x32xf32>
    %47 = vector.extract_strided_slice %45 {offsets = [0, 32], sizes = [4, 32], strides = [1, 1]} : vector<4x128xf32> to vector<4x32xf32>
    %48 = vector.extract_strided_slice %45 {offsets = [0, 96], sizes = [4, 32], strides = [1, 1]} : vector<4x128xf32> to vector<4x32xf32>
    %49 = vector.extract_strided_slice %40 {offsets = [0, 64], sizes = [4, 32], strides = [1, 1]} : vector<4x128xf32> to vector<4x32xf32>
    %50 = math.tanh %49 : vector<4x32xf32>
    %51 = arith.mulf %47, %29 : vector<4x32xf32>
    %52 = arith.mulf %46, %50 : vector<4x32xf32>
    %53 = arith.addf %51, %52 : vector<4x32xf32>
    %54 = math.tanh %53 : vector<4x32xf32>
    %55 = arith.mulf %48, %54 : vector<4x32xf32>
    %c0_19 = arith.constant 0 : index
    %c1 = arith.constant 1 : index
    %c0_20 = arith.constant 0 : index
    %56 = vector.load %arg15[%c0_19, %c1, %c0_20] : memref<4x8x32xf32, #tpu.memory_space<vmem>>, vector<4x1x32xf32>
    %57 = vector.shape_cast %56 : vector<4x1x32xf32> to vector<4x32xf32>
    %58 = vector.shape_cast %55 : vector<4x32xf32> to vector<4x1x32xf32>
    tpu.vector_store %arg15[%c0_19, %c1, %c0_20], %58 {strides = array<i32>} : memref<4x8x32xf32, #tpu.memory_space<vmem>>, vector<4x1x32xf32>,
    %59 = vector.extract_strided_slice %8 {offsets = [0, 2, 0], sizes = [4, 1, 128], strides = [1, 1, 1]} : vector<4x8x128xf32> to vector<4x1x128xf32>
    %60 = vector.shape_cast %59 : vector<4x1x128xf32> to vector<4x128xf32>
    %61 = arith.truncf %55 : vector<4x32xf32> to vector<4x32xbf16>
    %c0_21 = arith.constant 0 : index
    %c0_22 = arith.constant 0 : index
    %62 = vector.load %arg3[%c0_21, %c0_22] : memref<32x128xbf16, #tpu.memory_space<vmem>>, vector<32x128xbf16>
    %cst_23 = arith.constant dense<0.000000e+00> : vector<4x128xf32>
    %63 = tpu.matmul %61, %62, %cst_23 {dimension_numbers = #tpu.dot_dimension_numbers<[1], [0], [0], [1], [0, 0, 1, 1], [], []>} : vector<4x32xbf16>, vector<32x128xbf16>, vector<4x128xf32> -> vector<4x128xf32>
    %64 = arith.addf %60, %63 : vector<4x128xf32>
    %65 = arith.negf %64 : vector<4x128xf32>
    %66 = math.exp %65 : vector<4x128xf32>
    %cst_24 = arith.constant 1.000000e+00 : f32
    %67 = vector.broadcast %cst_24 : f32 to vector<4x128xf32>
    %68 = arith.addf %67, %66 : vector<4x128xf32>
    %69 = arith.divf %67, %68 : vector<4x128xf32>
    %70 = vector.extract_strided_slice %69 {offsets = [0, 0], sizes = [4, 32], strides = [1, 1]} : vector<4x128xf32> to vector<4x32xf32>
    %71 = vector.extract_strided_slice %69 {offsets = [0, 32], sizes = [4, 32], strides = [1, 1]} : vector<4x128xf32> to vector<4x32xf32>
    %72 = vector.extract_strided_slice %69 {offsets = [0, 96], sizes = [4, 32], strides = [1, 1]} : vector<4x128xf32> to vector<4x32xf32>
    %73 = vector.extract_strided_slice %64 {offsets = [0, 64], sizes = [4, 32], strides = [1, 1]} : vector<4x128xf32> to vector<4x32xf32>
    %74 = math.tanh %73 : vector<4x32xf32>
    %75 = arith.mulf %71, %53 : vector<4x32xf32>
    %76 = arith.mulf %70, %74 : vector<4x32xf32>
    %77 = arith.addf %75, %76 : vector<4x32xf32>
    %78 = math.tanh %77 : vector<4x32xf32>
    %79 = arith.mulf %72, %78 : vector<4x32xf32>
    %c0_25 = arith.constant 0 : index
    %c2 = arith.constant 2 : index
    %c0_26 = arith.constant 0 : index
    %80 = vector.load %arg15[%c0_25, %c2, %c0_26] : memref<4x8x32xf32, #tpu.memory_space<vmem>>, vector<4x1x32xf32>
    %81 = vector.shape_cast %80 : vector<4x1x32xf32> to vector<4x32xf32>
    %82 = vector.shape_cast %79 : vector<4x32xf32> to vector<4x1x32xf32>
    tpu.vector_store %arg15[%c0_25, %c2, %c0_26], %82 {strides = array<i32>} : memref<4x8x32xf32, #tpu.memory_space<vmem>>, vector<4x1x32xf32>,
    %83 = vector.extract_strided_slice %8 {offsets = [0, 3, 0], sizes = [4, 1, 128], strides = [1, 1, 1]} : vector<4x8x128xf32> to vector<4x1x128xf32>
    %84 = vector.shape_cast %83 : vector<4x1x128xf32> to vector<4x128xf32>
    %85 = arith.truncf %79 : vector<4x32xf32> to vector<4x32xbf16>
    %c0_27 = arith.constant 0 : index
    %c0_28 = arith.constant 0 : index
    %86 = vector.load %arg3[%c0_27, %c0_28] : memref<32x128xbf16, #tpu.memory_space<vmem>>, vector<32x128xbf16>
    %cst_29 = arith.constant dense<0.000000e+00> : vector<4x128xf32>
    %87 = tpu.matmul %85, %86, %cst_29 {dimension_numbers = #tpu.dot_dimension_numbers<[1], [0], [0], [1], [0, 0, 1, 1], [], []>} : vector<4x32xbf16>, vector<32x128xbf16>, vector<4x128xf32> -> vector<4x128xf32>
    %88 = arith.addf %84, %87 : vector<4x128xf32>
    %89 = arith.negf %88 : vector<4x128xf32>
    %90 = math.exp %89 : vector<4x128xf32>
    %cst_30 = arith.constant 1.000000e+00 : f32
    %91 = vector.broadcast %cst_30 : f32 to vector<4x128xf32>
    %92 = arith.addf %91, %90 : vector<4x128xf32>
    %93 = arith.divf %91, %92 : vector<4x128xf32>
    %94 = vector.extract_strided_slice %93 {offsets = [0, 0], sizes = [4, 32], strides = [1, 1]} : vector<4x128xf32> to vector<4x32xf32>
    %95 = vector.extract_strided_slice %93 {offsets = [0, 32], sizes = [4, 32], strides = [1, 1]} : vector<4x128xf32> to vector<4x32xf32>
    %96 = vector.extract_strided_slice %93 {offsets = [0, 96], sizes = [4, 32], strides = [1, 1]} : vector<4x128xf32> to vector<4x32xf32>
    %97 = vector.extract_strided_slice %88 {offsets = [0, 64], sizes = [4, 32], strides = [1, 1]} : vector<4x128xf32> to vector<4x32xf32>
    %98 = math.tanh %97 : vector<4x32xf32>
    %99 = arith.mulf %95, %77 : vector<4x32xf32>
    %100 = arith.mulf %94, %98 : vector<4x32xf32>
    %101 = arith.addf %99, %100 : vector<4x32xf32>
    %102 = math.tanh %101 : vector<4x32xf32>
    %103 = arith.mulf %96, %102 : vector<4x32xf32>
    %c0_31 = arith.constant 0 : index
    %c3 = arith.constant 3 : index
    %c0_32 = arith.constant 0 : index
    %104 = vector.load %arg15[%c0_31, %c3, %c0_32] : memref<4x8x32xf32, #tpu.memory_space<vmem>>, vector<4x1x32xf32>
    %105 = vector.shape_cast %104 : vector<4x1x32xf32> to vector<4x32xf32>
    %106 = vector.shape_cast %103 : vector<4x32xf32> to vector<4x1x32xf32>
    tpu.vector_store %arg15[%c0_31, %c3, %c0_32], %106 {strides = array<i32>} : memref<4x8x32xf32, #tpu.memory_space<vmem>>, vector<4x1x32xf32>,
    %107 = vector.extract_strided_slice %8 {offsets = [0, 4, 0], sizes = [4, 1, 128], strides = [1, 1, 1]} : vector<4x8x128xf32> to vector<4x1x128xf32>
    %108 = vector.shape_cast %107 : vector<4x1x128xf32> to vector<4x128xf32>
    %109 = arith.truncf %103 : vector<4x32xf32> to vector<4x32xbf16>
    %c0_33 = arith.constant 0 : index
    %c0_34 = arith.constant 0 : index
    %110 = vector.load %arg3[%c0_33, %c0_34] : memref<32x128xbf16, #tpu.memory_space<vmem>>, vector<32x128xbf16>
    %cst_35 = arith.constant dense<0.000000e+00> : vector<4x128xf32>
    %111 = tpu.matmul %109, %110, %cst_35 {dimension_numbers = #tpu.dot_dimension_numbers<[1], [0], [0], [1], [0, 0, 1, 1], [], []>} : vector<4x32xbf16>, vector<32x128xbf16>, vector<4x128xf32> -> vector<4x128xf32>
    %112 = arith.addf %108, %111 : vector<4x128xf32>
    %113 = arith.negf %112 : vector<4x128xf32>
    %114 = math.exp %113 : vector<4x128xf32>
    %cst_36 = arith.constant 1.000000e+00 : f32
    %115 = vector.broadcast %cst_36 : f32 to vector<4x128xf32>
    %116 = arith.addf %115, %114 : vector<4x128xf32>
    %117 = arith.divf %115, %116 : vector<4x128xf32>
    %118 = vector.extract_strided_slice %117 {offsets = [0, 0], sizes = [4, 32], strides = [1, 1]} : vector<4x128xf32> to vector<4x32xf32>
    %119 = vector.extract_strided_slice %117 {offsets = [0, 32], sizes = [4, 32], strides = [1, 1]} : vector<4x128xf32> to vector<4x32xf32>
    %120 = vector.extract_strided_slice %117 {offsets = [0, 96], sizes = [4, 32], strides = [1, 1]} : vector<4x128xf32> to vector<4x32xf32>
    %121 = vector.extract_strided_slice %112 {offsets = [0, 64], sizes = [4, 32], strides = [1, 1]} : vector<4x128xf32> to vector<4x32xf32>
    %122 = math.tanh %121 : vector<4x32xf32>
    %123 = arith.mulf %119, %101 : vector<4x32xf32>
    %124 = arith.mulf %118, %122 : vector<4x32xf32>
    %125 = arith.addf %123, %124 : vector<4x32xf32>
    %126 = math.tanh %125 : vector<4x32xf32>
    %127 = arith.mulf %120, %126 : vector<4x32xf32>
    %c0_37 = arith.constant 0 : index
    %c4 = arith.constant 4 : index
    %c0_38 = arith.constant 0 : index
    %128 = vector.load %arg15[%c0_37, %c4, %c0_38] : memref<4x8x32xf32, #tpu.memory_space<vmem>>, vector<4x1x32xf32>
    %129 = vector.shape_cast %128 : vector<4x1x32xf32> to vector<4x32xf32>
    %130 = vector.shape_cast %127 : vector<4x32xf32> to vector<4x1x32xf32>
    tpu.vector_store %arg15[%c0_37, %c4, %c0_38], %130 {strides = array<i32>} : memref<4x8x32xf32, #tpu.memory_space<vmem>>, vector<4x1x32xf32>,
    %131 = vector.extract_strided_slice %8 {offsets = [0, 5, 0], sizes = [4, 1, 128], strides = [1, 1, 1]} : vector<4x8x128xf32> to vector<4x1x128xf32>
    %132 = vector.shape_cast %131 : vector<4x1x128xf32> to vector<4x128xf32>
    %133 = arith.truncf %127 : vector<4x32xf32> to vector<4x32xbf16>
    %c0_39 = arith.constant 0 : index
    %c0_40 = arith.constant 0 : index
    %134 = vector.load %arg3[%c0_39, %c0_40] : memref<32x128xbf16, #tpu.memory_space<vmem>>, vector<32x128xbf16>
    %cst_41 = arith.constant dense<0.000000e+00> : vector<4x128xf32>
    %135 = tpu.matmul %133, %134, %cst_41 {dimension_numbers = #tpu.dot_dimension_numbers<[1], [0], [0], [1], [0, 0, 1, 1], [], []>} : vector<4x32xbf16>, vector<32x128xbf16>, vector<4x128xf32> -> vector<4x128xf32>
    %136 = arith.addf %132, %135 : vector<4x128xf32>
    %137 = arith.negf %136 : vector<4x128xf32>
    %138 = math.exp %137 : vector<4x128xf32>
    %cst_42 = arith.constant 1.000000e+00 : f32
    %139 = vector.broadcast %cst_42 : f32 to vector<4x128xf32>
    %140 = arith.addf %139, %138 : vector<4x128xf32>
    %141 = arith.divf %139, %140 : vector<4x128xf32>
    %142 = vector.extract_strided_slice %141 {offsets = [0, 0], sizes = [4, 32], strides = [1, 1]} : vector<4x128xf32> to vector<4x32xf32>
    %143 = vector.extract_strided_slice %141 {offsets = [0, 32], sizes = [4, 32], strides = [1, 1]} : vector<4x128xf32> to vector<4x32xf32>
    %144 = vector.extract_strided_slice %141 {offsets = [0, 96], sizes = [4, 32], strides = [1, 1]} : vector<4x128xf32> to vector<4x32xf32>
    %145 = vector.extract_strided_slice %136 {offsets = [0, 64], sizes = [4, 32], strides = [1, 1]} : vector<4x128xf32> to vector<4x32xf32>
    %146 = math.tanh %145 : vector<4x32xf32>
    %147 = arith.mulf %143, %125 : vector<4x32xf32>
    %148 = arith.mulf %142, %146 : vector<4x32xf32>
    %149 = arith.addf %147, %148 : vector<4x32xf32>
    %150 = math.tanh %149 : vector<4x32xf32>
    %151 = arith.mulf %144, %150 : vector<4x32xf32>
    %c0_43 = arith.constant 0 : index
    %c5 = arith.constant 5 : index
    %c0_44 = arith.constant 0 : index
    %152 = vector.load %arg15[%c0_43, %c5, %c0_44] : memref<4x8x32xf32, #tpu.memory_space<vmem>>, vector<4x1x32xf32>
    %153 = vector.shape_cast %152 : vector<4x1x32xf32> to vector<4x32xf32>
    %154 = vector.shape_cast %151 : vector<4x32xf32> to vector<4x1x32xf32>
    tpu.vector_store %arg15[%c0_43, %c5, %c0_44], %154 {strides = array<i32>} : memref<4x8x32xf32, #tpu.memory_space<vmem>>, vector<4x1x32xf32>,
    %155 = vector.extract_strided_slice %8 {offsets = [0, 6, 0], sizes = [4, 1, 128], strides = [1, 1, 1]} : vector<4x8x128xf32> to vector<4x1x128xf32>
    %156 = vector.shape_cast %155 : vector<4x1x128xf32> to vector<4x128xf32>
    %157 = arith.truncf %151 : vector<4x32xf32> to vector<4x32xbf16>
    %c0_45 = arith.constant 0 : index
    %c0_46 = arith.constant 0 : index
    %158 = vector.load %arg3[%c0_45, %c0_46] : memref<32x128xbf16, #tpu.memory_space<vmem>>, vector<32x128xbf16>
    %cst_47 = arith.constant dense<0.000000e+00> : vector<4x128xf32>
    %159 = tpu.matmul %157, %158, %cst_47 {dimension_numbers = #tpu.dot_dimension_numbers<[1], [0], [0], [1], [0, 0, 1, 1], [], []>} : vector<4x32xbf16>, vector<32x128xbf16>, vector<4x128xf32> -> vector<4x128xf32>
    %160 = arith.addf %156, %159 : vector<4x128xf32>
    %161 = arith.negf %160 : vector<4x128xf32>
    %162 = math.exp %161 : vector<4x128xf32>
    %cst_48 = arith.constant 1.000000e+00 : f32
    %163 = vector.broadcast %cst_48 : f32 to vector<4x128xf32>
    %164 = arith.addf %163, %162 : vector<4x128xf32>
    %165 = arith.divf %163, %164 : vector<4x128xf32>
    %166 = vector.extract_strided_slice %165 {offsets = [0, 0], sizes = [4, 32], strides = [1, 1]} : vector<4x128xf32> to vector<4x32xf32>
    %167 = vector.extract_strided_slice %165 {offsets = [0, 32], sizes = [4, 32], strides = [1, 1]} : vector<4x128xf32> to vector<4x32xf32>
    %168 = vector.extract_strided_slice %165 {offsets = [0, 96], sizes = [4, 32], strides = [1, 1]} : vector<4x128xf32> to vector<4x32xf32>
    %169 = vector.extract_strided_slice %160 {offsets = [0, 64], sizes = [4, 32], strides = [1, 1]} : vector<4x128xf32> to vector<4x32xf32>
    %170 = math.tanh %169 : vector<4x32xf32>
    %171 = arith.mulf %167, %149 : vector<4x32xf32>
    %172 = arith.mulf %166, %170 : vector<4x32xf32>
    %173 = arith.addf %171, %172 : vector<4x32xf32>
    %174 = math.tanh %173 : vector<4x32xf32>
    %175 = arith.mulf %168, %174 : vector<4x32xf32>
    %c0_49 = arith.constant 0 : index
    %c6 = arith.constant 6 : index
    %c0_50 = arith.constant 0 : index
    %176 = vector.load %arg15[%c0_49, %c6, %c0_50] : memref<4x8x32xf32, #tpu.memory_space<vmem>>, vector<4x1x32xf32>
    %177 = vector.shape_cast %176 : vector<4x1x32xf32> to vector<4x32xf32>
    %178 = vector.shape_cast %175 : vector<4x32xf32> to vector<4x1x32xf32>
    tpu.vector_store %arg15[%c0_49, %c6, %c0_50], %178 {strides = array<i32>} : memref<4x8x32xf32, #tpu.memory_space<vmem>>, vector<4x1x32xf32>,
    %179 = vector.extract_strided_slice %8 {offsets = [0, 7, 0], sizes = [4, 1, 128], strides = [1, 1, 1]} : vector<4x8x128xf32> to vector<4x1x128xf32>
    %180 = vector.shape_cast %179 : vector<4x1x128xf32> to vector<4x128xf32>
    %181 = arith.truncf %175 : vector<4x32xf32> to vector<4x32xbf16>
    %c0_51 = arith.constant 0 : index
    %c0_52 = arith.constant 0 : index
    %182 = vector.load %arg3[%c0_51, %c0_52] : memref<32x128xbf16, #tpu.memory_space<vmem>>, vector<32x128xbf16>
    %cst_53 = arith.constant dense<0.000000e+00> : vector<4x128xf32>
    %183 = tpu.matmul %181, %182, %cst_53 {dimension_numbers = #tpu.dot_dimension_numbers<[1], [0], [0], [1], [0, 0, 1, 1], [], []>} : vector<4x32xbf16>, vector<32x128xbf16>, vector<4x128xf32> -> vector<4x128xf32>
    %184 = arith.addf %180, %183 : vector<4x128xf32>
    %185 = arith.negf %184 : vector<4x128xf32>
    %186 = math.exp %185 : vector<4x128xf32>
    %cst_54 = arith.constant 1.000000e+00 : f32
    %187 = vector.broadcast %cst_54 : f32 to vector<4x128xf32>
    %188 = arith.addf %187, %186 : vector<4x128xf32>
    %189 = arith.divf %187, %188 : vector<4x128xf32>
    %190 = vector.extract_strided_slice %189 {offsets = [0, 0], sizes = [4, 32], strides = [1, 1]} : vector<4x128xf32> to vector<4x32xf32>
    %191 = vector.extract_strided_slice %189 {offsets = [0, 32], sizes = [4, 32], strides = [1, 1]} : vector<4x128xf32> to vector<4x32xf32>
    %192 = vector.extract_strided_slice %189 {offsets = [0, 96], sizes = [4, 32], strides = [1, 1]} : vector<4x128xf32> to vector<4x32xf32>
    %193 = vector.extract_strided_slice %184 {offsets = [0, 64], sizes = [4, 32], strides = [1, 1]} : vector<4x128xf32> to vector<4x32xf32>
    %194 = math.tanh %193 : vector<4x32xf32>
    %195 = arith.mulf %191, %173 : vector<4x32xf32>
    %196 = arith.mulf %190, %194 : vector<4x32xf32>
    %197 = arith.addf %195, %196 : vector<4x32xf32>
    %198 = math.tanh %197 : vector<4x32xf32>
    %199 = arith.mulf %192, %198 : vector<4x32xf32>
    %c0_55 = arith.constant 0 : index
    %c7 = arith.constant 7 : index
    %c0_56 = arith.constant 0 : index
    %200 = vector.load %arg15[%c0_55, %c7, %c0_56] : memref<4x8x32xf32, #tpu.memory_space<vmem>>, vector<4x1x32xf32>
    %201 = vector.shape_cast %200 : vector<4x1x32xf32> to vector<4x32xf32>
    %202 = vector.shape_cast %199 : vector<4x32xf32> to vector<4x1x32xf32>
    tpu.vector_store %arg15[%c0_55, %c7, %c0_56], %202 {strides = array<i32>} : memref<4x8x32xf32, #tpu.memory_space<vmem>>, vector<4x1x32xf32>,
    %c0_57 = arith.constant 0 : index
    %c0_58 = arith.constant 0 : index
    %c0_59 = arith.constant 0 : index
    %203 = vector.load %arg15[%c0_57, %c0_58, %c0_59] : memref<4x8x32xf32, #tpu.memory_space<vmem>>, vector<4x8x32xf32>
    %204 = vector.shape_cast %203 : vector<4x8x32xf32> to vector<32x32xf32>
    %205 = arith.truncf %204 : vector<32x32xf32> to vector<32x32xbf16>
    %c0_60 = arith.constant 0 : index
    %c0_61 = arith.constant 0 : index
    %206 = vector.load %arg7[%c0_60, %c0_61] : memref<32x64xbf16, #tpu.memory_space<vmem>>, vector<32x64xbf16>
    %cst_62 = arith.constant dense<0.000000e+00> : vector<32x64xf32>
    %207 = tpu.matmul %205, %206, %cst_62 {dimension_numbers = #tpu.dot_dimension_numbers<[1], [0], [0], [1], [0, 0, 1, 1], [], []>} : vector<32x32xbf16>, vector<32x64xbf16>, vector<32x64xf32> -> vector<32x64xf32>
    %c0_63 = arith.constant 0 : index
    %c0_64 = arith.constant 0 : index
    %208 = vector.load %arg8[%c0_63, %c0_64] : memref<1x64xf32, #tpu.memory_space<vmem>>, vector<1x64xf32>
    %209 = vector.broadcast %208 : vector<1x64xf32> to vector<32x64xf32>
    %210 = arith.addf %207, %209 : vector<32x64xf32>
    %211 = vector.extract_strided_slice %210 {offsets = [0, 0], sizes = [32, 32], strides = [1, 1]} : vector<32x64xf32> to vector<32x32xf32>
    %212 = vector.shape_cast %211 : vector<32x32xf32> to vector<4x8x32xf32>
    %213 = vector.extract_strided_slice %210 {offsets = [0, 32], sizes = [32, 32], strides = [1, 1]} : vector<32x64xf32> to vector<32x32xf32>
    %214 = vector.shape_cast %213 : vector<32x32xf32> to vector<4x8x32xf32>
    %215 = tpu.iota {dimensions = array<i32: 0>} : vector<32x4xi32>
    %216 = tpu.iota {dimensions = array<i32: 1>} : vector<32x4xi32>
    %c8_i32 = arith.constant 8 : i32
    %217 = vector.broadcast %c8_i32 : i32 to vector<32x4xi32>
    %218 = arith.muli %216, %217 : vector<32x4xi32>
    %219 = arith.cmpi sge, %215, %218 : vector<32x4xi32>
    %c1_i32 = arith.constant 1 : i32
    %220 = vector.broadcast %c1_i32 : i32 to vector<32x4xi32>
    %221 = arith.addi %216, %220 : vector<32x4xi32>
    %c8_i32_65 = arith.constant 8 : i32
    %222 = vector.broadcast %c8_i32_65 : i32 to vector<32x4xi32>
    %223 = arith.muli %221, %222 : vector<32x4xi32>
    %224 = arith.cmpi slt, %215, %223 : vector<32x4xi32>
    %225 = arith.andi %219, %224 : vector<32x4xi1>
    %226 = arith.extui %225 : vector<32x4xi1> to vector<32x4xi32>
    %227 = arith.sitofp %226 : vector<32x4xi32> to vector<32x4xf32>
    %228 = arith.truncf %227 : vector<32x4xf32> to vector<32x4xbf16>
    %229 = tpu.iota {dimensions = array<i32: 0>} : vector<4x32xi32>
    %230 = tpu.iota {dimensions = array<i32: 1>} : vector<4x32xi32>
    %c8_i32_66 = arith.constant 8 : i32
    %231 = vector.broadcast %c8_i32_66 : i32 to vector<4x32xi32>
    %232 = arith.muli %229, %231 : vector<4x32xi32>
    %233 = arith.cmpi sge, %230, %232 : vector<4x32xi32>
    %c1_i32_67 = arith.constant 1 : i32
    %234 = vector.broadcast %c1_i32_67 : i32 to vector<4x32xi32>
    %235 = arith.addi %229, %234 : vector<4x32xi32>
    %c8_i32_68 = arith.constant 8 : i32
    %236 = vector.broadcast %c8_i32_68 : i32 to vector<4x32xi32>
    %237 = arith.muli %235, %236 : vector<4x32xi32>
    %238 = arith.cmpi slt, %230, %237 : vector<4x32xi32>
    %239 = arith.andi %233, %238 : vector<4x32xi1>
    %240 = arith.extui %239 : vector<4x32xi1> to vector<4x32xi32>
    %241 = arith.sitofp %240 : vector<4x32xi32> to vector<4x32xf32>
    %242 = arith.truncf %241 : vector<4x32xf32> to vector<4x32xbf16>
    %243 = tpu.iota {dimensions = array<i32: 1>} : vector<4x128xi32>
    %cst_69 = arith.constant 0.000000e+00 : f32
    %244 = vector.broadcast %cst_69 : f32 to vector<4x128xf32>
    %c0_70 = arith.constant 0 : index
    %c0_71 = arith.constant 0 : index
    %c0_72 = arith.constant 0 : index
    %245 = vector.load %arg14[%c0_70, %c0_71, %c0_72] : memref<4x6x128xf32, #tpu.memory_space<vmem>>, vector<4x1x128xf32>
    %246 = vector.shape_cast %245 : vector<4x1x128xf32> to vector<4x128xf32>
    %247 = vector.shape_cast %244 : vector<4x128xf32> to vector<4x1x128xf32>
    tpu.vector_store %arg14[%c0_70, %c0_71, %c0_72], %247 {strides = array<i32>} : memref<4x6x128xf32, #tpu.memory_space<vmem>>, vector<4x1x128xf32>,
    %c0_73 = arith.constant 0 : index
    %c0_74 = arith.constant 0 : index
    %248 = vector.load %arg1[%c0_73, %c0_74] : memref<4x32xf32, #tpu.memory_space<vmem>>, vector<4x32xf32>
    %249 = arith.truncf %199 : vector<4x32xf32> to vector<4x32xbf16>
    %c0_75 = arith.constant 0 : index
    %c0_76 = arith.constant 0 : index
    %250 = vector.load %arg5[%c0_75, %c0_76] : memref<32x32xbf16, #tpu.memory_space<vmem>>, vector<32x32xbf16>
    %cst_77 = arith.constant dense<0.000000e+00> : vector<4x32xf32>
    %251 = tpu.matmul %249, %250, %cst_77 {dimension_numbers = #tpu.dot_dimension_numbers<[1], [0], [0], [1], [0, 0, 1, 1], [], []>} : vector<4x32xbf16>, vector<32x32xbf16>, vector<4x32xf32> -> vector<4x32xf32>
    %c0_78 = arith.constant 0 : index
    %c0_79 = arith.constant 0 : index
    %252 = vector.load %arg6[%c0_78, %c0_79] : memref<1x32xf32, #tpu.memory_space<vmem>>, vector<1x32xf32>
    %253 = vector.broadcast %252 : vector<1x32xf32> to vector<4x32xf32>
    %254 = arith.addf %251, %253 : vector<4x32xf32>
    %255 = vector.shape_cast %254 : vector<4x32xf32> to vector<4x1x32xf32>
    %256 = vector.broadcast %255 : vector<4x1x32xf32> to vector<4x8x32xf32>
    %257 = arith.mulf %256, %212 : vector<4x8x32xf32>
    %258 = vector.shape_cast %257 : vector<4x8x32xf32> to vector<32x32xf32>
    %259 = arith.truncf %258 : vector<32x32xf32> to vector<32x32xbf16>
    %cst_80 = arith.constant dense<0.000000e+00> : vector<32x4xf32>
    %260 = tpu.matmul %259, %228, %cst_80 {dimension_numbers = #tpu.dot_dimension_numbers<[1], [0], [0], [1], [0, 0, 1, 1], [], []>} : vector<32x32xbf16>, vector<32x4xbf16>, vector<32x4xf32> -> vector<32x4xf32>
    %261 = vector.shape_cast %260 : vector<32x4xf32> to vector<4x8x4xf32>
    %cst_81 = arith.constant dense<0xFF800000> : vector<4x4xf32>
    %262 = vector.multi_reduction <maximumf>, %261, %cst_81 [1] : vector<4x8x4xf32> to vector<4x4xf32>
    %263 = vector.shape_cast %262 : vector<4x4xf32> to vector<4x1x4xf32>
    %264 = vector.broadcast %263 : vector<4x1x4xf32> to vector<4x8x4xf32>
    %265 = arith.subf %261, %264 : vector<4x8x4xf32>
    %266 = math.exp %265 : vector<4x8x4xf32>
    %cst_82 = arith.constant dense<0.000000e+00> : vector<4x4xf32>
    %267 = vector.multi_reduction <add>, %266, %cst_82 [1] : vector<4x8x4xf32> to vector<4x4xf32>
    %268 = vector.shape_cast %267 : vector<4x4xf32> to vector<4x1x4xf32>
    %269 = tpu.reciprocal %268 {approx = true} : vector<4x1x4xf32> -> vector<4x1x4xf32>
    %270 = vector.broadcast %269 : vector<4x1x4xf32> to vector<4x8x4xf32>
    %271 = arith.mulf %266, %270 : vector<4x8x4xf32>
    %272 = vector.shape_cast %271 : vector<4x8x4xf32> to vector<32x4xf32>
    %273 = arith.truncf %272 : vector<32x4xf32> to vector<32x4xbf16>
    %cst_83 = arith.constant dense<0.000000e+00> : vector<32x32xf32>
    %274 = tpu.matmul %273, %242, %cst_83 {dimension_numbers = #tpu.dot_dimension_numbers<[1], [0], [0], [1], [0, 0, 1, 1], [], []>} : vector<32x4xbf16>, vector<4x32xbf16>, vector<32x32xf32> -> vector<32x32xf32>
    %275 = vector.shape_cast %274 : vector<32x32xf32> to vector<4x8x32xf32>
    %276 = arith.mulf %275, %214 : vector<4x8x32xf32>
    %cst_84 = arith.constant dense<0.000000e+00> : vector<4x32xf32>
    %277 = vector.multi_reduction <add>, %276, %cst_84 [1] : vector<4x8x32xf32> to vector<4x32xf32>
    %278 = tpu.concatenate %248, %277, %199 in 1 : vector<4x32xf32>, vector<4x32xf32>, vector<4x32xf32> -> vector<4x96xf32>
    %279 = arith.truncf %278 : vector<4x96xf32> to vector<4x96xbf16>
    %c0_85 = arith.constant 0 : index
    %c0_86 = arith.constant 0 : index
    %280 = vector.load %arg9[%c0_85, %c0_86] : memref<96x128xbf16, #tpu.memory_space<vmem>>, vector<96x128xbf16>
    %cst_87 = arith.constant dense<0.000000e+00> : vector<4x128xf32>
    %281 = tpu.matmul %279, %280, %cst_87 {dimension_numbers = #tpu.dot_dimension_numbers<[1], [0], [0], [1], [0, 0, 1, 1], [], []>} : vector<4x96xbf16>, vector<96x128xbf16>, vector<4x128xf32> -> vector<4x128xf32>
    %c0_88 = arith.constant 0 : index
    %c0_89 = arith.constant 0 : index
    %282 = vector.load %arg10[%c0_88, %c0_89] : memref<1x128xf32, #tpu.memory_space<vmem>>, vector<1x128xf32>
    %283 = vector.broadcast %282 : vector<1x128xf32> to vector<4x128xf32>
    %284 = arith.addf %281, %283 : vector<4x128xf32>
    %285 = arith.negf %284 : vector<4x128xf32>
    %286 = math.exp %285 : vector<4x128xf32>
    %cst_90 = arith.constant 1.000000e+00 : f32
    %287 = vector.broadcast %cst_90 : f32 to vector<4x128xf32>
    %288 = arith.addf %287, %286 : vector<4x128xf32>
    %289 = arith.divf %287, %288 : vector<4x128xf32>
    %290 = vector.extract_strided_slice %289 {offsets = [0, 0], sizes = [4, 32], strides = [1, 1]} : vector<4x128xf32> to vector<4x32xf32>
    %291 = vector.extract_strided_slice %289 {offsets = [0, 32], sizes = [4, 32], strides = [1, 1]} : vector<4x128xf32> to vector<4x32xf32>
    %292 = vector.extract_strided_slice %289 {offsets = [0, 96], sizes = [4, 32], strides = [1, 1]} : vector<4x128xf32> to vector<4x32xf32>
    %293 = vector.extract_strided_slice %284 {offsets = [0, 64], sizes = [4, 32], strides = [1, 1]} : vector<4x128xf32> to vector<4x32xf32>
    %294 = math.tanh %293 : vector<4x32xf32>
    %295 = arith.mulf %291, %197 : vector<4x32xf32>
    %296 = arith.mulf %290, %294 : vector<4x32xf32>
    %297 = arith.addf %295, %296 : vector<4x32xf32>
    %298 = math.tanh %297 : vector<4x32xf32>
    %299 = arith.mulf %292, %298 : vector<4x32xf32>
    %300 = tpu.concatenate %299, %277 in 1 : vector<4x32xf32>, vector<4x32xf32> -> vector<4x64xf32>
    %301 = arith.truncf %300 : vector<4x64xf32> to vector<4x64xbf16>
    %c0_91 = arith.constant 0 : index
    %c0_92 = arith.constant 0 : index
    %302 = vector.load %arg11[%c0_91, %c0_92] : memref<64x128xbf16, #tpu.memory_space<vmem>>, vector<64x128xbf16>
    %cst_93 = arith.constant dense<0.000000e+00> : vector<4x128xf32>
    %303 = tpu.matmul %301, %302, %cst_93 {dimension_numbers = #tpu.dot_dimension_numbers<[1], [0], [0], [1], [0, 0, 1, 1], [], []>} : vector<4x64xbf16>, vector<64x128xbf16>, vector<4x128xf32> -> vector<4x128xf32>
    %c0_94 = arith.constant 0 : index
    %c0_95 = arith.constant 0 : index
    %304 = vector.load %arg12[%c0_94, %c0_95] : memref<1x128xf32, #tpu.memory_space<vmem>>, vector<1x128xf32>
    %305 = vector.broadcast %304 : vector<1x128xf32> to vector<4x128xf32>
    %306 = arith.addf %303, %305 : vector<4x128xf32>
    %c0_96 = arith.constant 0 : index
    %c1_97 = arith.constant 1 : index
    %c0_98 = arith.constant 0 : index
    %307 = vector.load %arg14[%c0_96, %c1_97, %c0_98] : memref<4x6x128xf32, #tpu.memory_space<vmem>>, vector<4x1x128xf32>
    %308 = vector.shape_cast %307 : vector<4x1x128xf32> to vector<4x128xf32>
    %309 = vector.shape_cast %306 : vector<4x128xf32> to vector<4x1x128xf32>
    tpu.vector_store %arg14[%c0_96, %c1_97, %c0_98], %309 {strides = array<i32>} : memref<4x6x128xf32, #tpu.memory_space<vmem>>, vector<4x1x128xf32>,
    %cst_99 = arith.constant dense<0xFF800000> : vector<4xf32>
    %310 = vector.multi_reduction <maximumf>, %306, %cst_99 [1] : vector<4x128xf32> to vector<4xf32>
    %311 = vector.shape_cast %310 : vector<4xf32> to vector<4x1xf32>
    %312 = vector.broadcast %311 : vector<4x1xf32> to vector<4x128xf32>
    %313 = arith.cmpf oeq, %306, %312 : vector<4x128xf32>
    %c128_i32 = arith.constant 128 : i32
    %314 = vector.broadcast %c128_i32 : i32 to vector<4x128xi32>
    %315 = arith.select %313, %243, %314 : vector<4x128xi1>, vector<4x128xi32>
    %cst_100 = arith.constant dense<2147483647> : vector<4xi32>
    %316 = vector.multi_reduction <minsi>, %315, %cst_100 [1] : vector<4x128xi32> to vector<4xi32>
    %317 = vector.shape_cast %316 : vector<4xi32> to vector<4x1xi32>
    %318 = vector.broadcast %317 : vector<4x1xi32> to vector<4x128xi32>
    %319 = arith.cmpi eq, %243, %318 : vector<4x128xi32>
    %320 = arith.extui %319 : vector<4x128xi1> to vector<4x128xi32>
    %321 = arith.sitofp %320 : vector<4x128xi32> to vector<4x128xf32>
    %322 = arith.truncf %321 : vector<4x128xf32> to vector<4x128xbf16>
    %c0_101 = arith.constant 0 : index
    %c0_102 = arith.constant 0 : index
    %323 = vector.load %arg13[%c0_101, %c0_102] : memref<128x32xbf16, #tpu.memory_space<vmem>>, vector<128x32xbf16>
    %cst_103 = arith.constant dense<0.000000e+00> : vector<4x32xf32>
    %324 = tpu.matmul %322, %323, %cst_103 {dimension_numbers = #tpu.dot_dimension_numbers<[1], [0], [0], [1], [0, 0, 1, 1], [], []>} : vector<4x128xbf16>, vector<128x32xbf16>, vector<4x32xf32> -> vector<4x32xf32>
    %325 = arith.truncf %299 : vector<4x32xf32> to vector<4x32xbf16>
    %c0_104 = arith.constant 0 : index
    %c0_105 = arith.constant 0 : index
    %326 = vector.load %arg5[%c0_104, %c0_105] : memref<32x32xbf16, #tpu.memory_space<vmem>>, vector<32x32xbf16>
    %cst_106 = arith.constant dense<0.000000e+00> : vector<4x32xf32>
    %327 = tpu.matmul %325, %326, %cst_106 {dimension_numbers = #tpu.dot_dimension_numbers<[1], [0], [0], [1], [0, 0, 1, 1], [], []>} : vector<4x32xbf16>, vector<32x32xbf16>, vector<4x32xf32> -> vector<4x32xf32>
    %c0_107 = arith.constant 0 : index
    %c0_108 = arith.constant 0 : index
    %328 = vector.load %arg6[%c0_107, %c0_108] : memref<1x32xf32, #tpu.memory_space<vmem>>, vector<1x32xf32>
    %329 = vector.broadcast %328 : vector<1x32xf32> to vector<4x32xf32>
    %330 = arith.addf %327, %329 : vector<4x32xf32>
    %331 = vector.shape_cast %330 : vector<4x32xf32> to vector<4x1x32xf32>
    %332 = vector.broadcast %331 : vector<4x1x32xf32> to vector<4x8x32xf32>
    %333 = arith.mulf %332, %212 : vector<4x8x32xf32>
    %334 = vector.shape_cast %333 : vector<4x8x32xf32> to vector<32x32xf32>
    %335 = arith.truncf %334 : vector<32x32xf32> to vector<32x32xbf16>
    %cst_109 = arith.constant dense<0.000000e+00> : vector<32x4xf32>
    %336 = tpu.matmul %335, %228, %cst_109 {dimension_numbers = #tpu.dot_dimension_numbers<[1], [0], [0], [1], [0, 0, 1, 1], [], []>} : vector<32x32xbf16>, vector<32x4xbf16>, vector<32x4xf32> -> vector<32x4xf32>
    %337 = vector.shape_cast %336 : vector<32x4xf32> to vector<4x8x4xf32>
    %cst_110 = arith.constant dense<0xFF800000> : vector<4x4xf32>
    %338 = vector.multi_reduction <maximumf>, %337, %cst_110 [1] : vector<4x8x4xf32> to vector<4x4xf32>
    %339 = vector.shape_cast %338 : vector<4x4xf32> to vector<4x1x4xf32>
    %340 = vector.broadcast %339 : vector<4x1x4xf32> to vector<4x8x4xf32>
    %341 = arith.subf %337, %340 : vector<4x8x4xf32>
    %342 = math.exp %341 : vector<4x8x4xf32>
    %cst_111 = arith.constant dense<0.000000e+00> : vector<4x4xf32>
    %343 = vector.multi_reduction <add>, %342, %cst_111 [1] : vector<4x8x4xf32> to vector<4x4xf32>
    %344 = vector.shape_cast %343 : vector<4x4xf32> to vector<4x1x4xf32>
    %345 = tpu.reciprocal %344 {approx = true} : vector<4x1x4xf32> -> vector<4x1x4xf32>
    %346 = vector.broadcast %345 : vector<4x1x4xf32> to vector<4x8x4xf32>
    %347 = arith.mulf %342, %346 : vector<4x8x4xf32>
    %348 = vector.shape_cast %347 : vector<4x8x4xf32> to vector<32x4xf32>
    %349 = arith.truncf %348 : vector<32x4xf32> to vector<32x4xbf16>
    %cst_112 = arith.constant dense<0.000000e+00> : vector<32x32xf32>
    %350 = tpu.matmul %349, %242, %cst_112 {dimension_numbers = #tpu.dot_dimension_numbers<[1], [0], [0], [1], [0, 0, 1, 1], [], []>} : vector<32x4xbf16>, vector<4x32xbf16>, vector<32x32xf32> -> vector<32x32xf32>
    %351 = vector.shape_cast %350 : vector<32x32xf32> to vector<4x8x32xf32>
    %352 = arith.mulf %351, %214 : vector<4x8x32xf32>
    %cst_113 = arith.constant dense<0.000000e+00> : vector<4x32xf32>
    %353 = vector.multi_reduction <add>, %352, %cst_113 [1] : vector<4x8x32xf32> to vector<4x32xf32>
    %354 = tpu.concatenate %324, %353, %299 in 1 : vector<4x32xf32>, vector<4x32xf32>, vector<4x32xf32> -> vector<4x96xf32>
    %355 = arith.truncf %354 : vector<4x96xf32> to vector<4x96xbf16>
    %c0_114 = arith.constant 0 : index
    %c0_115 = arith.constant 0 : index
    %356 = vector.load %arg9[%c0_114, %c0_115] : memref<96x128xbf16, #tpu.memory_space<vmem>>, vector<96x128xbf16>
    %cst_116 = arith.constant dense<0.000000e+00> : vector<4x128xf32>
    %357 = tpu.matmul %355, %356, %cst_116 {dimension_numbers = #tpu.dot_dimension_numbers<[1], [0], [0], [1], [0, 0, 1, 1], [], []>} : vector<4x96xbf16>, vector<96x128xbf16>, vector<4x128xf32> -> vector<4x128xf32>
    %c0_117 = arith.constant 0 : index
    %c0_118 = arith.constant 0 : index
    %358 = vector.load %arg10[%c0_117, %c0_118] : memref<1x128xf32, #tpu.memory_space<vmem>>, vector<1x128xf32>
    %359 = vector.broadcast %358 : vector<1x128xf32> to vector<4x128xf32>
    %360 = arith.addf %357, %359 : vector<4x128xf32>
    %361 = arith.negf %360 : vector<4x128xf32>
    %362 = math.exp %361 : vector<4x128xf32>
    %cst_119 = arith.constant 1.000000e+00 : f32
    %363 = vector.broadcast %cst_119 : f32 to vector<4x128xf32>
    %364 = arith.addf %363, %362 : vector<4x128xf32>
    %365 = arith.divf %363, %364 : vector<4x128xf32>
    %366 = vector.extract_strided_slice %365 {offsets = [0, 0], sizes = [4, 32], strides = [1, 1]} : vector<4x128xf32> to vector<4x32xf32>
    %367 = vector.extract_strided_slice %365 {offsets = [0, 32], sizes = [4, 32], strides = [1, 1]} : vector<4x128xf32> to vector<4x32xf32>
    %368 = vector.extract_strided_slice %365 {offsets = [0, 96], sizes = [4, 32], strides = [1, 1]} : vector<4x128xf32> to vector<4x32xf32>
    %369 = vector.extract_strided_slice %360 {offsets = [0, 64], sizes = [4, 32], strides = [1, 1]} : vector<4x128xf32> to vector<4x32xf32>
    %370 = math.tanh %369 : vector<4x32xf32>
    %371 = arith.mulf %367, %297 : vector<4x32xf32>
    %372 = arith.mulf %366, %370 : vector<4x32xf32>
    %373 = arith.addf %371, %372 : vector<4x32xf32>
    %374 = math.tanh %373 : vector<4x32xf32>
    %375 = arith.mulf %368, %374 : vector<4x32xf32>
    %376 = tpu.concatenate %375, %353 in 1 : vector<4x32xf32>, vector<4x32xf32> -> vector<4x64xf32>
    %377 = arith.truncf %376 : vector<4x64xf32> to vector<4x64xbf16>
    %c0_120 = arith.constant 0 : index
    %c0_121 = arith.constant 0 : index
    %378 = vector.load %arg11[%c0_120, %c0_121] : memref<64x128xbf16, #tpu.memory_space<vmem>>, vector<64x128xbf16>
    %cst_122 = arith.constant dense<0.000000e+00> : vector<4x128xf32>
    %379 = tpu.matmul %377, %378, %cst_122 {dimension_numbers = #tpu.dot_dimension_numbers<[1], [0], [0], [1], [0, 0, 1, 1], [], []>} : vector<4x64xbf16>, vector<64x128xbf16>, vector<4x128xf32> -> vector<4x128xf32>
    %c0_123 = arith.constant 0 : index
    %c0_124 = arith.constant 0 : index
    %380 = vector.load %arg12[%c0_123, %c0_124] : memref<1x128xf32, #tpu.memory_space<vmem>>, vector<1x128xf32>
    %381 = vector.broadcast %380 : vector<1x128xf32> to vector<4x128xf32>
    %382 = arith.addf %379, %381 : vector<4x128xf32>
    %c0_125 = arith.constant 0 : index
    %c2_126 = arith.constant 2 : index
    %c0_127 = arith.constant 0 : index
    %383 = vector.load %arg14[%c0_125, %c2_126, %c0_127] : memref<4x6x128xf32, #tpu.memory_space<vmem>>, vector<4x1x128xf32>
    %384 = vector.shape_cast %383 : vector<4x1x128xf32> to vector<4x128xf32>
    %385 = vector.shape_cast %382 : vector<4x128xf32> to vector<4x1x128xf32>
    tpu.vector_store %arg14[%c0_125, %c2_126, %c0_127], %385 {strides = array<i32>} : memref<4x6x128xf32, #tpu.memory_space<vmem>>, vector<4x1x128xf32>,
    %cst_128 = arith.constant dense<0xFF800000> : vector<4xf32>
    %386 = vector.multi_reduction <maximumf>, %382, %cst_128 [1] : vector<4x128xf32> to vector<4xf32>
    %387 = vector.shape_cast %386 : vector<4xf32> to vector<4x1xf32>
    %388 = vector.broadcast %387 : vector<4x1xf32> to vector<4x128xf32>
    %389 = arith.cmpf oeq, %382, %388 : vector<4x128xf32>
    %c128_i32_129 = arith.constant 128 : i32
    %390 = vector.broadcast %c128_i32_129 : i32 to vector<4x128xi32>
    %391 = arith.select %389, %243, %390 : vector<4x128xi1>, vector<4x128xi32>
    %cst_130 = arith.constant dense<2147483647> : vector<4xi32>
    %392 = vector.multi_reduction <minsi>, %391, %cst_130 [1] : vector<4x128xi32> to vector<4xi32>
    %393 = vector.shape_cast %392 : vector<4xi32> to vector<4x1xi32>
    %394 = vector.broadcast %393 : vector<4x1xi32> to vector<4x128xi32>
    %395 = arith.cmpi eq, %243, %394 : vector<4x128xi32>
    %396 = arith.extui %395 : vector<4x128xi1> to vector<4x128xi32>
    %397 = arith.sitofp %396 : vector<4x128xi32> to vector<4x128xf32>
    %398 = arith.truncf %397 : vector<4x128xf32> to vector<4x128xbf16>
    %c0_131 = arith.constant 0 : index
    %c0_132 = arith.constant 0 : index
    %399 = vector.load %arg13[%c0_131, %c0_132] : memref<128x32xbf16, #tpu.memory_space<vmem>>, vector<128x32xbf16>
    %cst_133 = arith.constant dense<0.000000e+00> : vector<4x32xf32>
    %400 = tpu.matmul %398, %399, %cst_133 {dimension_numbers = #tpu.dot_dimension_numbers<[1], [0], [0], [1], [0, 0, 1, 1], [], []>} : vector<4x128xbf16>, vector<128x32xbf16>, vector<4x32xf32> -> vector<4x32xf32>
    %401 = arith.truncf %375 : vector<4x32xf32> to vector<4x32xbf16>
    %c0_134 = arith.constant 0 : index
    %c0_135 = arith.constant 0 : index
    %402 = vector.load %arg5[%c0_134, %c0_135] : memref<32x32xbf16, #tpu.memory_space<vmem>>, vector<32x32xbf16>
    %cst_136 = arith.constant dense<0.000000e+00> : vector<4x32xf32>
    %403 = tpu.matmul %401, %402, %cst_136 {dimension_numbers = #tpu.dot_dimension_numbers<[1], [0], [0], [1], [0, 0, 1, 1], [], []>} : vector<4x32xbf16>, vector<32x32xbf16>, vector<4x32xf32> -> vector<4x32xf32>
    %c0_137 = arith.constant 0 : index
    %c0_138 = arith.constant 0 : index
    %404 = vector.load %arg6[%c0_137, %c0_138] : memref<1x32xf32, #tpu.memory_space<vmem>>, vector<1x32xf32>
    %405 = vector.broadcast %404 : vector<1x32xf32> to vector<4x32xf32>
    %406 = arith.addf %403, %405 : vector<4x32xf32>
    %407 = vector.shape_cast %406 : vector<4x32xf32> to vector<4x1x32xf32>
    %408 = vector.broadcast %407 : vector<4x1x32xf32> to vector<4x8x32xf32>
    %409 = arith.mulf %408, %212 : vector<4x8x32xf32>
    %410 = vector.shape_cast %409 : vector<4x8x32xf32> to vector<32x32xf32>
    %411 = arith.truncf %410 : vector<32x32xf32> to vector<32x32xbf16>
    %cst_139 = arith.constant dense<0.000000e+00> : vector<32x4xf32>
    %412 = tpu.matmul %411, %228, %cst_139 {dimension_numbers = #tpu.dot_dimension_numbers<[1], [0], [0], [1], [0, 0, 1, 1], [], []>} : vector<32x32xbf16>, vector<32x4xbf16>, vector<32x4xf32> -> vector<32x4xf32>
    %413 = vector.shape_cast %412 : vector<32x4xf32> to vector<4x8x4xf32>
    %cst_140 = arith.constant dense<0xFF800000> : vector<4x4xf32>
    %414 = vector.multi_reduction <maximumf>, %413, %cst_140 [1] : vector<4x8x4xf32> to vector<4x4xf32>
    %415 = vector.shape_cast %414 : vector<4x4xf32> to vector<4x1x4xf32>
    %416 = vector.broadcast %415 : vector<4x1x4xf32> to vector<4x8x4xf32>
    %417 = arith.subf %413, %416 : vector<4x8x4xf32>
    %418 = math.exp %417 : vector<4x8x4xf32>
    %cst_141 = arith.constant dense<0.000000e+00> : vector<4x4xf32>
    %419 = vector.multi_reduction <add>, %418, %cst_141 [1] : vector<4x8x4xf32> to vector<4x4xf32>
    %420 = vector.shape_cast %419 : vector<4x4xf32> to vector<4x1x4xf32>
    %421 = tpu.reciprocal %420 {approx = true} : vector<4x1x4xf32> -> vector<4x1x4xf32>
    %422 = vector.broadcast %421 : vector<4x1x4xf32> to vector<4x8x4xf32>
    %423 = arith.mulf %418, %422 : vector<4x8x4xf32>
    %424 = vector.shape_cast %423 : vector<4x8x4xf32> to vector<32x4xf32>
    %425 = arith.truncf %424 : vector<32x4xf32> to vector<32x4xbf16>
    %cst_142 = arith.constant dense<0.000000e+00> : vector<32x32xf32>
    %426 = tpu.matmul %425, %242, %cst_142 {dimension_numbers = #tpu.dot_dimension_numbers<[1], [0], [0], [1], [0, 0, 1, 1], [], []>} : vector<32x4xbf16>, vector<4x32xbf16>, vector<32x32xf32> -> vector<32x32xf32>
    %427 = vector.shape_cast %426 : vector<32x32xf32> to vector<4x8x32xf32>
    %428 = arith.mulf %427, %214 : vector<4x8x32xf32>
    %cst_143 = arith.constant dense<0.000000e+00> : vector<4x32xf32>
    %429 = vector.multi_reduction <add>, %428, %cst_143 [1] : vector<4x8x32xf32> to vector<4x32xf32>
    %430 = tpu.concatenate %400, %429, %375 in 1 : vector<4x32xf32>, vector<4x32xf32>, vector<4x32xf32> -> vector<4x96xf32>
    %431 = arith.truncf %430 : vector<4x96xf32> to vector<4x96xbf16>
    %c0_144 = arith.constant 0 : index
    %c0_145 = arith.constant 0 : index
    %432 = vector.load %arg9[%c0_144, %c0_145] : memref<96x128xbf16, #tpu.memory_space<vmem>>, vector<96x128xbf16>
    %cst_146 = arith.constant dense<0.000000e+00> : vector<4x128xf32>
    %433 = tpu.matmul %431, %432, %cst_146 {dimension_numbers = #tpu.dot_dimension_numbers<[1], [0], [0], [1], [0, 0, 1, 1], [], []>} : vector<4x96xbf16>, vector<96x128xbf16>, vector<4x128xf32> -> vector<4x128xf32>
    %c0_147 = arith.constant 0 : index
    %c0_148 = arith.constant 0 : index
    %434 = vector.load %arg10[%c0_147, %c0_148] : memref<1x128xf32, #tpu.memory_space<vmem>>, vector<1x128xf32>
    %435 = vector.broadcast %434 : vector<1x128xf32> to vector<4x128xf32>
    %436 = arith.addf %433, %435 : vector<4x128xf32>
    %437 = arith.negf %436 : vector<4x128xf32>
    %438 = math.exp %437 : vector<4x128xf32>
    %cst_149 = arith.constant 1.000000e+00 : f32
    %439 = vector.broadcast %cst_149 : f32 to vector<4x128xf32>
    %440 = arith.addf %439, %438 : vector<4x128xf32>
    %441 = arith.divf %439, %440 : vector<4x128xf32>
    %442 = vector.extract_strided_slice %441 {offsets = [0, 0], sizes = [4, 32], strides = [1, 1]} : vector<4x128xf32> to vector<4x32xf32>
    %443 = vector.extract_strided_slice %441 {offsets = [0, 32], sizes = [4, 32], strides = [1, 1]} : vector<4x128xf32> to vector<4x32xf32>
    %444 = vector.extract_strided_slice %441 {offsets = [0, 96], sizes = [4, 32], strides = [1, 1]} : vector<4x128xf32> to vector<4x32xf32>
    %445 = vector.extract_strided_slice %436 {offsets = [0, 64], sizes = [4, 32], strides = [1, 1]} : vector<4x128xf32> to vector<4x32xf32>
    %446 = math.tanh %445 : vector<4x32xf32>
    %447 = arith.mulf %443, %373 : vector<4x32xf32>
    %448 = arith.mulf %442, %446 : vector<4x32xf32>
    %449 = arith.addf %447, %448 : vector<4x32xf32>
    %450 = math.tanh %449 : vector<4x32xf32>
    %451 = arith.mulf %444, %450 : vector<4x32xf32>
    %452 = tpu.concatenate %451, %429 in 1 : vector<4x32xf32>, vector<4x32xf32> -> vector<4x64xf32>
    %453 = arith.truncf %452 : vector<4x64xf32> to vector<4x64xbf16>
    %c0_150 = arith.constant 0 : index
    %c0_151 = arith.constant 0 : index
    %454 = vector.load %arg11[%c0_150, %c0_151] : memref<64x128xbf16, #tpu.memory_space<vmem>>, vector<64x128xbf16>
    %cst_152 = arith.constant dense<0.000000e+00> : vector<4x128xf32>
    %455 = tpu.matmul %453, %454, %cst_152 {dimension_numbers = #tpu.dot_dimension_numbers<[1], [0], [0], [1], [0, 0, 1, 1], [], []>} : vector<4x64xbf16>, vector<64x128xbf16>, vector<4x128xf32> -> vector<4x128xf32>
    %c0_153 = arith.constant 0 : index
    %c0_154 = arith.constant 0 : index
    %456 = vector.load %arg12[%c0_153, %c0_154] : memref<1x128xf32, #tpu.memory_space<vmem>>, vector<1x128xf32>
    %457 = vector.broadcast %456 : vector<1x128xf32> to vector<4x128xf32>
    %458 = arith.addf %455, %457 : vector<4x128xf32>
    %c0_155 = arith.constant 0 : index
    %c3_156 = arith.constant 3 : index
    %c0_157 = arith.constant 0 : index
    %459 = vector.load %arg14[%c0_155, %c3_156, %c0_157] : memref<4x6x128xf32, #tpu.memory_space<vmem>>, vector<4x1x128xf32>
    %460 = vector.shape_cast %459 : vector<4x1x128xf32> to vector<4x128xf32>
    %461 = vector.shape_cast %458 : vector<4x128xf32> to vector<4x1x128xf32>
    tpu.vector_store %arg14[%c0_155, %c3_156, %c0_157], %461 {strides = array<i32>} : memref<4x6x128xf32, #tpu.memory_space<vmem>>, vector<4x1x128xf32>,
    %cst_158 = arith.constant dense<0xFF800000> : vector<4xf32>
    %462 = vector.multi_reduction <maximumf>, %458, %cst_158 [1] : vector<4x128xf32> to vector<4xf32>
    %463 = vector.shape_cast %462 : vector<4xf32> to vector<4x1xf32>
    %464 = vector.broadcast %463 : vector<4x1xf32> to vector<4x128xf32>
    %465 = arith.cmpf oeq, %458, %464 : vector<4x128xf32>
    %c128_i32_159 = arith.constant 128 : i32
    %466 = vector.broadcast %c128_i32_159 : i32 to vector<4x128xi32>
    %467 = arith.select %465, %243, %466 : vector<4x128xi1>, vector<4x128xi32>
    %cst_160 = arith.constant dense<2147483647> : vector<4xi32>
    %468 = vector.multi_reduction <minsi>, %467, %cst_160 [1] : vector<4x128xi32> to vector<4xi32>
    %469 = vector.shape_cast %468 : vector<4xi32> to vector<4x1xi32>
    %470 = vector.broadcast %469 : vector<4x1xi32> to vector<4x128xi32>
    %471 = arith.cmpi eq, %243, %470 : vector<4x128xi32>
    %472 = arith.extui %471 : vector<4x128xi1> to vector<4x128xi32>
    %473 = arith.sitofp %472 : vector<4x128xi32> to vector<4x128xf32>
    %474 = arith.truncf %473 : vector<4x128xf32> to vector<4x128xbf16>
    %c0_161 = arith.constant 0 : index
    %c0_162 = arith.constant 0 : index
    %475 = vector.load %arg13[%c0_161, %c0_162] : memref<128x32xbf16, #tpu.memory_space<vmem>>, vector<128x32xbf16>
    %cst_163 = arith.constant dense<0.000000e+00> : vector<4x32xf32>
    %476 = tpu.matmul %474, %475, %cst_163 {dimension_numbers = #tpu.dot_dimension_numbers<[1], [0], [0], [1], [0, 0, 1, 1], [], []>} : vector<4x128xbf16>, vector<128x32xbf16>, vector<4x32xf32> -> vector<4x32xf32>
    %477 = arith.truncf %451 : vector<4x32xf32> to vector<4x32xbf16>
    %c0_164 = arith.constant 0 : index
    %c0_165 = arith.constant 0 : index
    %478 = vector.load %arg5[%c0_164, %c0_165] : memref<32x32xbf16, #tpu.memory_space<vmem>>, vector<32x32xbf16>
    %cst_166 = arith.constant dense<0.000000e+00> : vector<4x32xf32>
    %479 = tpu.matmul %477, %478, %cst_166 {dimension_numbers = #tpu.dot_dimension_numbers<[1], [0], [0], [1], [0, 0, 1, 1], [], []>} : vector<4x32xbf16>, vector<32x32xbf16>, vector<4x32xf32> -> vector<4x32xf32>
    %c0_167 = arith.constant 0 : index
    %c0_168 = arith.constant 0 : index
    %480 = vector.load %arg6[%c0_167, %c0_168] : memref<1x32xf32, #tpu.memory_space<vmem>>, vector<1x32xf32>
    %481 = vector.broadcast %480 : vector<1x32xf32> to vector<4x32xf32>
    %482 = arith.addf %479, %481 : vector<4x32xf32>
    %483 = vector.shape_cast %482 : vector<4x32xf32> to vector<4x1x32xf32>
    %484 = vector.broadcast %483 : vector<4x1x32xf32> to vector<4x8x32xf32>
    %485 = arith.mulf %484, %212 : vector<4x8x32xf32>
    %486 = vector.shape_cast %485 : vector<4x8x32xf32> to vector<32x32xf32>
    %487 = arith.truncf %486 : vector<32x32xf32> to vector<32x32xbf16>
    %cst_169 = arith.constant dense<0.000000e+00> : vector<32x4xf32>
    %488 = tpu.matmul %487, %228, %cst_169 {dimension_numbers = #tpu.dot_dimension_numbers<[1], [0], [0], [1], [0, 0, 1, 1], [], []>} : vector<32x32xbf16>, vector<32x4xbf16>, vector<32x4xf32> -> vector<32x4xf32>
    %489 = vector.shape_cast %488 : vector<32x4xf32> to vector<4x8x4xf32>
    %cst_170 = arith.constant dense<0xFF800000> : vector<4x4xf32>
    %490 = vector.multi_reduction <maximumf>, %489, %cst_170 [1] : vector<4x8x4xf32> to vector<4x4xf32>
    %491 = vector.shape_cast %490 : vector<4x4xf32> to vector<4x1x4xf32>
    %492 = vector.broadcast %491 : vector<4x1x4xf32> to vector<4x8x4xf32>
    %493 = arith.subf %489, %492 : vector<4x8x4xf32>
    %494 = math.exp %493 : vector<4x8x4xf32>
    %cst_171 = arith.constant dense<0.000000e+00> : vector<4x4xf32>
    %495 = vector.multi_reduction <add>, %494, %cst_171 [1] : vector<4x8x4xf32> to vector<4x4xf32>
    %496 = vector.shape_cast %495 : vector<4x4xf32> to vector<4x1x4xf32>
    %497 = tpu.reciprocal %496 {approx = true} : vector<4x1x4xf32> -> vector<4x1x4xf32>
    %498 = vector.broadcast %497 : vector<4x1x4xf32> to vector<4x8x4xf32>
    %499 = arith.mulf %494, %498 : vector<4x8x4xf32>
    %500 = vector.shape_cast %499 : vector<4x8x4xf32> to vector<32x4xf32>
    %501 = arith.truncf %500 : vector<32x4xf32> to vector<32x4xbf16>
    %cst_172 = arith.constant dense<0.000000e+00> : vector<32x32xf32>
    %502 = tpu.matmul %501, %242, %cst_172 {dimension_numbers = #tpu.dot_dimension_numbers<[1], [0], [0], [1], [0, 0, 1, 1], [], []>} : vector<32x4xbf16>, vector<4x32xbf16>, vector<32x32xf32> -> vector<32x32xf32>
    %503 = vector.shape_cast %502 : vector<32x32xf32> to vector<4x8x32xf32>
    %504 = arith.mulf %503, %214 : vector<4x8x32xf32>
    %cst_173 = arith.constant dense<0.000000e+00> : vector<4x32xf32>
    %505 = vector.multi_reduction <add>, %504, %cst_173 [1] : vector<4x8x32xf32> to vector<4x32xf32>
    %506 = tpu.concatenate %476, %505, %451 in 1 : vector<4x32xf32>, vector<4x32xf32>, vector<4x32xf32> -> vector<4x96xf32>
    %507 = arith.truncf %506 : vector<4x96xf32> to vector<4x96xbf16>
    %c0_174 = arith.constant 0 : index
    %c0_175 = arith.constant 0 : index
    %508 = vector.load %arg9[%c0_174, %c0_175] : memref<96x128xbf16, #tpu.memory_space<vmem>>, vector<96x128xbf16>
    %cst_176 = arith.constant dense<0.000000e+00> : vector<4x128xf32>
    %509 = tpu.matmul %507, %508, %cst_176 {dimension_numbers = #tpu.dot_dimension_numbers<[1], [0], [0], [1], [0, 0, 1, 1], [], []>} : vector<4x96xbf16>, vector<96x128xbf16>, vector<4x128xf32> -> vector<4x128xf32>
    %c0_177 = arith.constant 0 : index
    %c0_178 = arith.constant 0 : index
    %510 = vector.load %arg10[%c0_177, %c0_178] : memref<1x128xf32, #tpu.memory_space<vmem>>, vector<1x128xf32>
    %511 = vector.broadcast %510 : vector<1x128xf32> to vector<4x128xf32>
    %512 = arith.addf %509, %511 : vector<4x128xf32>
    %513 = arith.negf %512 : vector<4x128xf32>
    %514 = math.exp %513 : vector<4x128xf32>
    %cst_179 = arith.constant 1.000000e+00 : f32
    %515 = vector.broadcast %cst_179 : f32 to vector<4x128xf32>
    %516 = arith.addf %515, %514 : vector<4x128xf32>
    %517 = arith.divf %515, %516 : vector<4x128xf32>
    %518 = vector.extract_strided_slice %517 {offsets = [0, 0], sizes = [4, 32], strides = [1, 1]} : vector<4x128xf32> to vector<4x32xf32>
    %519 = vector.extract_strided_slice %517 {offsets = [0, 32], sizes = [4, 32], strides = [1, 1]} : vector<4x128xf32> to vector<4x32xf32>
    %520 = vector.extract_strided_slice %517 {offsets = [0, 96], sizes = [4, 32], strides = [1, 1]} : vector<4x128xf32> to vector<4x32xf32>
    %521 = vector.extract_strided_slice %512 {offsets = [0, 64], sizes = [4, 32], strides = [1, 1]} : vector<4x128xf32> to vector<4x32xf32>
    %522 = math.tanh %521 : vector<4x32xf32>
    %523 = arith.mulf %519, %449 : vector<4x32xf32>
    %524 = arith.mulf %518, %522 : vector<4x32xf32>
    %525 = arith.addf %523, %524 : vector<4x32xf32>
    %526 = math.tanh %525 : vector<4x32xf32>
    %527 = arith.mulf %520, %526 : vector<4x32xf32>
    %528 = tpu.concatenate %527, %505 in 1 : vector<4x32xf32>, vector<4x32xf32> -> vector<4x64xf32>
    %529 = arith.truncf %528 : vector<4x64xf32> to vector<4x64xbf16>
    %c0_180 = arith.constant 0 : index
    %c0_181 = arith.constant 0 : index
    %530 = vector.load %arg11[%c0_180, %c0_181] : memref<64x128xbf16, #tpu.memory_space<vmem>>, vector<64x128xbf16>
    %cst_182 = arith.constant dense<0.000000e+00> : vector<4x128xf32>
    %531 = tpu.matmul %529, %530, %cst_182 {dimension_numbers = #tpu.dot_dimension_numbers<[1], [0], [0], [1], [0, 0, 1, 1], [], []>} : vector<4x64xbf16>, vector<64x128xbf16>, vector<4x128xf32> -> vector<4x128xf32>
    %c0_183 = arith.constant 0 : index
    %c0_184 = arith.constant 0 : index
    %532 = vector.load %arg12[%c0_183, %c0_184] : memref<1x128xf32, #tpu.memory_space<vmem>>, vector<1x128xf32>
    %533 = vector.broadcast %532 : vector<1x128xf32> to vector<4x128xf32>
    %534 = arith.addf %531, %533 : vector<4x128xf32>
    %c0_185 = arith.constant 0 : index
    %c4_186 = arith.constant 4 : index
    %c0_187 = arith.constant 0 : index
    %535 = vector.load %arg14[%c0_185, %c4_186, %c0_187] : memref<4x6x128xf32, #tpu.memory_space<vmem>>, vector<4x1x128xf32>
    %536 = vector.shape_cast %535 : vector<4x1x128xf32> to vector<4x128xf32>
    %537 = vector.shape_cast %534 : vector<4x128xf32> to vector<4x1x128xf32>
    tpu.vector_store %arg14[%c0_185, %c4_186, %c0_187], %537 {strides = array<i32>} : memref<4x6x128xf32, #tpu.memory_space<vmem>>, vector<4x1x128xf32>,
    %cst_188 = arith.constant dense<0xFF800000> : vector<4xf32>
    %538 = vector.multi_reduction <maximumf>, %534, %cst_188 [1] : vector<4x128xf32> to vector<4xf32>
    %539 = vector.shape_cast %538 : vector<4xf32> to vector<4x1xf32>
    %540 = vector.broadcast %539 : vector<4x1xf32> to vector<4x128xf32>
    %541 = arith.cmpf oeq, %534, %540 : vector<4x128xf32>
    %c128_i32_189 = arith.constant 128 : i32
    %542 = vector.broadcast %c128_i32_189 : i32 to vector<4x128xi32>
    %543 = arith.select %541, %243, %542 : vector<4x128xi1>, vector<4x128xi32>
    %cst_190 = arith.constant dense<2147483647> : vector<4xi32>
    %544 = vector.multi_reduction <minsi>, %543, %cst_190 [1] : vector<4x128xi32> to vector<4xi32>
    %545 = vector.shape_cast %544 : vector<4xi32> to vector<4x1xi32>
    %546 = vector.broadcast %545 : vector<4x1xi32> to vector<4x128xi32>
    %547 = arith.cmpi eq, %243, %546 : vector<4x128xi32>
    %548 = arith.extui %547 : vector<4x128xi1> to vector<4x128xi32>
    %549 = arith.sitofp %548 : vector<4x128xi32> to vector<4x128xf32>
    %550 = arith.truncf %549 : vector<4x128xf32> to vector<4x128xbf16>
    %c0_191 = arith.constant 0 : index
    %c0_192 = arith.constant 0 : index
    %551 = vector.load %arg13[%c0_191, %c0_192] : memref<128x32xbf16, #tpu.memory_space<vmem>>, vector<128x32xbf16>
    %cst_193 = arith.constant dense<0.000000e+00> : vector<4x32xf32>
    %552 = tpu.matmul %550, %551, %cst_193 {dimension_numbers = #tpu.dot_dimension_numbers<[1], [0], [0], [1], [0, 0, 1, 1], [], []>} : vector<4x128xbf16>, vector<128x32xbf16>, vector<4x32xf32> -> vector<4x32xf32>
    %553 = arith.truncf %527 : vector<4x32xf32> to vector<4x32xbf16>
    %c0_194 = arith.constant 0 : index
    %c0_195 = arith.constant 0 : index
    %554 = vector.load %arg5[%c0_194, %c0_195] : memref<32x32xbf16, #tpu.memory_space<vmem>>, vector<32x32xbf16>
    %cst_196 = arith.constant dense<0.000000e+00> : vector<4x32xf32>
    %555 = tpu.matmul %553, %554, %cst_196 {dimension_numbers = #tpu.dot_dimension_numbers<[1], [0], [0], [1], [0, 0, 1, 1], [], []>} : vector<4x32xbf16>, vector<32x32xbf16>, vector<4x32xf32> -> vector<4x32xf32>
    %c0_197 = arith.constant 0 : index
    %c0_198 = arith.constant 0 : index
    %556 = vector.load %arg6[%c0_197, %c0_198] : memref<1x32xf32, #tpu.memory_space<vmem>>, vector<1x32xf32>
    %557 = vector.broadcast %556 : vector<1x32xf32> to vector<4x32xf32>
    %558 = arith.addf %555, %557 : vector<4x32xf32>
    %559 = vector.shape_cast %558 : vector<4x32xf32> to vector<4x1x32xf32>
    %560 = vector.broadcast %559 : vector<4x1x32xf32> to vector<4x8x32xf32>
    %561 = arith.mulf %560, %212 : vector<4x8x32xf32>
    %562 = vector.shape_cast %561 : vector<4x8x32xf32> to vector<32x32xf32>
    %563 = arith.truncf %562 : vector<32x32xf32> to vector<32x32xbf16>
    %cst_199 = arith.constant dense<0.000000e+00> : vector<32x4xf32>
    %564 = tpu.matmul %563, %228, %cst_199 {dimension_numbers = #tpu.dot_dimension_numbers<[1], [0], [0], [1], [0, 0, 1, 1], [], []>} : vector<32x32xbf16>, vector<32x4xbf16>, vector<32x4xf32> -> vector<32x4xf32>
    %565 = vector.shape_cast %564 : vector<32x4xf32> to vector<4x8x4xf32>
    %cst_200 = arith.constant dense<0xFF800000> : vector<4x4xf32>
    %566 = vector.multi_reduction <maximumf>, %565, %cst_200 [1] : vector<4x8x4xf32> to vector<4x4xf32>
    %567 = vector.shape_cast %566 : vector<4x4xf32> to vector<4x1x4xf32>
    %568 = vector.broadcast %567 : vector<4x1x4xf32> to vector<4x8x4xf32>
    %569 = arith.subf %565, %568 : vector<4x8x4xf32>
    %570 = math.exp %569 : vector<4x8x4xf32>
    %cst_201 = arith.constant dense<0.000000e+00> : vector<4x4xf32>
    %571 = vector.multi_reduction <add>, %570, %cst_201 [1] : vector<4x8x4xf32> to vector<4x4xf32>
    %572 = vector.shape_cast %571 : vector<4x4xf32> to vector<4x1x4xf32>
    %573 = tpu.reciprocal %572 {approx = true} : vector<4x1x4xf32> -> vector<4x1x4xf32>
    %574 = vector.broadcast %573 : vector<4x1x4xf32> to vector<4x8x4xf32>
    %575 = arith.mulf %570, %574 : vector<4x8x4xf32>
    %576 = vector.shape_cast %575 : vector<4x8x4xf32> to vector<32x4xf32>
    %577 = arith.truncf %576 : vector<32x4xf32> to vector<32x4xbf16>
    %cst_202 = arith.constant dense<0.000000e+00> : vector<32x32xf32>
    %578 = tpu.matmul %577, %242, %cst_202 {dimension_numbers = #tpu.dot_dimension_numbers<[1], [0], [0], [1], [0, 0, 1, 1], [], []>} : vector<32x4xbf16>, vector<4x32xbf16>, vector<32x32xf32> -> vector<32x32xf32>
    %579 = vector.shape_cast %578 : vector<32x32xf32> to vector<4x8x32xf32>
    %580 = arith.mulf %579, %214 : vector<4x8x32xf32>
    %cst_203 = arith.constant dense<0.000000e+00> : vector<4x32xf32>
    %581 = vector.multi_reduction <add>, %580, %cst_203 [1] : vector<4x8x32xf32> to vector<4x32xf32>
    %582 = tpu.concatenate %552, %581, %527 in 1 : vector<4x32xf32>, vector<4x32xf32>, vector<4x32xf32> -> vector<4x96xf32>
    %583 = arith.truncf %582 : vector<4x96xf32> to vector<4x96xbf16>
    %c0_204 = arith.constant 0 : index
    %c0_205 = arith.constant 0 : index
    %584 = vector.load %arg9[%c0_204, %c0_205] : memref<96x128xbf16, #tpu.memory_space<vmem>>, vector<96x128xbf16>
    %cst_206 = arith.constant dense<0.000000e+00> : vector<4x128xf32>
    %585 = tpu.matmul %583, %584, %cst_206 {dimension_numbers = #tpu.dot_dimension_numbers<[1], [0], [0], [1], [0, 0, 1, 1], [], []>} : vector<4x96xbf16>, vector<96x128xbf16>, vector<4x128xf32> -> vector<4x128xf32>
    %c0_207 = arith.constant 0 : index
    %c0_208 = arith.constant 0 : index
    %586 = vector.load %arg10[%c0_207, %c0_208] : memref<1x128xf32, #tpu.memory_space<vmem>>, vector<1x128xf32>
    %587 = vector.broadcast %586 : vector<1x128xf32> to vector<4x128xf32>
    %588 = arith.addf %585, %587 : vector<4x128xf32>
    %589 = arith.negf %588 : vector<4x128xf32>
    %590 = math.exp %589 : vector<4x128xf32>
    %cst_209 = arith.constant 1.000000e+00 : f32
    %591 = vector.broadcast %cst_209 : f32 to vector<4x128xf32>
    %592 = arith.addf %591, %590 : vector<4x128xf32>
    %593 = arith.divf %591, %592 : vector<4x128xf32>
    %594 = vector.extract_strided_slice %593 {offsets = [0, 0], sizes = [4, 32], strides = [1, 1]} : vector<4x128xf32> to vector<4x32xf32>
    %595 = vector.extract_strided_slice %593 {offsets = [0, 32], sizes = [4, 32], strides = [1, 1]} : vector<4x128xf32> to vector<4x32xf32>
    %596 = vector.extract_strided_slice %593 {offsets = [0, 96], sizes = [4, 32], strides = [1, 1]} : vector<4x128xf32> to vector<4x32xf32>
    %597 = vector.extract_strided_slice %588 {offsets = [0, 64], sizes = [4, 32], strides = [1, 1]} : vector<4x128xf32> to vector<4x32xf32>
    %598 = math.tanh %597 : vector<4x32xf32>
    %599 = arith.mulf %595, %525 : vector<4x32xf32>
    %600 = arith.mulf %594, %598 : vector<4x32xf32>
    %601 = arith.addf %599, %600 : vector<4x32xf32>
    %602 = math.tanh %601 : vector<4x32xf32>
    %603 = arith.mulf %596, %602 : vector<4x32xf32>
    %604 = tpu.concatenate %603, %581 in 1 : vector<4x32xf32>, vector<4x32xf32> -> vector<4x64xf32>
    %605 = arith.truncf %604 : vector<4x64xf32> to vector<4x64xbf16>
    %c0_210 = arith.constant 0 : index
    %c0_211 = arith.constant 0 : index
    %606 = vector.load %arg11[%c0_210, %c0_211] : memref<64x128xbf16, #tpu.memory_space<vmem>>, vector<64x128xbf16>
    %cst_212 = arith.constant dense<0.000000e+00> : vector<4x128xf32>
    %607 = tpu.matmul %605, %606, %cst_212 {dimension_numbers = #tpu.dot_dimension_numbers<[1], [0], [0], [1], [0, 0, 1, 1], [], []>} : vector<4x64xbf16>, vector<64x128xbf16>, vector<4x128xf32> -> vector<4x128xf32>
    %c0_213 = arith.constant 0 : index
    %c0_214 = arith.constant 0 : index
    %608 = vector.load %arg12[%c0_213, %c0_214] : memref<1x128xf32, #tpu.memory_space<vmem>>, vector<1x128xf32>
    %609 = vector.broadcast %608 : vector<1x128xf32> to vector<4x128xf32>
    %610 = arith.addf %607, %609 : vector<4x128xf32>
    %c0_215 = arith.constant 0 : index
    %c5_216 = arith.constant 5 : index
    %c0_217 = arith.constant 0 : index
    %611 = vector.load %arg14[%c0_215, %c5_216, %c0_217] : memref<4x6x128xf32, #tpu.memory_space<vmem>>, vector<4x1x128xf32>
    %612 = vector.shape_cast %611 : vector<4x1x128xf32> to vector<4x128xf32>
    %613 = vector.shape_cast %610 : vector<4x128xf32> to vector<4x1x128xf32>
    tpu.vector_store %arg14[%c0_215, %c5_216, %c0_217], %613 {strides = array<i32>} : memref<4x6x128xf32, #tpu.memory_space<vmem>>, vector<4x1x128xf32>,
    return
  }
}

</mosaic_0001>

<llo_original>
// kernel: seq2seq_forward.1
$region0: #{seq2seq_forward.1}
  #allocation0 [shape = 'u32[]', space=smem, size = 0x4, offset = 0x4, fixed_abs, tag = 'smem constant byte address 0x4 - core index']
  #allocation1 [shape = 'u32[144,128]{1,0:T(1,128)}', space=vmem, size = 0x12000, scoped, tag = 'internal scratch']
  #allocation2 [shape = 'f32[4,8,32]{2,1,0:T(8,128)}', space=vmem, size = 0x4000, scoped, tag = 'scratch operand']
  %s0 = inlined_call_operand.vmem [shape: f32[4,8,32], index: 0, kind: input, shape index: {}]
  %s1 = inlined_call_operand.vmem [shape: f32[4,32], index: 1, kind: input, shape index: {}]
  %s2 = inlined_call_operand.vmem [shape: bf16[32,128], index: 2, kind: input, shape index: {}]
  %s3 = inlined_call_operand.vmem [shape: bf16[32,128], index: 3, kind: input, shape index: {}]
  %s4 = inlined_call_operand.vmem [shape: f32[1,128], index: 4, kind: input, shape index: {}]
  %s5 = inlined_call_operand.vmem [shape: bf16[32,32], index: 5, kind: input, shape index: {}]
  %s6 = inlined_call_operand.vmem [shape: f32[1,32], index: 6, kind: input, shape index: {}]
  %s7 = inlined_call_operand.vmem [shape: bf16[32,64], index: 7, kind: input, shape index: {}]
  %s8 = inlined_call_operand.vmem [shape: f32[1,64], index: 8, kind: input, shape index: {}]
  %s9 = inlined_call_operand.vmem [shape: bf16[96,128], index: 9, kind: input, shape index: {}]
  %s10 = inlined_call_operand.vmem [shape: f32[1,128], index: 10, kind: input, shape index: {}]
  %s11 = inlined_call_operand.vmem [shape: bf16[64,128], index: 11, kind: input, shape index: {}]
  %s12 = inlined_call_operand.vmem [shape: f32[1,128], index: 12, kind: input, shape index: {}]
  %s13 = inlined_call_operand.vmem [shape: bf16[128,32], index: 13, kind: input, shape index: {}]
  %s14 = inlined_call_operand.vmem [shape: f32[4,6,128], index: 14, kind: output, shape index: {}]
  %s15 = sld [smem:[#allocation0]]
  $region66: #{seq2seq_forward.1} parent=0
    _
  %s17 = ssub.s32 1, %s15
  %s18 = scalar_select 0, %s17, %s15
  // Predicated region
  $region2: #{seq2seq_forward.1} parent=0 // pred_check
    _
  $region3: #{seq2seq_forward.1} parent=0 // pred_check_branch
    %20 = sbr.rel (0) target = $region5
  $region4: #{seq2seq_forward.1} parent=0 // pred_region
    _
  $region5: #{seq2seq_forward.1} parent=0 // pred_fallthru
    _
  // Predicated region
  $region6: #{seq2seq_forward.1} parent=0 // pred_check
    _
  $region7: #{seq2seq_forward.1} parent=0 // pred_check_branch
    %22 = sbr.rel (0) target = $region9
  $region8: #{seq2seq_forward.1} parent=0 // pred_region
    _
  $region9: #{seq2seq_forward.1} parent=0 // pred_fallthru
    _
  // Predicated region
  $region10: #{seq2seq_forward.1} parent=0 // pred_check
    _
  $region11: #{seq2seq_forward.1} parent=0 // pred_check_branch
    %24 = sbr.rel (0) target = $region13
  $region12: #{seq2seq_forward.1} parent=0 // pred_region
    _
  $region13: #{seq2seq_forward.1} parent=0 // pred_fallthru
    _
  // Predicated region
  $region14: #{seq2seq_forward.1} parent=0 // pred_check
    _
  $region15: #{seq2seq_forward.1} parent=0 // pred_check_branch
    %26 = sbr.rel (0) target = $region17
  $region16: #{seq2seq_forward.1} parent=0 // pred_region
    _
  $region17: #{seq2seq_forward.1} parent=0 // pred_fallthru
    _
  // Predicated region
  $region18: #{seq2seq_forward.1} parent=0 // pred_check
    _
  $region19: #{seq2seq_forward.1} parent=0 // pred_check_branch
    %28 = sbr.rel (0) target = $region21
  $region20: #{seq2seq_forward.1} parent=0 // pred_region
    _
  $region21: #{seq2seq_forward.1} parent=0 // pred_fallthru
    _
  // Predicated region
  $region22: #{seq2seq_forward.1} parent=0 // pred_check
    _
  $region23: #{seq2seq_forward.1} parent=0 // pred_check_branch
    %30 = sbr.rel (0) target = $region25
  $region24: #{seq2seq_forward.1} parent=0 // pred_region
    _
  $region25: #{seq2seq_forward.1} parent=0 // pred_fallthru
    _
  // Predicated region
  $region26: #{seq2seq_forward.1} parent=0 // pred_check
    _
  $region27: #{seq2seq_forward.1} parent=0 // pred_check_branch
    %32 = sbr.rel (0) target = $region29
  $region28: #{seq2seq_forward.1} parent=0 // pred_region
    _
  $region29: #{seq2seq_forward.1} parent=0 // pred_fallthru
    _
  // Predicated region
  $region30: #{seq2seq_forward.1} parent=0 // pred_check
    _
  $region31: #{seq2seq_forward.1} parent=0 // pred_check_branch
    %34 = sbr.rel (0) target = $region33
  $region32: #{seq2seq_forward.1} parent=0 // pred_region
    _
  $region33: #{seq2seq_forward.1} parent=0 // pred_fallthru
    _
  // Predicated region
  $region34: #{seq2seq_forward.1} parent=0 // pred_check
    _
  $region35: #{seq2seq_forward.1} parent=0 // pred_check_branch
    %36 = sbr.rel (0) target = $region37
  $region36: #{seq2seq_forward.1} parent=0 // pred_region
    _
  $region37: #{seq2seq_forward.1} parent=0 // pred_fallthru
    _
  // Predicated region
  $region38: #{seq2seq_forward.1} parent=0 // pred_check
    _
  $region39: #{seq2seq_forward.1} parent=0 // pred_check_branch
    %38 = sbr.rel (0) target = $region41
  $region40: #{seq2seq_forward.1} parent=0 // pred_region
    _
  $region41: #{seq2seq_forward.1} parent=0 // pred_fallthru
    _
  // Predicated region
  $region42: #{seq2seq_forward.1} parent=0 // pred_check
    _
  $region43: #{seq2seq_forward.1} parent=0 // pred_check_branch
    %40 = sbr.rel (0) target = $region45
  $region44: #{seq2seq_forward.1} parent=0 // pred_region
    _
  $region45: #{seq2seq_forward.1} parent=0 // pred_fallthru
    _
  // Predicated region
  $region46: #{seq2seq_forward.1} parent=0 // pred_check
    _
  $region47: #{seq2seq_forward.1} parent=0 // pred_check_branch
    %42 = sbr.rel (0) target = $region49
  $region48: #{seq2seq_forward.1} parent=0 // pred_region
    _
  $region49: #{seq2seq_forward.1} parent=0 // pred_fallthru
    _
  // Predicated region
  $region50: #{seq2seq_forward.1} parent=0 // pred_check
    _
  $region51: #{seq2seq_forward.1} parent=0 // pred_check_branch
    %44 = sbr.rel (0) target = $region53
  $region52: #{seq2seq_forward.1} parent=0 // pred_region
    _
  $region53: #{seq2seq_forward.1} parent=0 // pred_fallthru
    _
  // Predicated region
  $region54: #{seq2seq_forward.1} parent=0 // pred_check
    _
  $region55: #{seq2seq_forward.1} parent=0 // pred_check_branch
    %46 = sbr.rel (0) target = $region57
  $region56: #{seq2seq_forward.1} parent=0 // pred_region
    _
  $region57: #{seq2seq_forward.1} parent=0 // pred_fallthru
    _
  %v48 = vld [vmem:[%s0] sm:$0xff]
  %v49 = vld [vmem:[%s0 + $0x8] sm:$0xff]
  %v50 = vld [vmem:[%s0 + $0x10] sm:$0xff]
  %v51 = vld [vmem:[%s0 + $0x18] sm:$0xff]
  %v52 = vpack.c.bf16 %v49, %v48
  %v53 = vpack.c.bf16 %v51, %v50
  %v54 = vld [vmem:[%s2] sm:$0xf]
  %v55 = vld [vmem:[%s2 + $0x4] sm:$0xf]
  %v56 = vld [vmem:[%s2 + $0x8] sm:$0xf]
  %v57 = vld [vmem:[%s2 + $0xc] sm:$0xf]
  %v58 = vld [vmem:[%s4] sm:$0x1]
  %v60 = vlaneseq
  %v61 = vshrl.u32 %v60, 7
  %v62 = vsub.s32 0, %v61
  %v63 = vrot.slane %v58, %v62
  %v69 = vunpack.c.l.b16 %v54
  %v70 = vunpack.c.l.b16 %v55
  %v71 = vunpack.c.l.b16 %v56
  %v72 = vunpack.c.l.b16 %v57
  %v73 = vpack.c.b16 %v70, %v69
  %v74 = vpack.c.b16 %v72, %v71
  %vm77 = vcmask 261120
  %v79 = vsel %vm77, %v52, 0
  %v82 = vsel %vm77, %v53, 0
  %84 = vmatprep.subr.bf16.mxu0 0
  %85 = vmatpush1.bf16.msra.mxu0 0
  %86 = vmatprep.subr.bf16.mxu0 0
  %87 = vmatpush1.bf16.msra.mxu0 0
  %88 = vmatprep.subr.bf16.mxu0 0
  %89 = vmatpush1.bf16.msra.mxu0 0
  %90 = vmatprep.subr.bf16.mxu0 0
  %91 = vmatpush1.bf16.msra.mxu0 0
  %92 = vmatprep.subr.bf16.mxu0 0
  %93 = vmatpush1.bf16.msra.mxu0 0
  %94 = vmatprep.subr.bf16.mxu0 0
  %95 = vmatpush1.bf16.msra.mxu0 0
  %96 = vmatprep.subr.bf16.mxu0 0
  %97 = vmatpush1.bf16.msra.mxu0 %v74
  %98 = vmatprep.subr.bf16.mxu0 0
  %99 = vmatpush1.bf16.msra.mxu0 %v73
  %100 = vmatprep.subr.bf16.mxu0 0
  %101 = vmatpush2.bf16.msra.mxu0 0
  %102 = vmatprep.subr.bf16.mxu0 0
  %103 = vmatpush2.bf16.msra.mxu0 0
  %104 = vmatprep.subr.bf16.mxu0 0
  %105 = vmatpush2.bf16.msra.mxu0 0
  %106 = vmatprep.subr.bf16.mxu0 0
  %107 = vmatpush2.bf16.msra.mxu0 0
  %108 = vmatprep.subr.bf16.mxu0 0
  %109 = vmatpush2.bf16.msra.mxu0 0
  %110 = vmatprep.subr.bf16.mxu0 0
  %111 = vmatpush2.bf16.msra.mxu0 0
  %112 = vmatprep.subr.bf16.mxu0 0
  %113 = vmatpush2.bf16.msra.mxu0 0
  %114 = vmatprep.subr.bf16.mxu0 0
  %115 = vmatpush2.bf16.msra.mxu0 0
  %116 = vmatprep.mubr.bf16.mxu0 0
  %117 = vmatmul.mubr.bf16.gmra.mxu0 %v79
  %v118 = vpop.f32.mrf.mxu0
  %v119 = vadd.f32 %v63, %v118
  %v120 = vpop.f32.mrf.mxu0
  %v121 = vpop.f32.mrf.mxu0
  %v122 = vadd.f32 %v63, %v121
  %v123 = vpop.f32.mrf.mxu0
  %124 = vmatprep.mubr.bf16.mxu0 0
  %125 = vmatmul.mubr.bf16.gmra.mxu0 %v82
  %v126 = vpop.f32.mrf.mxu0
  %v127 = vadd.f32 %v63, %v126
  %v128 = vpop.f32.mrf.mxu0
  %v129 = vpop.f32.mrf.mxu0
  %v130 = vadd.f32 %v63, %v129
  %v131 = vpop.f32.mrf.mxu0
  %132 = vdwg.mxu0
  %v133 = vld [vmem:[%s3] sm:$0xf]
  %v134 = vld [vmem:[%s3 + $0x4] sm:$0xf]
  %v135 = vld [vmem:[%s3 + $0x8] sm:$0xf]
  %v136 = vld [vmem:[%s3 + $0xc] sm:$0xf]
  %v141 = vunpack.c.l.b16 %v133
  %v142 = vunpack.c.l.b16 %v134
  %v143 = vunpack.c.l.b16 %v135
  %v144 = vunpack.c.l.b16 %v136
  %v145 = vpack.c.b16 %v142, %v141
  %v146 = vpack.c.b16 %v144, %v143
  %v150 = vsel %vm77, 0, 0
  %152 = vmatprep.subr.bf16.mxu0 0
  %153 = vmatpush1.bf16.msra.mxu0 0
  %154 = vmatprep.subr.bf16.mxu0 0
  %155 = vmatpush1.bf16.msra.mxu0 0
  %156 = vmatprep.subr.bf16.mxu0 0
  %157 = vmatpush1.bf16.msra.mxu0 0
  %158 = vmatprep.subr.bf16.mxu0 0
  %159 = vmatpush1.bf16.msra.mxu0 0
  %160 = vmatprep.subr.bf16.mxu0 0
  %161 = vmatpush1.bf16.msra.mxu0 0
  %162 = vmatprep.subr.bf16.mxu0 0
  %163 = vmatpush1.bf16.msra.mxu0 0
  %164 = vmatprep.subr.bf16.mxu0 0
  %165 = vmatpush1.bf16.msra.mxu0 %v146
  %166 = vmatprep.subr.bf16.mxu0 0
  %167 = vmatpush1.bf16.msra.mxu0 %v145
  %168 = vmatprep.subr.bf16.mxu0 0
  %169 = vmatpush2.bf16.msra.mxu0 0
  %170 = vmatprep.subr.bf16.mxu0 0
  %171 = vmatpush2.bf16.msra.mxu0 0
  %172 = vmatprep.subr.bf16.mxu0 0
  %173 = vmatpush2.bf16.msra.mxu0 0
  %174 = vmatprep.subr.bf16.mxu0 0
  %175 = vmatpush2.bf16.msra.mxu0 0
  %176 = vmatprep.subr.bf16.mxu0 0
  %177 = vmatpush2.bf16.msra.mxu0 0
  %178 = vmatprep.subr.bf16.mxu0 0
  %179 = vmatpush2.bf16.msra.mxu0 0
  %180 = vmatprep.subr.bf16.mxu0 0
  %181 = vmatpush2.bf16.msra.mxu0 0
  %182 = vmatprep.subr.bf16.mxu0 0
  %183 = vmatpush2.bf16.msra.mxu0 0
  %184 = vmatprep.mubr.bf16.mxu0 0
  %185 = vmatmul.mubr.bf16.gmra.mxu0 %v150
  %v186 = vpop.f32.mrf.mxu0
  %v187 = vadd.f32 0.0, %v186
  %v188 = vpop.f32.mrf.mxu0
  %v189 = vpop.f32.mrf.mxu0
  %v190 = vpop.f32.mrf.mxu0
  %191 = vdwg.mxu0
  %v193 = vrot.slane %v187, 1
  %v194 = vrot.slane %v187, 2
  %v195 = vrot.slane %v187, 3
  %v200 = vadd.f32 %v119, %v187
  %v201 = vadd.f32 %v122, %v193
  %v202 = vadd.f32 %v127, %v194
  %v203 = vadd.f32 %v130, %v195
  %v204 = vxor.u32 %v200, 2147483648
  %v205 = vxor.u32 %v201, 2147483648
  %v206 = vxor.u32 %v202, 2147483648
  %v207 = vxor.u32 %v203, 2147483648
  %v208 = vmul.f32 %v204, 1.442695
  %v209 = vpow.pop %v208
  %v210 = vmul.f32 %v205, 1.442695
  %v211 = vpow.pop %v210
  %v212 = vmul.f32 %v206, 1.442695
  %v213 = vpow.pop %v212
  %v214 = vmul.f32 %v207, 1.442695
  %v215 = vpow.pop %v214
  %v216 = vadd.f32 %v209, 1.0
  %v217 = vadd.f32 %v211, 1.0
  %v218 = vadd.f32 %v213, 1.0
  %v219 = vadd.f32 %v215, 1.0
  %v220 = vrcp.pop %v216
  %v221 = vmul.f32 1.0, %v220
  %v222 = vrcp.pop %v217
  %v223 = vmul.f32 1.0, %v222
  %v224 = vrcp.pop %v218
  %v225 = vmul.f32 1.0, %v224
  %v226 = vrcp.pop %v219
  %v227 = vmul.f32 1.0, %v226
  %v228 = vtanh.pop %v200
  %v229 = vtanh.pop %v201
  %v230 = vtanh.pop %v202
  %v231 = vtanh.pop %v203
  %v232 = vmul.f32 %v221, 0.0
  %v233 = vmul.f32 %v223, 0.0
  %v234 = vmul.f32 %v225, 0.0
  %v235 = vmul.f32 %v227, 0.0
  %240 = vrot.lane.b32.xlu0 %v228, 64
  %v241 = vpop.permute.xlu0 %240
  %242 = vrot.lane.b32.xlu0 %v229, 64
  %v243 = vpop.permute.xlu0 %242
  %244 = vrot.lane.b32.xlu0 %v230, 64
  %v245 = vpop.permute.xlu0 %244
  %246 = vrot.lane.b32.xlu0 %v231, 64
  %v247 = vpop.permute.xlu0 %246
  %v252 = vmul.f32 %v221, %v241
  %v253 = vmul.f32 %v223, %v243
  %v254 = vmul.f32 %v225, %v245
  %v255 = vmul.f32 %v227, %v247
  %260 = vrot.lane.b32.xlu0 %v252, 32
  %v261 = vpop.permute.xlu0 %260
  %262 = vrot.lane.b32.xlu0 %v253, 32
  %v263 = vpop.permute.xlu0 %262
  %264 = vrot.lane.b32.xlu0 %v254, 32
  %v265 = vpop.permute.xlu0 %264
  %266 = vrot.lane.b32.xlu0 %v255, 32
  %v267 = vpop.permute.xlu0 %266
  %v272 = vadd.f32 %v232, %v261
  %v273 = vadd.f32 %v233, %v263
  %v274 = vadd.f32 %v234, %v265
  %v275 = vadd.f32 %v235, %v267
  %v276 = vtanh.pop %v272
  %v277 = vtanh.pop %v273
  %v278 = vtanh.pop %v274
  %v279 = vtanh.pop %v275
  %284 = vrot.lane.b32.xlu0 %v276, 64
  %v285 = vpop.permute.xlu0 %284
  %286 = vrot.lane.b32.xlu0 %v277, 64
  %v287 = vpop.permute.xlu0 %286
  %288 = vrot.lane.b32.xlu0 %v278, 64
  %v289 = vpop.permute.xlu0 %288
  %290 = vrot.lane.b32.xlu0 %v279, 64
  %v291 = vpop.permute.xlu0 %290
  %v296 = vmul.f32 %v221, %v285
  %v297 = vmul.f32 %v223, %v287
  %v298 = vmul.f32 %v225, %v289
  %v299 = vmul.f32 %v227, %v291
  %304 = vrot.lane.b32.xlu0 %v296, 32
  %v305 = vpop.permute.xlu0 %304
  %306 = vrot.lane.b32.xlu0 %v297, 32
  %v307 = vpop.permute.xlu0 %306
  %308 = vrot.lane.b32.xlu0 %v298, 32
  %v309 = vpop.permute.xlu0 %308
  %310 = vrot.lane.b32.xlu0 %v299, 32
  %v311 = vpop.permute.xlu0 %310
  %vm316 = vcmask 253952
  %317 = vst.msk [vmem:[#allocation2] sm:$0x1] %vm316, %v305
  %318 = vst.msk [vmem:[#allocation2 + $0x8] sm:$0x1] %vm316, %v307
  %319 = vst.msk [vmem:[#allocation2 + $0x10] sm:$0x1] %vm316, %v309
  %320 = vst.msk [vmem:[#allocation2 + $0x18] sm:$0x1] %vm316, %v311
  %v321 = vpack.c.bf16 %v296, %v296
  %v322 = vpack.c.bf16 %v297, %v297
  %v323 = vpack.c.bf16 %v298, %v298
  %v324 = vpack.c.bf16 %v299, %v299
  %v325 = vld [vmem:[%s3] sm:$0xf]
  %v326 = vld [vmem:[%s3 + $0x4] sm:$0xf]
  %v327 = vld [vmem:[%s3 + $0x8] sm:$0xf]
  %v328 = vld [vmem:[%s3 + $0xc] sm:$0xf]
  %v333 = vunpack.c.l.b16 %v321
  %v334 = vunpack.c.l.b16 %v322
  %v335 = vunpack.c.l.b16 %v323
  %v336 = vunpack.c.l.b16 %v324
  %v337 = vrot.slane %v334, 7
  %vm338 = vcmask 1041409
  %v339 = vsel %vm338, %v337, %v333
  %v340 = vrot.slane %v335, 6
  %vm341 = vcmask 1042434
  %v342 = vsel %vm341, %v340, %v339
  %v343 = vrot.slane %v336, 5
  %vm344 = vcmask 1043459
  %v345 = vsel %vm344, %v343, %v342
  %v346 = vpack.c.b16 %v345, %v345
  %347 = vrot.lane.b32.xlu0 %v346, 32
  %v348 = vpop.permute.xlu0 %347
  %v353 = vunpack.c.l.b16 %v325
  %v354 = vunpack.c.l.b16 %v326
  %v355 = vunpack.c.l.b16 %v327
  %v356 = vunpack.c.l.b16 %v328
  %v357 = vpack.c.b16 %v354, %v353
  %v358 = vpack.c.b16 %v356, %v355
  %v362 = vsel %vm77, %v348, 0
  %364 = vmatprep.subr.bf16.mxu0 0
  %365 = vmatpush1.bf16.msra.mxu0 0
  %366 = vmatprep.subr.bf16.mxu0 0
  %367 = vmatpush1.bf16.msra.mxu0 0
  %368 = vmatprep.subr.bf16.mxu0 0
  %369 = vmatpush1.bf16.msra.mxu0 0
  %370 = vmatprep.subr.bf16.mxu0 0
  %371 = vmatpush1.bf16.msra.mxu0 0
  %372 = vmatprep.subr.bf16.mxu0 0
  %373 = vmatpush1.bf16.msra.mxu0 0
  %374 = vmatprep.subr.bf16.mxu0 0
  %375 = vmatpush1.bf16.msra.mxu0 0
  %376 = vmatprep.subr.bf16.mxu0 0
  %377 = vmatpush1.bf16.msra.mxu0 %v358
  %378 = vmatprep.subr.bf16.mxu0 0
  %379 = vmatpush1.bf16.msra.mxu0 %v357
  %380 = vmatprep.subr.bf16.mxu0 0
  %381 = vmatpush2.bf16.msra.mxu0 0
  %382 = vmatprep.subr.bf16.mxu0 0
  %383 = vmatpush2.bf16.msra.mxu0 0
  %384 = vmatprep.subr.bf16.mxu0 0
  %385 = vmatpush2.bf16.msra.mxu0 0
  %386 = vmatprep.subr.bf16.mxu0 0
  %387 = vmatpush2.bf16.msra.mxu0 0
  %388 = vmatprep.subr.bf16.mxu0 0
  %389 = vmatpush2.bf16.msra.mxu0 0
  %390 = vmatprep.subr.bf16.mxu0 0
  %391 = vmatpush2.bf16.msra.mxu0 0
  %392 = vmatprep.subr.bf16.mxu0 0
  %393 = vmatpush2.bf16.msra.mxu0 0
  %394 = vmatprep.subr.bf16.mxu0 0
  %395 = vmatpush2.bf16.msra.mxu0 0
  %396 = vmatprep.mubr.bf16.mxu0 0
  %397 = vmatmul.mubr.bf16.gmra.mxu0 %v362
  %v398 = vpop.f32.mrf.mxu0
  %v399 = vadd.f32 0.0, %v398
  %v400 = vpop.f32.mrf.mxu0
  %v401 = vpop.f32.mrf.mxu0
  %v402 = vpop.f32.mrf.mxu0
  %403 = vdwg.mxu0
  %v405 = vrot.slane %v399, 7
  %v406 = vrot.slane %v399, 1
  %v407 = vrot.slane %v399, 2
  %v412 = vadd.f32 %v119, %v405
  %v413 = vadd.f32 %v122, %v399
  %v414 = vadd.f32 %v127, %v406
  %v415 = vadd.f32 %v130, %v407
  %v416 = vxor.u32 %v412, 2147483648
  %v417 = vxor.u32 %v413, 2147483648
  %v418 = vxor.u32 %v414, 2147483648
  %v419 = vxor.u32 %v415, 2147483648
  %v420 = vmul.f32 %v416, 1.442695
  %v421 = vpow.pop %v420
  %v422 = vmul.f32 %v417, 1.442695
  %v423 = vpow.pop %v422
  %v424 = vmul.f32 %v418, 1.442695
  %v425 = vpow.pop %v424
  %v426 = vmul.f32 %v419, 1.442695
  %v427 = vpow.pop %v426
  %v428 = vadd.f32 %v421, 1.0
  %v429 = vadd.f32 %v423, 1.0
  %v430 = vadd.f32 %v425, 1.0
  %v431 = vadd.f32 %v427, 1.0
  %v432 = vrcp.pop %v428
  %v433 = vmul.f32 1.0, %v432
  %v434 = vrcp.pop %v429
  %v435 = vmul.f32 1.0, %v434
  %v436 = vrcp.pop %v430
  %v437 = vmul.f32 1.0, %v436
  %v438 = vrcp.pop %v431
  %v439 = vmul.f32 1.0, %v438
  %v440 = vtanh.pop %v412
  %v441 = vtanh.pop %v413
  %v442 = vtanh.pop %v414
  %v443 = vtanh.pop %v415
  %v448 = vrot.slane %v272, 7
  %v449 = vrot.slane %v273, 7
  %v450 = vrot.slane %v274, 7
  %v451 = vrot.slane %v275, 7
  %v456 = vmul.f32 %v433, %v448
  %v457 = vmul.f32 %v435, %v449
  %v458 = vmul.f32 %v437, %v450
  %v459 = vmul.f32 %v439, %v451
  %464 = vrot.lane.b32.xlu0 %v440, 64
  %v465 = vpop.permute.xlu0 %464
  %466 = vrot.lane.b32.xlu0 %v441, 64
  %v467 = vpop.permute.xlu0 %466
  %468 = vrot.lane.b32.xlu0 %v442, 64
  %v469 = vpop.permute.xlu0 %468
  %470 = vrot.lane.b32.xlu0 %v443, 64
  %v471 = vpop.permute.xlu0 %470
  %v476 = vmul.f32 %v433, %v465
  %v477 = vmul.f32 %v435, %v467
  %v478 = vmul.f32 %v437, %v469
  %v479 = vmul.f32 %v439, %v471
  %484 = vrot.lane.b32.xlu0 %v476, 32
  %v485 = vpop.permute.xlu0 %484
  %486 = vrot.lane.b32.xlu0 %v477, 32
  %v487 = vpop.permute.xlu0 %486
  %488 = vrot.lane.b32.xlu0 %v478, 32
  %v489 = vpop.permute.xlu0 %488
  %490 = vrot.lane.b32.xlu0 %v479, 32
  %v491 = vpop.permute.xlu0 %490
  %v496 = vadd.f32 %v456, %v485
  %v497 = vadd.f32 %v457, %v487
  %v498 = vadd.f32 %v458, %v489
  %v499 = vadd.f32 %v459, %v491
  %v500 = vtanh.pop %v496
  %v501 = vtanh.pop %v497
  %v502 = vtanh.pop %v498
  %v503 = vtanh.pop %v499
  %508 = vrot.lane.b32.xlu0 %v500, 64
  %v509 = vpop.permute.xlu0 %508
  %510 = vrot.lane.b32.xlu0 %v501, 64
  %v511 = vpop.permute.xlu0 %510
  %512 = vrot.lane.b32.xlu0 %v502, 64
  %v513 = vpop.permute.xlu0 %512
  %514 = vrot.lane.b32.xlu0 %v503, 64
  %v515 = vpop.permute.xlu0 %514
  %v520 = vmul.f32 %v433, %v509
  %v521 = vmul.f32 %v435, %v511
  %v522 = vmul.f32 %v437, %v513
  %v523 = vmul.f32 %v439, %v515
  %528 = vrot.lane.b32.xlu0 %v520, 32
  %v529 = vpop.permute.xlu0 %528
  %530 = vrot.lane.b32.xlu0 %v521, 32
  %v531 = vpop.permute.xlu0 %530
  %532 = vrot.lane.b32.xlu0 %v522, 32
  %v533 = vpop.permute.xlu0 %532
  %534 = vrot.lane.b32.xlu0 %v523, 32
  %v535 = vpop.permute.xlu0 %534
  %vm540 = vcmask 254977
  %541 = vst.msk [vmem:[#allocation2] sm:$0x2] %vm540, %v529
  %542 = vst.msk [vmem:[#allocation2 + $0x8] sm:$0x2] %vm540, %v531
  %543 = vst.msk [vmem:[#allocation2 + $0x10] sm:$0x2] %vm540, %v533
  %544 = vst.msk [vmem:[#allocation2 + $0x18] sm:$0x2] %vm540, %v535
  %v545 = vpack.c.bf16 %v520, %v520
  %v546 = vpack.c.bf16 %v521, %v521
  %v547 = vpack.c.bf16 %v522, %v522
  %v548 = vpack.c.bf16 %v523, %v523
  %v549 = vld [vmem:[%s3] sm:$0xf]
  %v550 = vld [vmem:[%s3 + $0x4] sm:$0xf]
  %v551 = vld [vmem:[%s3 + $0x8] sm:$0xf]
  %v552 = vld [vmem:[%s3 + $0xc] sm:$0xf]
  %v557 = vunpack.c.l.b16 %v545
  %v558 = vunpack.c.l.b16 %v546
  %v559 = vunpack.c.l.b16 %v547
  %v560 = vunpack.c.l.b16 %v548
  %v561 = vrot.slane %v557, 1
  %v562 = vsel %vm338, %v558, %v561
  %v563 = vrot.slane %v559, 7
  %v564 = vsel %vm341, %v563, %v562
  %v565 = vrot.slane %v560, 6
  %v566 = vsel %vm344, %v565, %v564
  %v567 = vpack.c.b16 %v566, %v566
  %568 = vrot.lane.b32.xlu0 %v567, 32
  %v569 = vpop.permute.xlu0 %568
  %v574 = vunpack.c.l.b16 %v549
  %v575 = vunpack.c.l.b16 %v550
  %v576 = vunpack.c.l.b16 %v551
  %v577 = vunpack.c.l.b16 %v552
  %v578 = vpack.c.b16 %v575, %v574
  %v579 = vpack.c.b16 %v577, %v576
  %v583 = vsel %vm77, %v569, 0
  %585 = vmatprep.subr.bf16.mxu0 0
  %586 = vmatpush1.bf16.msra.mxu0 0
  %587 = vmatprep.subr.bf16.mxu0 0
  %588 = vmatpush1.bf16.msra.mxu0 0
  %589 = vmatprep.subr.bf16.mxu0 0
  %590 = vmatpush1.bf16.msra.mxu0 0
  %591 = vmatprep.subr.bf16.mxu0 0
  %592 = vmatpush1.bf16.msra.mxu0 0
  %593 = vmatprep.subr.bf16.mxu0 0
  %594 = vmatpush1.bf16.msra.mxu0 0
  %595 = vmatprep.subr.bf16.mxu0 0
  %596 = vmatpush1.bf16.msra.mxu0 0
  %597 = vmatprep.subr.bf16.mxu0 0
  %598 = vmatpush1.bf16.msra.mxu0 %v579
  %599 = vmatprep.subr.bf16.mxu0 0
  %600 = vmatpush1.bf16.msra.mxu0 %v578
  %601 = vmatprep.subr.bf16.mxu0 0
  %602 = vmatpush2.bf16.msra.mxu0 0
  %603 = vmatprep.subr.bf16.mxu0 0
  %604 = vmatpush2.bf16.msra.mxu0 0
  %605 = vmatprep.subr.bf16.mxu0 0
  %606 = vmatpush2.bf16.msra.mxu0 0
  %607 = vmatprep.subr.bf16.mxu0 0
  %608 = vmatpush2.bf16.msra.mxu0 0
  %609 = vmatprep.subr.bf16.mxu0 0
  %610 = vmatpush2.bf16.msra.mxu0 0
  %611 = vmatprep.subr.bf16.mxu0 0
  %612 = vmatpush2.bf16.msra.mxu0 0
  %613 = vmatprep.subr.bf16.mxu0 0
  %614 = vmatpush2.bf16.msra.mxu0 0
  %615 = vmatprep.subr.bf16.mxu0 0
  %616 = vmatpush2.bf16.msra.mxu0 0
  %617 = vmatprep.mubr.bf16.mxu0 0
  %618 = vmatmul.mubr.bf16.gmra.mxu0 %v583
  %v619 = vpop.f32.mrf.mxu0
  %v620 = vadd.f32 0.0, %v619
  %v621 = vpop.f32.mrf.mxu0
  %v622 = vpop.f32.mrf.mxu0
  %v623 = vpop.f32.mrf.mxu0
  %624 = vdwg.mxu0
  %v626 = vrot.slane %v620, 6
  %v627 = vrot.slane %v620, 7
  %v628 = vrot.slane %v620, 1
  %v633 = vadd.f32 %v119, %v626
  %v634 = vadd.f32 %v122, %v627
  %v635 = vadd.f32 %v127, %v620
  %v636 = vadd.f32 %v130, %v628
  %v637 = vxor.u32 %v633, 2147483648
  %v638 = vxor.u32 %v634, 2147483648
  %v639 = vxor.u32 %v635, 2147483648
  %v640 = vxor.u32 %v636, 2147483648
  %v641 = vmul.f32 %v637, 1.442695
  %v642 = vpow.pop %v641
  %v643 = vmul.f32 %v638, 1.442695
  %v644 = vpow.pop %v643
  %v645 = vmul.f32 %v639, 1.442695
  %v646 = vpow.pop %v645
  %v647 = vmul.f32 %v640, 1.442695
  %v648 = vpow.pop %v647
  %v649 = vadd.f32 %v642, 1.0
  %v650 = vadd.f32 %v644, 1.0
  %v651 = vadd.f32 %v646, 1.0
  %v652 = vadd.f32 %v648, 1.0
  %v653 = vrcp.pop %v649
  %v654 = vmul.f32 1.0, %v653
  %v655 = vrcp.pop %v650
  %v656 = vmul.f32 1.0, %v655
  %v657 = vrcp.pop %v651
  %v658 = vmul.f32 1.0, %v657
  %v659 = vrcp.pop %v652
  %v660 = vmul.f32 1.0, %v659
  %v661 = vtanh.pop %v633
  %v662 = vtanh.pop %v634
  %v663 = vtanh.pop %v635
  %v664 = vtanh.pop %v636
  %v669 = vrot.slane %v496, 7
  %v670 = vrot.slane %v497, 7
  %v671 = vrot.slane %v498, 7
  %v672 = vrot.slane %v499, 7
  %v677 = vmul.f32 %v654, %v669
  %v678 = vmul.f32 %v656, %v670
  %v679 = vmul.f32 %v658, %v671
  %v680 = vmul.f32 %v660, %v672
  %685 = vrot.lane.b32.xlu0 %v661, 64
  %v686 = vpop.permute.xlu0 %685
  %687 = vrot.lane.b32.xlu0 %v662, 64
  %v688 = vpop.permute.xlu0 %687
  %689 = vrot.lane.b32.xlu0 %v663, 64
  %v690 = vpop.permute.xlu0 %689
  %691 = vrot.lane.b32.xlu0 %v664, 64
  %v692 = vpop.permute.xlu0 %691
  %v697 = vmul.f32 %v654, %v686
  %v698 = vmul.f32 %v656, %v688
  %v699 = vmul.f32 %v658, %v690
  %v700 = vmul.f32 %v660, %v692
  %705 = vrot.lane.b32.xlu0 %v697, 32
  %v706 = vpop.permute.xlu0 %705
  %707 = vrot.lane.b32.xlu0 %v698, 32
  %v708 = vpop.permute.xlu0 %707
  %709 = vrot.lane.b32.xlu0 %v699, 32
  %v710 = vpop.permute.xlu0 %709
  %711 = vrot.lane.b32.xlu0 %v700, 32
  %v712 = vpop.permute.xlu0 %711
  %v717 = vadd.f32 %v677, %v706
  %v718 = vadd.f32 %v678, %v708
  %v719 = vadd.f32 %v679, %v710
  %v720 = vadd.f32 %v680, %v712
  %v721 = vtanh.pop %v717
  %v722 = vtanh.pop %v718
  %v723 = vtanh.pop %v719
  %v724 = vtanh.pop %v720
  %729 = vrot.lane.b32.xlu0 %v721, 64
  %v730 = vpop.permute.xlu0 %729
  %731 = vrot.lane.b32.xlu0 %v722, 64
  %v732 = vpop.permute.xlu0 %731
  %733 = vrot.lane.b32.xlu0 %v723, 64
  %v734 = vpop.permute.xlu0 %733
  %735 = vrot.lane.b32.xlu0 %v724, 64
  %v736 = vpop.permute.xlu0 %735
  %v741 = vmul.f32 %v654, %v730
  %v742 = vmul.f32 %v656, %v732
  %v743 = vmul.f32 %v658, %v734
  %v744 = vmul.f32 %v660, %v736
  %749 = vrot.lane.b32.xlu0 %v741, 32
  %v750 = vpop.permute.xlu0 %749
  %751 = vrot.lane.b32.xlu0 %v742, 32
  %v752 = vpop.permute.xlu0 %751
  %753 = vrot.lane.b32.xlu0 %v743, 32
  %v754 = vpop.permute.xlu0 %753
  %755 = vrot.lane.b32.xlu0 %v744, 32
  %v756 = vpop.permute.xlu0 %755
  %vm761 = vcmask 256002
  %762 = vst.msk [vmem:[#allocation2] sm:$0x4] %vm761, %v750
  %763 = vst.msk [vmem:[#allocation2 + $0x8] sm:$0x4] %vm761, %v752
  %764 = vst.msk [vmem:[#allocation2 + $0x10] sm:$0x4] %vm761, %v754
  %765 = vst.msk [vmem:[#allocation2 + $0x18] sm:$0x4] %vm761, %v756
  %v766 = vpack.c.bf16 %v741, %v741
  %v767 = vpack.c.bf16 %v742, %v742
  %v768 = vpack.c.bf16 %v743, %v743
  %v769 = vpack.c.bf16 %v744, %v744
  %v770 = vld [vmem:[%s3] sm:$0xf]
  %v771 = vld [vmem:[%s3 + $0x4] sm:$0xf]
  %v772 = vld [vmem:[%s3 + $0x8] sm:$0xf]
  %v773 = vld [vmem:[%s3 + $0xc] sm:$0xf]
  %v778 = vunpack.c.l.b16 %v766
  %v779 = vunpack.c.l.b16 %v767
  %v780 = vunpack.c.l.b16 %v768
  %v781 = vunpack.c.l.b16 %v769
  %v782 = vrot.slane %v778, 2
  %v783 = vrot.slane %v779, 1
  %v784 = vsel %vm338, %v783, %v782
  %v785 = vsel %vm341, %v780, %v784
  %v786 = vrot.slane %v781, 7
  %v787 = vsel %vm344, %v786, %v785
  %v788 = vpack.c.b16 %v787, %v787
  %789 = vrot.lane.b32.xlu0 %v788, 32
  %v790 = vpop.permute.xlu0 %789
  %v795 = vunpack.c.l.b16 %v770
  %v796 = vunpack.c.l.b16 %v771
  %v797 = vunpack.c.l.b16 %v772
  %v798 = vunpack.c.l.b16 %v773
  %v799 = vpack.c.b16 %v796, %v795
  %v800 = vpack.c.b16 %v798, %v797
  %v804 = vsel %vm77, %v790, 0
  %806 = vmatprep.subr.bf16.mxu0 0
  %807 = vmatpush1.bf16.msra.mxu0 0
  %808 = vmatprep.subr.bf16.mxu0 0
  %809 = vmatpush1.bf16.msra.mxu0 0
  %810 = vmatprep.subr.bf16.mxu0 0
  %811 = vmatpush1.bf16.msra.mxu0 0
  %812 = vmatprep.subr.bf16.mxu0 0
  %813 = vmatpush1.bf16.msra.mxu0 0
  %814 = vmatprep.subr.bf16.mxu0 0
  %815 = vmatpush1.bf16.msra.mxu0 0
  %816 = vmatprep.subr.bf16.mxu0 0
  %817 = vmatpush1.bf16.msra.mxu0 0
  %818 = vmatprep.subr.bf16.mxu0 0
  %819 = vmatpush1.bf16.msra.mxu0 %v800
  %820 = vmatprep.subr.bf16.mxu0 0
  %821 = vmatpush1.bf16.msra.mxu0 %v799
  %822 = vmatprep.subr.bf16.mxu0 0
  %823 = vmatpush2.bf16.msra.mxu0 0
  %824 = vmatprep.subr.bf16.mxu0 0
  %825 = vmatpush2.bf16.msra.mxu0 0
  %826 = vmatprep.subr.bf16.mxu0 0
  %827 = vmatpush2.bf16.msra.mxu0 0
  %828 = vmatprep.subr.bf16.mxu0 0
  %829 = vmatpush2.bf16.msra.mxu0 0
  %830 = vmatprep.subr.bf16.mxu0 0
  %831 = vmatpush2.bf16.msra.mxu0 0
  %832 = vmatprep.subr.bf16.mxu0 0
  %833 = vmatpush2.bf16.msra.mxu0 0
  %834 = vmatprep.subr.bf16.mxu0 0
  %835 = vmatpush2.bf16.msra.mxu0 0
  %836 = vmatprep.subr.bf16.mxu0 0
  %837 = vmatpush2.bf16.msra.mxu0 0
  %838 = vmatprep.mubr.bf16.mxu0 0
  %839 = vmatmul.mubr.bf16.gmra.mxu0 %v804
  %v840 = vpop.f32.mrf.mxu0
  %v841 = vadd.f32 0.0, %v840
  %v842 = vpop.f32.mrf.mxu0
  %v843 = vpop.f32.mrf.mxu0
  %v844 = vpop.f32.mrf.mxu0
  %845 = vdwg.mxu0
  %v847 = vrot.slane %v841, 5
  %v848 = vrot.slane %v841, 6
  %v849 = vrot.slane %v841, 7
  %v854 = vadd.f32 %v119, %v847
  %v855 = vadd.f32 %v122, %v848
  %v856 = vadd.f32 %v127, %v849
  %v857 = vadd.f32 %v130, %v841
  %v858 = vxor.u32 %v854, 2147483648
  %v859 = vxor.u32 %v855, 2147483648
  %v860 = vxor.u32 %v856, 2147483648
  %v861 = vxor.u32 %v857, 2147483648
  %v862 = vmul.f32 %v858, 1.442695
  %v863 = vpow.pop %v862
  %v864 = vmul.f32 %v859, 1.442695
  %v865 = vpow.pop %v864
  %v866 = vmul.f32 %v860, 1.442695
  %v867 = vpow.pop %v866
  %v868 = vmul.f32 %v861, 1.442695
  %v869 = vpow.pop %v868
  %v870 = vadd.f32 %v863, 1.0
  %v871 = vadd.f32 %v865, 1.0
  %v872 = vadd.f32 %v867, 1.0
  %v873 = vadd.f32 %v869, 1.0
  %v874 = vrcp.pop %v870
  %v875 = vmul.f32 1.0, %v874
  %v876 = vrcp.pop %v871
  %v877 = vmul.f32 1.0, %v876
  %v878 = vrcp.pop %v872
  %v879 = vmul.f32 1.0, %v878
  %v880 = vrcp.pop %v873
  %v881 = vmul.f32 1.0, %v880
  %v882 = vtanh.pop %v854
  %v883 = vtanh.pop %v855
  %v884 = vtanh.pop %v856
  %v885 = vtanh.pop %v857
  %v890 = vrot.slane %v717, 7
  %v891 = vrot.slane %v718, 7
  %v892 = vrot.slane %v719, 7
  %v893 = vrot.slane %v720, 7
  %v898 = vmul.f32 %v875, %v890
  %v899 = vmul.f32 %v877, %v891
  %v900 = vmul.f32 %v879, %v892
  %v901 = vmul.f32 %v881, %v893
  %906 = vrot.lane.b32.xlu0 %v882, 64
  %v907 = vpop.permute.xlu0 %906
  %908 = vrot.lane.b32.xlu0 %v883, 64
  %v909 = vpop.permute.xlu0 %908
  %910 = vrot.lane.b32.xlu0 %v884, 64
  %v911 = vpop.permute.xlu0 %910
  %912 = vrot.lane.b32.xlu0 %v885, 64
  %v913 = vpop.permute.xlu0 %912
  %v918 = vmul.f32 %v875, %v907
  %v919 = vmul.f32 %v877, %v909
  %v920 = vmul.f32 %v879, %v911
  %v921 = vmul.f32 %v881, %v913
  %926 = vrot.lane.b32.xlu0 %v918, 32
  %v927 = vpop.permute.xlu0 %926
  %928 = vrot.lane.b32.xlu0 %v919, 32
  %v929 = vpop.permute.xlu0 %928
  %930 = vrot.lane.b32.xlu0 %v920, 32
  %v931 = vpop.permute.xlu0 %930
  %932 = vrot.lane.b32.xlu0 %v921, 32
  %v933 = vpop.permute.xlu0 %932
  %v938 = vadd.f32 %v898, %v927
  %v939 = vadd.f32 %v899, %v929
  %v940 = vadd.f32 %v900, %v931
  %v941 = vadd.f32 %v901, %v933
  %v942 = vtanh.pop %v938
  %v943 = vtanh.pop %v939
  %v944 = vtanh.pop %v940
  %v945 = vtanh.pop %v941
  %950 = vrot.lane.b32.xlu0 %v942, 64
  %v951 = vpop.permute.xlu0 %950
  %952 = vrot.lane.b32.xlu0 %v943, 64
  %v953 = vpop.permute.xlu0 %952
  %954 = vrot.lane.b32.xlu0 %v944, 64
  %v955 = vpop.permute.xlu0 %954
  %956 = vrot.lane.b32.xlu0 %v945, 64
  %v957 = vpop.permute.xlu0 %956
  %v962 = vmul.f32 %v875, %v951
  %v963 = vmul.f32 %v877, %v953
  %v964 = vmul.f32 %v879, %v955
  %v965 = vmul.f32 %v881, %v957
  %970 = vrot.lane.b32.xlu0 %v962, 32
  %v971 = vpop.permute.xlu0 %970
  %972 = vrot.lane.b32.xlu0 %v963, 32
  %v973 = vpop.permute.xlu0 %972
  %974 = vrot.lane.b32.xlu0 %v964, 32
  %v975 = vpop.permute.xlu0 %974
  %976 = vrot.lane.b32.xlu0 %v965, 32
  %v977 = vpop.permute.xlu0 %976
  %vm982 = vcmask 257027
  %983 = vst.msk [vmem:[#allocation2] sm:$0x8] %vm982, %v971
  %984 = vst.msk [vmem:[#allocation2 + $0x8] sm:$0x8] %vm982, %v973
  %985 = vst.msk [vmem:[#allocation2 + $0x10] sm:$0x8] %vm982, %v975
  %986 = vst.msk [vmem:[#allocation2 + $0x18] sm:$0x8] %vm982, %v977
  %v987 = vpack.c.bf16 %v962, %v962
  %v988 = vpack.c.bf16 %v963, %v963
  %v989 = vpack.c.bf16 %v964, %v964
  %v990 = vpack.c.bf16 %v965, %v965
  %v991 = vld [vmem:[%s3] sm:$0xf]
  %v992 = vld [vmem:[%s3 + $0x4] sm:$0xf]
  %v993 = vld [vmem:[%s3 + $0x8] sm:$0xf]
  %v994 = vld [vmem:[%s3 + $0xc] sm:$0xf]
  %v999 = vunpack.c.l.b16 %v987
  %v1000 = vunpack.c.l.b16 %v988
  %v1001 = vunpack.c.l.b16 %v989
  %v1002 = vunpack.c.l.b16 %v990
  %v1003 = vrot.slane %v999, 3
  %v1004 = vrot.slane %v1000, 2
  %v1005 = vsel %vm338, %v1004, %v1003
  %v1006 = vrot.slane %v1001, 1
  %v1007 = vsel %vm341, %v1006, %v1005
  %v1008 = vsel %vm344, %v1002, %v1007
  %v1009 = vpack.c.b16 %v1008, %v1008
  %1010 = vrot.lane.b32.xlu0 %v1009, 32
  %v1011 = vpop.permute.xlu0 %1010
  %v1016 = vunpack.c.l.b16 %v991
  %v1017 = vunpack.c.l.b16 %v992
  %v1018 = vunpack.c.l.b16 %v993
  %v1019 = vunpack.c.l.b16 %v994
  %v1020 = vpack.c.b16 %v1017, %v1016
  %v1021 = vpack.c.b16 %v1019, %v1018
  %v1025 = vsel %vm77, %v1011, 0
  %1027 = vmatprep.subr.bf16.mxu0 0
  %1028 = vmatpush1.bf16.msra.mxu0 0
  %1029 = vmatprep.subr.bf16.mxu0 0
  %1030 = vmatpush1.bf16.msra.mxu0 0
  %1031 = vmatprep.subr.bf16.mxu0 0
  %1032 = vmatpush1.bf16.msra.mxu0 0
  %1033 = vmatprep.subr.bf16.mxu0 0
  %1034 = vmatpush1.bf16.msra.mxu0 0
  %1035 = vmatprep.subr.bf16.mxu0 0
  %1036 = vmatpush1.bf16.msra.mxu0 0
  %1037 = vmatprep.subr.bf16.mxu0 0
  %1038 = vmatpush1.bf16.msra.mxu0 0
  %1039 = vmatprep.subr.bf16.mxu0 0
  %1040 = vmatpush1.bf16.msra.mxu0 %v1021
  %1041 = vmatprep.subr.bf16.mxu0 0
  %1042 = vmatpush1.bf16.msra.mxu0 %v1020
  %1043 = vmatprep.subr.bf16.mxu0 0
  %1044 = vmatpush2.bf16.msra.mxu0 0
  %1045 = vmatprep.subr.bf16.mxu0 0
  %1046 = vmatpush2.bf16.msra.mxu0 0
  %1047 = vmatprep.subr.bf16.mxu0 0
  %1048 = vmatpush2.bf16.msra.mxu0 0
  %1049 = vmatprep.subr.bf16.mxu0 0
  %1050 = vmatpush2.bf16.msra.mxu0 0
  %1051 = vmatprep.subr.bf16.mxu0 0
  %1052 = vmatpush2.bf16.msra.mxu0 0
  %1053 = vmatprep.subr.bf16.mxu0 0
  %1054 = vmatpush2.bf16.msra.mxu0 0
  %1055 = vmatprep.subr.bf16.mxu0 0
  %1056 = vmatpush2.bf16.msra.mxu0 0
  %1057 = vmatprep.subr.bf16.mxu0 0
  %1058 = vmatpush2.bf16.msra.mxu0 0
  %1059 = vmatprep.mubr.bf16.mxu0 0
  %1060 = vmatmul.mubr.bf16.gmra.mxu0 %v1025
  %v1061 = vpop.f32.mrf.mxu0
  %v1062 = vadd.f32 0.0, %v1061
  %v1063 = vpop.f32.mrf.mxu0
  %v1064 = vpop.f32.mrf.mxu0
  %v1065 = vpop.f32.mrf.mxu0
  %1066 = vdwg.mxu0
  %v1068 = vrot.slane %v1062, 4
  %v1069 = vrot.slane %v1062, 5
  %v1070 = vrot.slane %v1062, 6
  %v1071 = vrot.slane %v1062, 7
  %v1076 = vadd.f32 %v119, %v1068
  %v1077 = vadd.f32 %v122, %v1069
  %v1078 = vadd.f32 %v127, %v1070
  %v1079 = vadd.f32 %v130, %v1071
  %v1080 = vxor.u32 %v1076, 2147483648
  %v1081 = vxor.u32 %v1077, 2147483648
  %v1082 = vxor.u32 %v1078, 2147483648
  %v1083 = vxor.u32 %v1079, 2147483648
  %v1084 = vmul.f32 %v1080, 1.442695
  %v1085 = vpow.pop %v1084
  %v1086 = vmul.f32 %v1081, 1.442695
  %v1087 = vpow.pop %v1086
  %v1088 = vmul.f32 %v1082, 1.442695
  %v1089 = vpow.pop %v1088
  %v1090 = vmul.f32 %v1083, 1.442695
  %v1091 = vpow.pop %v1090
  %v1092 = vadd.f32 %v1085, 1.0
  %v1093 = vadd.f32 %v1087, 1.0
  %v1094 = vadd.f32 %v1089, 1.0
  %v1095 = vadd.f32 %v1091, 1.0
  %v1096 = vrcp.pop %v1092
  %v1097 = vmul.f32 1.0, %v1096
  %v1098 = vrcp.pop %v1093
  %v1099 = vmul.f32 1.0, %v1098
  %v1100 = vrcp.pop %v1094
  %v1101 = vmul.f32 1.0, %v1100
  %v1102 = vrcp.pop %v1095
  %v1103 = vmul.f32 1.0, %v1102
  %v1104 = vtanh.pop %v1076
  %v1105 = vtanh.pop %v1077
  %v1106 = vtanh.pop %v1078
  %v1107 = vtanh.pop %v1079
  %v1112 = vrot.slane %v938, 7
  %v1113 = vrot.slane %v939, 7
  %v1114 = vrot.slane %v940, 7
  %v1115 = vrot.slane %v941, 7
  %v1120 = vmul.f32 %v1097, %v1112
  %v1121 = vmul.f32 %v1099, %v1113
  %v1122 = vmul.f32 %v1101, %v1114
  %v1123 = vmul.f32 %v1103, %v1115
  %1128 = vrot.lane.b32.xlu0 %v1104, 64
  %v1129 = vpop.permute.xlu0 %1128
  %1130 = vrot.lane.b32.xlu0 %v1105, 64
  %v1131 = vpop.permute.xlu0 %1130
  %1132 = vrot.lane.b32.xlu0 %v1106, 64
  %v1133 = vpop.permute.xlu0 %1132
  %1134 = vrot.lane.b32.xlu0 %v1107, 64
  %v1135 = vpop.permute.xlu0 %1134
  %v1140 = vmul.f32 %v1097, %v1129
  %v1141 = vmul.f32 %v1099, %v1131
  %v1142 = vmul.f32 %v1101, %v1133
  %v1143 = vmul.f32 %v1103, %v1135
  %1148 = vrot.lane.b32.xlu0 %v1140, 32
  %v1149 = vpop.permute.xlu0 %1148
  %1150 = vrot.lane.b32.xlu0 %v1141, 32
  %v1151 = vpop.permute.xlu0 %1150
  %1152 = vrot.lane.b32.xlu0 %v1142, 32
  %v1153 = vpop.permute.xlu0 %1152
  %1154 = vrot.lane.b32.xlu0 %v1143, 32
  %v1155 = vpop.permute.xlu0 %1154
  %v1160 = vadd.f32 %v1120, %v1149
  %v1161 = vadd.f32 %v1121, %v1151
  %v1162 = vadd.f32 %v1122, %v1153
  %v1163 = vadd.f32 %v1123, %v1155
  %v1164 = vtanh.pop %v1160
  %v1165 = vtanh.pop %v1161
  %v1166 = vtanh.pop %v1162
  %v1167 = vtanh.pop %v1163
  %1172 = vrot.lane.b32.xlu0 %v1164, 64
  %v1173 = vpop.permute.xlu0 %1172
  %1174 = vrot.lane.b32.xlu0 %v1165, 64
  %v1175 = vpop.permute.xlu0 %1174
  %1176 = vrot.lane.b32.xlu0 %v1166, 64
  %v1177 = vpop.permute.xlu0 %1176
  %1178 = vrot.lane.b32.xlu0 %v1167, 64
  %v1179 = vpop.permute.xlu0 %1178
  %v1184 = vmul.f32 %v1097, %v1173
  %v1185 = vmul.f32 %v1099, %v1175
  %v1186 = vmul.f32 %v1101, %v1177
  %v1187 = vmul.f32 %v1103, %v1179
  %1192 = vrot.lane.b32.xlu0 %v1184, 32
  %v1193 = vpop.permute.xlu0 %1192
  %1194 = vrot.lane.b32.xlu0 %v1185, 32
  %v1195 = vpop.permute.xlu0 %1194
  %1196 = vrot.lane.b32.xlu0 %v1186, 32
  %v1197 = vpop.permute.xlu0 %1196
  %1198 = vrot.lane.b32.xlu0 %v1187, 32
  %v1199 = vpop.permute.xlu0 %1198
  %vm1204 = vcmask 258052
  %1205 = vst.msk [vmem:[#allocation2] sm:$0x10] %vm1204, %v1193
  %1206 = vst.msk [vmem:[#allocation2 + $0x8] sm:$0x10] %vm1204, %v1195
  %1207 = vst.msk [vmem:[#allocation2 + $0x10] sm:$0x10] %vm1204, %v1197
  %1208 = vst.msk [vmem:[#allocation2 + $0x18] sm:$0x10] %vm1204, %v1199
  %v1209 = vpack.c.bf16 %v1184, %v1184
  %v1210 = vpack.c.bf16 %v1185, %v1185
  %v1211 = vpack.c.bf16 %v1186, %v1186
  %v1212 = vpack.c.bf16 %v1187, %v1187
  %v1213 = vld [vmem:[%s3] sm:$0xf]
  %v1214 = vld [vmem:[%s3 + $0x4] sm:$0xf]
  %v1215 = vld [vmem:[%s3 + $0x8] sm:$0xf]
  %v1216 = vld [vmem:[%s3 + $0xc] sm:$0xf]
  %v1221 = vunpack.c.l.b16 %v1209
  %v1222 = vunpack.c.l.b16 %v1210
  %v1223 = vunpack.c.l.b16 %v1211
  %v1224 = vunpack.c.l.b16 %v1212
  %v1225 = vrot.slane %v1221, 4
  %v1226 = vrot.slane %v1222, 3
  %v1227 = vsel %vm338, %v1226, %v1225
  %v1228 = vrot.slane %v1223, 2
  %v1229 = vsel %vm341, %v1228, %v1227
  %v1230 = vrot.slane %v1224, 1
  %v1231 = vsel %vm344, %v1230, %v1229
  %v1232 = vpack.c.b16 %v1231, %v1231
  %1233 = vrot.lane.b32.xlu0 %v1232, 32
  %v1234 = vpop.permute.xlu0 %1233
  %v1239 = vunpack.c.l.b16 %v1213
  %v1240 = vunpack.c.l.b16 %v1214
  %v1241 = vunpack.c.l.b16 %v1215
  %v1242 = vunpack.c.l.b16 %v1216
  %v1243 = vpack.c.b16 %v1240, %v1239
  %v1244 = vpack.c.b16 %v1242, %v1241
  %v1248 = vsel %vm77, %v1234, 0
  %1250 = vmatprep.subr.bf16.mxu0 0
  %1251 = vmatpush1.bf16.msra.mxu0 0
  %1252 = vmatprep.subr.bf16.mxu0 0
  %1253 = vmatpush1.bf16.msra.mxu0 0
  %1254 = vmatprep.subr.bf16.mxu0 0
  %1255 = vmatpush1.bf16.msra.mxu0 0
  %1256 = vmatprep.subr.bf16.mxu0 0
  %1257 = vmatpush1.bf16.msra.mxu0 0
  %1258 = vmatprep.subr.bf16.mxu0 0
  %1259 = vmatpush1.bf16.msra.mxu0 0
  %1260 = vmatprep.subr.bf16.mxu0 0
  %1261 = vmatpush1.bf16.msra.mxu0 0
  %1262 = vmatprep.subr.bf16.mxu0 0
  %1263 = vmatpush1.bf16.msra.mxu0 %v1244
  %1264 = vmatprep.subr.bf16.mxu0 0
  %1265 = vmatpush1.bf16.msra.mxu0 %v1243
  %1266 = vmatprep.subr.bf16.mxu0 0
  %1267 = vmatpush2.bf16.msra.mxu0 0
  %1268 = vmatprep.subr.bf16.mxu0 0
  %1269 = vmatpush2.bf16.msra.mxu0 0
  %1270 = vmatprep.subr.bf16.mxu0 0
  %1271 = vmatpush2.bf16.msra.mxu0 0
  %1272 = vmatprep.subr.bf16.mxu0 0
  %1273 = vmatpush2.bf16.msra.mxu0 0
  %1274 = vmatprep.subr.bf16.mxu0 0
  %1275 = vmatpush2.bf16.msra.mxu0 0
  %1276 = vmatprep.subr.bf16.mxu0 0
  %1277 = vmatpush2.bf16.msra.mxu0 0
  %1278 = vmatprep.subr.bf16.mxu0 0
  %1279 = vmatpush2.bf16.msra.mxu0 0
  %1280 = vmatprep.subr.bf16.mxu0 0
  %1281 = vmatpush2.bf16.msra.mxu0 0
  %1282 = vmatprep.mubr.bf16.mxu0 0
  %1283 = vmatmul.mubr.bf16.gmra.mxu0 %v1248
  %v1284 = vpop.f32.mrf.mxu0
  %v1285 = vadd.f32 0.0, %v1284
  %v1286 = vpop.f32.mrf.mxu0
  %v1287 = vpop.f32.mrf.mxu0
  %v1288 = vpop.f32.mrf.mxu0
  %1289 = vdwg.mxu0
  %v1291 = vrot.slane %v1285, 3
  %v1292 = vrot.slane %v1285, 4
  %v1293 = vrot.slane %v1285, 5
  %v1294 = vrot.slane %v1285, 6
  %v1299 = vadd.f32 %v119, %v1291
  %v1300 = vadd.f32 %v122, %v1292
  %v1301 = vadd.f32 %v127, %v1293
  %v1302 = vadd.f32 %v130, %v1294
  %v1303 = vxor.u32 %v1299, 2147483648
  %v1304 = vxor.u32 %v1300, 2147483648
  %v1305 = vxor.u32 %v1301, 2147483648
  %v1306 = vxor.u32 %v1302, 2147483648
  %v1307 = vmul.f32 %v1303, 1.442695
  %v1308 = vpow.pop %v1307
  %v1309 = vmul.f32 %v1304, 1.442695
  %v1310 = vpow.pop %v1309
  %v1311 = vmul.f32 %v1305, 1.442695
  %v1312 = vpow.pop %v1311
  %v1313 = vmul.f32 %v1306, 1.442695
  %v1314 = vpow.pop %v1313
  %v1315 = vadd.f32 %v1308, 1.0
  %v1316 = vadd.f32 %v1310, 1.0
  %v1317 = vadd.f32 %v1312, 1.0
  %v1318 = vadd.f32 %v1314, 1.0
  %v1319 = vrcp.pop %v1315
  %v1320 = vmul.f32 1.0, %v1319
  %v1321 = vrcp.pop %v1316
  %v1322 = vmul.f32 1.0, %v1321
  %v1323 = vrcp.pop %v1317
  %v1324 = vmul.f32 1.0, %v1323
  %v1325 = vrcp.pop %v1318
  %v1326 = vmul.f32 1.0, %v1325
  %v1327 = vtanh.pop %v1299
  %v1328 = vtanh.pop %v1300
  %v1329 = vtanh.pop %v1301
  %v1330 = vtanh.pop %v1302
  %v1335 = vrot.slane %v1160, 7
  %v1336 = vrot.slane %v1161, 7
  %v1337 = vrot.slane %v1162, 7
  %v1338 = vrot.slane %v1163, 7
  %v1343 = vmul.f32 %v1320, %v1335
  %v1344 = vmul.f32 %v1322, %v1336
  %v1345 = vmul.f32 %v1324, %v1337
  %v1346 = vmul.f32 %v1326, %v1338
  %1351 = vrot.lane.b32.xlu0 %v1327, 64
  %v1352 = vpop.permute.xlu0 %1351
  %1353 = vrot.lane.b32.xlu0 %v1328, 64
  %v1354 = vpop.permute.xlu0 %1353
  %1355 = vrot.lane.b32.xlu0 %v1329, 64
  %v1356 = vpop.permute.xlu0 %1355
  %1357 = vrot.lane.b32.xlu0 %v1330, 64
  %v1358 = vpop.permute.xlu0 %1357
  %v1363 = vmul.f32 %v1320, %v1352
  %v1364 = vmul.f32 %v1322, %v1354
  %v1365 = vmul.f32 %v1324, %v1356
  %v1366 = vmul.f32 %v1326, %v1358
  %1371 = vrot.lane.b32.xlu0 %v1363, 32
  %v1372 = vpop.permute.xlu0 %1371
  %1373 = vrot.lane.b32.xlu0 %v1364, 32
  %v1374 = vpop.permute.xlu0 %1373
  %1375 = vrot.lane.b32.xlu0 %v1365, 32
  %v1376 = vpop.permute.xlu0 %1375
  %1377 = vrot.lane.b32.xlu0 %v1366, 32
  %v1378 = vpop.permute.xlu0 %1377
  %v1383 = vadd.f32 %v1343, %v1372
  %v1384 = vadd.f32 %v1344, %v1374
  %v1385 = vadd.f32 %v1345, %v1376
  %v1386 = vadd.f32 %v1346, %v1378
  %v1387 = vtanh.pop %v1383
  %v1388 = vtanh.pop %v1384
  %v1389 = vtanh.pop %v1385
  %v1390 = vtanh.pop %v1386
  %1395 = vrot.lane.b32.xlu0 %v1387, 64
  %v1396 = vpop.permute.xlu0 %1395
  %1397 = vrot.lane.b32.xlu0 %v1388, 64
  %v1398 = vpop.permute.xlu0 %1397
  %1399 = vrot.lane.b32.xlu0 %v1389, 64
  %v1400 = vpop.permute.xlu0 %1399
  %1401 = vrot.lane.b32.xlu0 %v1390, 64
  %v1402 = vpop.permute.xlu0 %1401
  %v1407 = vmul.f32 %v1320, %v1396
  %v1408 = vmul.f32 %v1322, %v1398
  %v1409 = vmul.f32 %v1324, %v1400
  %v1410 = vmul.f32 %v1326, %v1402
  %1415 = vrot.lane.b32.xlu0 %v1407, 32
  %v1416 = vpop.permute.xlu0 %1415
  %1417 = vrot.lane.b32.xlu0 %v1408, 32
  %v1418 = vpop.permute.xlu0 %1417
  %1419 = vrot.lane.b32.xlu0 %v1409, 32
  %v1420 = vpop.permute.xlu0 %1419
  %1421 = vrot.lane.b32.xlu0 %v1410, 32
  %v1422 = vpop.permute.xlu0 %1421
  %vm1427 = vcmask 259077
  %1428 = vst.msk [vmem:[#allocation2] sm:$0x20] %vm1427, %v1416
  %1429 = vst.msk [vmem:[#allocation2 + $0x8] sm:$0x20] %vm1427, %v1418
  %1430 = vst.msk [vmem:[#allocation2 + $0x10] sm:$0x20] %vm1427, %v1420
  %1431 = vst.msk [vmem:[#allocation2 + $0x18] sm:$0x20] %vm1427, %v1422
  %v1432 = vpack.c.bf16 %v1407, %v1407
  %v1433 = vpack.c.bf16 %v1408, %v1408
  %v1434 = vpack.c.bf16 %v1409, %v1409
  %v1435 = vpack.c.bf16 %v1410, %v1410
  %v1436 = vld [vmem:[%s3] sm:$0xf]
  %v1437 = vld [vmem:[%s3 + $0x4] sm:$0xf]
  %v1438 = vld [vmem:[%s3 + $0x8] sm:$0xf]
  %v1439 = vld [vmem:[%s3 + $0xc] sm:$0xf]
  %v1444 = vunpack.c.l.b16 %v1432
  %v1445 = vunpack.c.l.b16 %v1433
  %v1446 = vunpack.c.l.b16 %v1434
  %v1447 = vunpack.c.l.b16 %v1435
  %v1448 = vrot.slane %v1444, 5
  %v1449 = vrot.slane %v1445, 4
  %v1450 = vsel %vm338, %v1449, %v1448
  %v1451 = vrot.slane %v1446, 3
  %v1452 = vsel %vm341, %v1451, %v1450
  %v1453 = vrot.slane %v1447, 2
  %v1454 = vsel %vm344, %v1453, %v1452
  %v1455 = vpack.c.b16 %v1454, %v1454
  %1456 = vrot.lane.b32.xlu0 %v1455, 32
  %v1457 = vpop.permute.xlu0 %1456
  %v1462 = vunpack.c.l.b16 %v1436
  %v1463 = vunpack.c.l.b16 %v1437
  %v1464 = vunpack.c.l.b16 %v1438
  %v1465 = vunpack.c.l.b16 %v1439
  %v1466 = vpack.c.b16 %v1463, %v1462
  %v1467 = vpack.c.b16 %v1465, %v1464
  %v1471 = vsel %vm77, %v1457, 0
  %1473 = vmatprep.subr.bf16.mxu0 0
  %1474 = vmatpush1.bf16.msra.mxu0 0
  %1475 = vmatprep.subr.bf16.mxu0 0
  %1476 = vmatpush1.bf16.msra.mxu0 0
  %1477 = vmatprep.subr.bf16.mxu0 0
  %1478 = vmatpush1.bf16.msra.mxu0 0
  %1479 = vmatprep.subr.bf16.mxu0 0
  %1480 = vmatpush1.bf16.msra.mxu0 0
  %1481 = vmatprep.subr.bf16.mxu0 0
  %1482 = vmatpush1.bf16.msra.mxu0 0
  %1483 = vmatprep.subr.bf16.mxu0 0
  %1484 = vmatpush1.bf16.msra.mxu0 0
  %1485 = vmatprep.subr.bf16.mxu0 0
  %1486 = vmatpush1.bf16.msra.mxu0 %v1467
  %1487 = vmatprep.subr.bf16.mxu0 0
  %1488 = vmatpush1.bf16.msra.mxu0 %v1466
  %1489 = vmatprep.subr.bf16.mxu0 0
  %1490 = vmatpush2.bf16.msra.mxu0 0
  %1491 = vmatprep.subr.bf16.mxu0 0
  %1492 = vmatpush2.bf16.msra.mxu0 0
  %1493 = vmatprep.subr.bf16.mxu0 0
  %1494 = vmatpush2.bf16.msra.mxu0 0
  %1495 = vmatprep.subr.bf16.mxu0 0
  %1496 = vmatpush2.bf16.msra.mxu0 0
  %1497 = vmatprep.subr.bf16.mxu0 0
  %1498 = vmatpush2.bf16.msra.mxu0 0
  %1499 = vmatprep.subr.bf16.mxu0 0
  %1500 = vmatpush2.bf16.msra.mxu0 0
  %1501 = vmatprep.subr.bf16.mxu0 0
  %1502 = vmatpush2.bf16.msra.mxu0 0
  %1503 = vmatprep.subr.bf16.mxu0 0
  %1504 = vmatpush2.bf16.msra.mxu0 0
  %1505 = vmatprep.mubr.bf16.mxu0 0
  %1506 = vmatmul.mubr.bf16.gmra.mxu0 %v1471
  %v1507 = vpop.f32.mrf.mxu0
  %v1508 = vadd.f32 0.0, %v1507
  %v1509 = vpop.f32.mrf.mxu0
  %v1510 = vpop.f32.mrf.mxu0
  %v1511 = vpop.f32.mrf.mxu0
  %1512 = vdwg.mxu0
  %v1514 = vrot.slane %v1508, 2
  %v1515 = vrot.slane %v1508, 3
  %v1516 = vrot.slane %v1508, 4
  %v1517 = vrot.slane %v1508, 5
  %v1522 = vadd.f32 %v119, %v1514
  %v1523 = vadd.f32 %v122, %v1515
  %v1524 = vadd.f32 %v127, %v1516
  %v1525 = vadd.f32 %v130, %v1517
  %v1526 = vxor.u32 %v1522, 2147483648
  %v1527 = vxor.u32 %v1523, 2147483648
  %v1528 = vxor.u32 %v1524, 2147483648
  %v1529 = vxor.u32 %v1525, 2147483648
  %v1530 = vmul.f32 %v1526, 1.442695
  %v1531 = vpow.pop %v1530
  %v1532 = vmul.f32 %v1527, 1.442695
  %v1533 = vpow.pop %v1532
  %v1534 = vmul.f32 %v1528, 1.442695
  %v1535 = vpow.pop %v1534
  %v1536 = vmul.f32 %v1529, 1.442695
  %v1537 = vpow.pop %v1536
  %v1538 = vadd.f32 %v1531, 1.0
  %v1539 = vadd.f32 %v1533, 1.0
  %v1540 = vadd.f32 %v1535, 1.0
  %v1541 = vadd.f32 %v1537, 1.0
  %v1542 = vrcp.pop %v1538
  %v1543 = vmul.f32 1.0, %v1542
  %v1544 = vrcp.pop %v1539
  %v1545 = vmul.f32 1.0, %v1544
  %v1546 = vrcp.pop %v1540
  %v1547 = vmul.f32 1.0, %v1546
  %v1548 = vrcp.pop %v1541
  %v1549 = vmul.f32 1.0, %v1548
  %v1550 = vtanh.pop %v1522
  %v1551 = vtanh.pop %v1523
  %v1552 = vtanh.pop %v1524
  %v1553 = vtanh.pop %v1525
  %v1558 = vrot.slane %v1383, 7
  %v1559 = vrot.slane %v1384, 7
  %v1560 = vrot.slane %v1385, 7
  %v1561 = vrot.slane %v1386, 7
  %v1566 = vmul.f32 %v1543, %v1558
  %v1567 = vmul.f32 %v1545, %v1559
  %v1568 = vmul.f32 %v1547, %v1560
  %v1569 = vmul.f32 %v1549, %v1561
  %1574 = vrot.lane.b32.xlu0 %v1550, 64
  %v1575 = vpop.permute.xlu0 %1574
  %1576 = vrot.lane.b32.xlu0 %v1551, 64
  %v1577 = vpop.permute.xlu0 %1576
  %1578 = vrot.lane.b32.xlu0 %v1552, 64
  %v1579 = vpop.permute.xlu0 %1578
  %1580 = vrot.lane.b32.xlu0 %v1553, 64
  %v1581 = vpop.permute.xlu0 %1580
  %v1586 = vmul.f32 %v1543, %v1575
  %v1587 = vmul.f32 %v1545, %v1577
  %v1588 = vmul.f32 %v1547, %v1579
  %v1589 = vmul.f32 %v1549, %v1581
  %1594 = vrot.lane.b32.xlu0 %v1586, 32
  %v1595 = vpop.permute.xlu0 %1594
  %1596 = vrot.lane.b32.xlu0 %v1587, 32
  %v1597 = vpop.permute.xlu0 %1596
  %1598 = vrot.lane.b32.xlu0 %v1588, 32
  %v1599 = vpop.permute.xlu0 %1598
  %1600 = vrot.lane.b32.xlu0 %v1589, 32
  %v1601 = vpop.permute.xlu0 %1600
  %v1606 = vadd.f32 %v1566, %v1595
  %v1607 = vadd.f32 %v1567, %v1597
  %v1608 = vadd.f32 %v1568, %v1599
  %v1609 = vadd.f32 %v1569, %v1601
  %v1610 = vtanh.pop %v1606
  %v1611 = vtanh.pop %v1607
  %v1612 = vtanh.pop %v1608
  %v1613 = vtanh.pop %v1609
  %1618 = vrot.lane.b32.xlu0 %v1610, 64
  %v1619 = vpop.permute.xlu0 %1618
  %1620 = vrot.lane.b32.xlu0 %v1611, 64
  %v1621 = vpop.permute.xlu0 %1620
  %1622 = vrot.lane.b32.xlu0 %v1612, 64
  %v1623 = vpop.permute.xlu0 %1622
  %1624 = vrot.lane.b32.xlu0 %v1613, 64
  %v1625 = vpop.permute.xlu0 %1624
  %v1630 = vmul.f32 %v1543, %v1619
  %v1631 = vmul.f32 %v1545, %v1621
  %v1632 = vmul.f32 %v1547, %v1623
  %v1633 = vmul.f32 %v1549, %v1625
  %1638 = vrot.lane.b32.xlu0 %v1630, 32
  %v1639 = vpop.permute.xlu0 %1638
  %1640 = vrot.lane.b32.xlu0 %v1631, 32
  %v1641 = vpop.permute.xlu0 %1640
  %1642 = vrot.lane.b32.xlu0 %v1632, 32
  %v1643 = vpop.permute.xlu0 %1642
  %1644 = vrot.lane.b32.xlu0 %v1633, 32
  %v1645 = vpop.permute.xlu0 %1644
  %vm1650 = vcmask 260102
  %1651 = vst.msk [vmem:[#allocation2] sm:$0x40] %vm1650, %v1639
  %1652 = vst.msk [vmem:[#allocation2 + $0x8] sm:$0x40] %vm1650, %v1641
  %1653 = vst.msk [vmem:[#allocation2 + $0x10] sm:$0x40] %vm1650, %v1643
  %1654 = vst.msk [vmem:[#allocation2 + $0x18] sm:$0x40] %vm1650, %v1645
  %v1655 = vpack.c.bf16 %v1630, %v1630
  %v1656 = vpack.c.bf16 %v1631, %v1631
  %v1657 = vpack.c.bf16 %v1632, %v1632
  %v1658 = vpack.c.bf16 %v1633, %v1633
  %v1659 = vld [vmem:[%s3] sm:$0xf]
  %v1660 = vld [vmem:[%s3 + $0x4] sm:$0xf]
  %v1661 = vld [vmem:[%s3 + $0x8] sm:$0xf]
  %v1662 = vld [vmem:[%s3 + $0xc] sm:$0xf]
  %v1667 = vunpack.c.l.b16 %v1655
  %v1668 = vunpack.c.l.b16 %v1656
  %v1669 = vunpack.c.l.b16 %v1657
  %v1670 = vunpack.c.l.b16 %v1658
  %v1671 = vrot.slane %v1667, 6
  %v1672 = vrot.slane %v1668, 5
  %v1673 = vsel %vm338, %v1672, %v1671
  %v1674 = vrot.slane %v1669, 4
  %v1675 = vsel %vm341, %v1674, %v1673
  %v1676 = vrot.slane %v1670, 3
  %v1677 = vsel %vm344, %v1676, %v1675
  %v1678 = vpack.c.b16 %v1677, %v1677
  %1679 = vrot.lane.b32.xlu0 %v1678, 32
  %v1680 = vpop.permute.xlu0 %1679
  %v1685 = vunpack.c.l.b16 %v1659
  %v1686 = vunpack.c.l.b16 %v1660
  %v1687 = vunpack.c.l.b16 %v1661
  %v1688 = vunpack.c.l.b16 %v1662
  %v1689 = vpack.c.b16 %v1686, %v1685
  %v1690 = vpack.c.b16 %v1688, %v1687
  %v1694 = vsel %vm77, %v1680, 0
  %1696 = vmatprep.subr.bf16.mxu0 0
  %1697 = vmatpush1.bf16.msra.mxu0 0
  %1698 = vmatprep.subr.bf16.mxu0 0
  %1699 = vmatpush1.bf16.msra.mxu0 0
  %1700 = vmatprep.subr.bf16.mxu0 0
  %1701 = vmatpush1.bf16.msra.mxu0 0
  %1702 = vmatprep.subr.bf16.mxu0 0
  %1703 = vmatpush1.bf16.msra.mxu0 0
  %1704 = vmatprep.subr.bf16.mxu0 0
  %1705 = vmatpush1.bf16.msra.mxu0 0
  %1706 = vmatprep.subr.bf16.mxu0 0
  %1707 = vmatpush1.bf16.msra.mxu0 0
  %1708 = vmatprep.subr.bf16.mxu0 0
  %1709 = vmatpush1.bf16.msra.mxu0 %v1690
  %1710 = vmatprep.subr.bf16.mxu0 0
  %1711 = vmatpush1.bf16.msra.mxu0 %v1689
  %1712 = vmatprep.subr.bf16.mxu0 0
  %1713 = vmatpush2.bf16.msra.mxu0 0
  %1714 = vmatprep.subr.bf16.mxu0 0
  %1715 = vmatpush2.bf16.msra.mxu0 0
  %1716 = vmatprep.subr.bf16.mxu0 0
  %1717 = vmatpush2.bf16.msra.mxu0 0
  %1718 = vmatprep.subr.bf16.mxu0 0
  %1719 = vmatpush2.bf16.msra.mxu0 0
  %1720 = vmatprep.subr.bf16.mxu0 0
  %1721 = vmatpush2.bf16.msra.mxu0 0
  %1722 = vmatprep.subr.bf16.mxu0 0
  %1723 = vmatpush2.bf16.msra.mxu0 0
  %1724 = vmatprep.subr.bf16.mxu0 0
  %1725 = vmatpush2.bf16.msra.mxu0 0
  %1726 = vmatprep.subr.bf16.mxu0 0
  %1727 = vmatpush2.bf16.msra.mxu0 0
  %1728 = vmatprep.mubr.bf16.mxu0 0
  %1729 = vmatmul.mubr.bf16.gmra.mxu0 %v1694
  %v1730 = vpop.f32.mrf.mxu0
  %v1731 = vadd.f32 0.0, %v1730
  %v1732 = vpop.f32.mrf.mxu0
  %v1733 = vpop.f32.mrf.mxu0
  %v1734 = vpop.f32.mrf.mxu0
  %1735 = vdwg.mxu0
  %v1737 = vrot.slane %v1731, 1
  %v1738 = vrot.slane %v1731, 2
  %v1739 = vrot.slane %v1731, 3
  %v1740 = vrot.slane %v1731, 4
  %v1745 = vadd.f32 %v119, %v1737
  %v1746 = vadd.f32 %v122, %v1738
  %v1747 = vadd.f32 %v127, %v1739
  %v1748 = vadd.f32 %v130, %v1740
  %v1749 = vxor.u32 %v1745, 2147483648
  %v1750 = vxor.u32 %v1746, 2147483648
  %v1751 = vxor.u32 %v1747, 2147483648
  %v1752 = vxor.u32 %v1748, 2147483648
  %v1753 = vmul.f32 %v1749, 1.442695
  %v1754 = vpow.pop %v1753
  %v1755 = vmul.f32 %v1750, 1.442695
  %v1756 = vpow.pop %v1755
  %v1757 = vmul.f32 %v1751, 1.442695
  %v1758 = vpow.pop %v1757
  %v1759 = vmul.f32 %v1752, 1.442695
  %v1760 = vpow.pop %v1759
  %v1761 = vadd.f32 %v1754, 1.0
  %v1762 = vadd.f32 %v1756, 1.0
  %v1763 = vadd.f32 %v1758, 1.0
  %v1764 = vadd.f32 %v1760, 1.0
  %v1765 = vrcp.pop %v1761
  %v1766 = vmul.f32 1.0, %v1765
  %v1767 = vrcp.pop %v1762
  %v1768 = vmul.f32 1.0, %v1767
  %v1769 = vrcp.pop %v1763
  %v1770 = vmul.f32 1.0, %v1769
  %v1771 = vrcp.pop %v1764
  %v1772 = vmul.f32 1.0, %v1771
  %v1773 = vtanh.pop %v1745
  %v1774 = vtanh.pop %v1746
  %v1775 = vtanh.pop %v1747
  %v1776 = vtanh.pop %v1748
  %v1781 = vrot.slane %v1606, 7
  %v1782 = vrot.slane %v1607, 7
  %v1783 = vrot.slane %v1608, 7
  %v1784 = vrot.slane %v1609, 7
  %v1789 = vmul.f32 %v1766, %v1781
  %v1790 = vmul.f32 %v1768, %v1782
  %v1791 = vmul.f32 %v1770, %v1783
  %v1792 = vmul.f32 %v1772, %v1784
  %1797 = vrot.lane.b32.xlu0 %v1773, 64
  %v1798 = vpop.permute.xlu0 %1797
  %1799 = vrot.lane.b32.xlu0 %v1774, 64
  %v1800 = vpop.permute.xlu0 %1799
  %1801 = vrot.lane.b32.xlu0 %v1775, 64
  %v1802 = vpop.permute.xlu0 %1801
  %1803 = vrot.lane.b32.xlu0 %v1776, 64
  %v1804 = vpop.permute.xlu0 %1803
  %v1809 = vmul.f32 %v1766, %v1798
  %v1810 = vmul.f32 %v1768, %v1800
  %v1811 = vmul.f32 %v1770, %v1802
  %v1812 = vmul.f32 %v1772, %v1804
  %1817 = vrot.lane.b32.xlu0 %v1809, 32
  %v1818 = vpop.permute.xlu0 %1817
  %1819 = vrot.lane.b32.xlu0 %v1810, 32
  %v1820 = vpop.permute.xlu0 %1819
  %1821 = vrot.lane.b32.xlu0 %v1811, 32
  %v1822 = vpop.permute.xlu0 %1821
  %1823 = vrot.lane.b32.xlu0 %v1812, 32
  %v1824 = vpop.permute.xlu0 %1823
  %v1829 = vadd.f32 %v1789, %v1818
  %v1830 = vadd.f32 %v1790, %v1820
  %v1831 = vadd.f32 %v1791, %v1822
  %v1832 = vadd.f32 %v1792, %v1824
  %v1833 = vtanh.pop %v1829
  %v1834 = vtanh.pop %v1830
  %v1835 = vtanh.pop %v1831
  %v1836 = vtanh.pop %v1832
  %1841 = vrot.lane.b32.xlu0 %v1833, 64
  %v1842 = vpop.permute.xlu0 %1841
  %1843 = vrot.lane.b32.xlu0 %v1834, 64
  %v1844 = vpop.permute.xlu0 %1843
  %1845 = vrot.lane.b32.xlu0 %v1835, 64
  %v1846 = vpop.permute.xlu0 %1845
  %1847 = vrot.lane.b32.xlu0 %v1836, 64
  %v1848 = vpop.permute.xlu0 %1847
  %v1853 = vmul.f32 %v1766, %v1842
  %v1854 = vmul.f32 %v1768, %v1844
  %v1855 = vmul.f32 %v1770, %v1846
  %v1856 = vmul.f32 %v1772, %v1848
  %1861 = vrot.lane.b32.xlu0 %v1853, 32
  %v1862 = vpop.permute.xlu0 %1861
  %1863 = vrot.lane.b32.xlu0 %v1854, 32
  %v1864 = vpop.permute.xlu0 %1863
  %1865 = vrot.lane.b32.xlu0 %v1855, 32
  %v1866 = vpop.permute.xlu0 %1865
  %1867 = vrot.lane.b32.xlu0 %v1856, 32
  %v1868 = vpop.permute.xlu0 %1867
  %vm1873 = vcmask 261127
  %1874 = vst.msk [vmem:[#allocation2] sm:$0x80] %vm1873, %v1862
  %1875 = vst.msk [vmem:[#allocation2 + $0x8] sm:$0x80] %vm1873, %v1864
  %1876 = vst.msk [vmem:[#allocation2 + $0x10] sm:$0x80] %vm1873, %v1866
  %1877 = vst.msk [vmem:[#allocation2 + $0x18] sm:$0x80] %vm1873, %v1868
  %v1878 = vld [vmem:[#allocation2] sm:$0xff]
  %v1879 = vld [vmem:[#allocation2 + $0x8] sm:$0xff]
  %v1880 = vld [vmem:[#allocation2 + $0x10] sm:$0xff]
  %v1881 = vld [vmem:[#allocation2 + $0x18] sm:$0xff]
  %v1882 = vpack.c.bf16 %v1879, %v1878
  %v1883 = vpack.c.bf16 %v1881, %v1880
  %v1884 = vld [vmem:[%s7] sm:$0xf]
  %v1885 = vld [vmem:[%s7 + $0x4] sm:$0xf]
  %v1886 = vld [vmem:[%s7 + $0x8] sm:$0xf]
  %v1887 = vld [vmem:[%s7 + $0xc] sm:$0xf]
  %v1888 = vld [vmem:[%s8] sm:$0x1]
  %v1890 = vlaneseq
  %v1891 = vshrl.u32 %v1890, 7
  %v1892 = vsub.s32 0, %v1891
  %v1893 = vrot.slane %v1888, %v1892
  %v1899 = vunpack.c.l.b16 %v1884
  %v1900 = vunpack.c.l.b16 %v1885
  %v1901 = vunpack.c.l.b16 %v1886
  %v1902 = vunpack.c.l.b16 %v1887
  %v1903 = vpack.c.b16 %v1900, %v1899
  %v1904 = vpack.c.b16 %v1902, %v1901
  %v1908 = vsel %vm77, %v1882, 0
  %v1911 = vsel %vm77, %v1883, 0
  %1913 = vmatprep.subr.bf16.mxu0 0
  %1914 = vmatpush1.bf16.msra.mxu0 0
  %1915 = vmatprep.subr.bf16.mxu0 0
  %1916 = vmatpush1.bf16.msra.mxu0 0
  %1917 = vmatprep.subr.bf16.mxu0 0
  %1918 = vmatpush1.bf16.msra.mxu0 0
  %1919 = vmatprep.subr.bf16.mxu0 0
  %1920 = vmatpush1.bf16.msra.mxu0 0
  %1921 = vmatprep.subr.bf16.mxu0 0
  %1922 = vmatpush1.bf16.msra.mxu0 0
  %1923 = vmatprep.subr.bf16.mxu0 0
  %1924 = vmatpush1.bf16.msra.mxu0 0
  %1925 = vmatprep.subr.bf16.mxu0 0
  %1926 = vmatpush1.bf16.msra.mxu0 %v1904
  %1927 = vmatprep.subr.bf16.mxu0 0
  %1928 = vmatpush1.bf16.msra.mxu0 %v1903
  %1929 = vmatprep.subr.bf16.mxu0 0
  %1930 = vmatpush2.bf16.msra.mxu0 0
  %1931 = vmatprep.subr.bf16.mxu0 0
  %1932 = vmatpush2.bf16.msra.mxu0 0
  %1933 = vmatprep.subr.bf16.mxu0 0
  %1934 = vmatpush2.bf16.msra.mxu0 0
  %1935 = vmatprep.subr.bf16.mxu0 0
  %1936 = vmatpush2.bf16.msra.mxu0 0
  %1937 = vmatprep.subr.bf16.mxu0 0
  %1938 = vmatpush2.bf16.msra.mxu0 0
  %1939 = vmatprep.subr.bf16.mxu0 0
  %1940 = vmatpush2.bf16.msra.mxu0 0
  %1941 = vmatprep.subr.bf16.mxu0 0
  %1942 = vmatpush2.bf16.msra.mxu0 0
  %1943 = vmatprep.subr.bf16.mxu0 0
  %1944 = vmatpush2.bf16.msra.mxu0 0
  %1945 = vmatprep.mubr.bf16.mxu0 0
  %1946 = vmatmul.mubr.bf16.gmra.mxu0 %v1908
  %v1947 = vpop.f32.mrf.mxu0
  %v1948 = vadd.f32 %v1893, %v1947
  %v1949 = vpop.f32.mrf.mxu0
  %v1950 = vpop.f32.mrf.mxu0
  %v1951 = vadd.f32 %v1893, %v1950
  %v1952 = vpop.f32.mrf.mxu0
  %1953 = vmatprep.mubr.bf16.mxu0 0
  %1954 = vmatmul.mubr.bf16.gmra.mxu0 %v1911
  %v1955 = vpop.f32.mrf.mxu0
  %v1956 = vadd.f32 %v1893, %v1955
  %v1957 = vpop.f32.mrf.mxu0
  %v1958 = vpop.f32.mrf.mxu0
  %v1959 = vadd.f32 %v1893, %v1958
  %v1960 = vpop.f32.mrf.mxu0
  %1961 = vdwg.mxu0
  %v1962 = vlaneseq
  %v1963 = vshrl.u32 %v1962, 7
  %v1964 = vadd.s32 %v1963, 8
  %v1965 = vadd.s32 %v1963, 16
  %v1966 = vadd.s32 %v1963, 24
  %v1967 = vlaneseq
  %v1968 = vand.u32 %v1967, 127
  %v1969 = vmul.u32 %v1968, 8
  %vm1970 = vcmp.ge.s32.totalorder %v1963, %v1969
  %vm1971 = vcmp.ge.s32.totalorder %v1964, %v1969
  %vm1972 = vcmp.ge.s32.totalorder %v1965, %v1969
  %vm1973 = vcmp.ge.s32.totalorder %v1966, %v1969
  %v1974 = vadd.s32 %v1968, 1
  %v1975 = vmul.u32 %v1974, 8
  %vm1976 = vcmp.lt.s32.totalorder %v1963, %v1975
  %vm1977 = vcmp.lt.s32.totalorder %v1964, %v1975
  %vm1978 = vcmp.lt.s32.totalorder %v1965, %v1975
  %vm1979 = vcmp.lt.s32.totalorder %v1966, %v1975
  %vm1980 = vmand %vm1970, %vm1976
  %vm1981 = vmand %vm1971, %vm1977
  %vm1982 = vmand %vm1972, %vm1978
  %vm1983 = vmand %vm1973, %vm1979
  %v1984 = vsel %vm1980, 1, 0
  %v1985 = vsel %vm1981, 1, 0
  %v1986 = vsel %vm1982, 1, 0
  %v1987 = vsel %vm1983, 1, 0
  %v1988 = vcvt.s32.f32 %v1984
  %v1989 = vcvt.s32.f32 %v1985
  %v1990 = vcvt.s32.f32 %v1986
  %v1991 = vcvt.s32.f32 %v1987
  %v1992 = vpack.c.bf16 %v1989, %v1988
  %v1993 = vpack.c.bf16 %v1991, %v1990
  %v1994 = vmul.u32 %v1963, 8
  %vm1995 = vcmp.ge.s32.totalorder %v1968, %v1994
  %v1996 = vadd.s32 %v1963, 1
  %v1997 = vmul.u32 %v1996, 8
  %vm1998 = vcmp.lt.s32.totalorder %v1968, %v1997
  %vm1999 = vmand %vm1995, %vm1998
  %v2000 = vsel %vm1999, 1, 0
  %v2001 = vcvt.s32.f32 %v2000
  %v2002 = vpack.c.bf16 %v2001, %v2001
  %2003 = vst [vmem:[%s14] sm:$0x1] 0.0
  %2004 = vst [vmem:[%s14 + $0x8] sm:$0x1] 0.0
  %2005 = vst [vmem:[%s14 + $0x10] sm:$0x1] 0.0
  %2006 = vst [vmem:[%s14 + $0x18] sm:$0x1] 0.0
  %v2007 = vld [vmem:[%s1] sm:$0xf]
  %v2008 = vpack.c.bf16 %v1853, %v1853
  %v2009 = vpack.c.bf16 %v1854, %v1854
  %v2010 = vpack.c.bf16 %v1855, %v1855
  %v2011 = vpack.c.bf16 %v1856, %v1856
  %v2012 = vld [vmem:[%s5] sm:$0xf]
  %v2013 = vld [vmem:[%s5 + $0x4] sm:$0xf]
  %v2014 = vld [vmem:[%s5 + $0x8] sm:$0xf]
  %v2015 = vld [vmem:[%s5 + $0xc] sm:$0xf]
  %v2016 = vld [vmem:[%s6] sm:$0x1]
  %v2018 = vlaneseq
  %v2019 = vshrl.u32 %v2018, 7
  %v2020 = vsub.s32 0, %v2019
  %v2021 = vrot.slane %v2016, %v2020
  %v2027 = vunpack.c.l.b16 %v2008
  %v2028 = vunpack.c.l.b16 %v2009
  %v2029 = vunpack.c.l.b16 %v2010
  %v2030 = vunpack.c.l.b16 %v2011
  %v2031 = vrot.slane %v2027, 7
  %v2032 = vrot.slane %v2028, 6
  %v2033 = vsel %vm338, %v2032, %v2031
  %v2034 = vrot.slane %v2029, 5
  %v2035 = vsel %vm341, %v2034, %v2033
  %v2036 = vrot.slane %v2030, 4
  %v2037 = vsel %vm344, %v2036, %v2035
  %v2038 = vpack.c.b16 %v2037, %v2037
  %2039 = vrot.lane.b32.xlu0 %v2038, 32
  %v2040 = vpop.permute.xlu0 %2039
  %v2045 = vunpack.c.l.b16 %v2012
  %v2046 = vunpack.c.l.b16 %v2013
  %v2047 = vunpack.c.l.b16 %v2014
  %v2048 = vunpack.c.l.b16 %v2015
  %v2049 = vpack.c.b16 %v2046, %v2045
  %v2050 = vpack.c.b16 %v2048, %v2047
  %v2054 = vsel %vm77, %v2040, 0
  %2056 = vmatprep.subr.bf16.mxu0 0
  %2057 = vmatpush1.bf16.msra.mxu0 0
  %2058 = vmatprep.subr.bf16.mxu0 0
  %2059 = vmatpush1.bf16.msra.mxu0 0
  %2060 = vmatprep.subr.bf16.mxu0 0
  %2061 = vmatpush1.bf16.msra.mxu0 0
  %2062 = vmatprep.subr.bf16.mxu0 0
  %2063 = vmatpush1.bf16.msra.mxu0 0
  %2064 = vmatprep.subr.bf16.mxu0 0
  %2065 = vmatpush1.bf16.msra.mxu0 0
  %2066 = vmatprep.subr.bf16.mxu0 0
  %2067 = vmatpush1.bf16.msra.mxu0 0
  %2068 = vmatprep.subr.bf16.mxu0 0
  %2069 = vmatpush1.bf16.msra.mxu0 %v2050
  %2070 = vmatprep.subr.bf16.mxu0 0
  %2071 = vmatpush1.bf16.msra.mxu0 %v2049
  %2072 = vmatprep.subr.bf16.mxu0 0
  %2073 = vmatpush2.bf16.msra.mxu0 0
  %2074 = vmatprep.subr.bf16.mxu0 0
  %2075 = vmatpush2.bf16.msra.mxu0 0
  %2076 = vmatprep.subr.bf16.mxu0 0
  %2077 = vmatpush2.bf16.msra.mxu0 0
  %2078 = vmatprep.subr.bf16.mxu0 0
  %2079 = vmatpush2.bf16.msra.mxu0 0
  %2080 = vmatprep.subr.bf16.mxu0 0
  %2081 = vmatpush2.bf16.msra.mxu0 0
  %2082 = vmatprep.subr.bf16.mxu0 0
  %2083 = vmatpush2.bf16.msra.mxu0 0
  %2084 = vmatprep.subr.bf16.mxu0 0
  %2085 = vmatpush2.bf16.msra.mxu0 0
  %2086 = vmatprep.subr.bf16.mxu0 0
  %2087 = vmatpush2.bf16.msra.mxu0 0
  %2088 = vmatprep.mubr.bf16.mxu0 0
  %2089 = vmatmul.mubr.bf16.gmra.mxu0 %v2054
  %v2090 = vpop.f32.mrf.mxu0
  %v2091 = vadd.f32 %v2021, %v2090
  %v2092 = vpop.f32.mrf.mxu0
  %v2093 = vpop.f32.mrf.mxu0
  %v2094 = vpop.f32.mrf.mxu0
  %2095 = vdwg.mxu0
  %v2098 = vunpack.c.l.s4 1966171168
  %v2099 = vunpack.c.0.s8 %v2098
  %v2100 = vlaneseq
  %v2101 = vshrl.u32 %v2100, 7
  %v2102 = vsub.s32 %v2099, %v2101
  %v2103 = vrot.slane %v2091, %v2102
  %v2104 = vcombine.high %v2103, %v2103
  %v2106 = vunpack.c.l.s4 1966171168
  %v2107 = vunpack.c.0.s8 %v2106
  %v2108 = vlaneseq
  %v2109 = vshrl.u32 %v2108, 7
  %v2110 = vsub.s32 %v2107, %v2109
  %v2111 = vrot.slane %v2103, %v2110
  %v2113 = vunpack.c.l.s4 1966171168
  %v2114 = vunpack.c.0.s8 %v2113
  %v2115 = vlaneseq
  %v2116 = vshrl.u32 %v2115, 7
  %v2117 = vsub.s32 %v2114, %v2116
  %v2118 = vrot.slane %v2104, %v2117
  %v2119 = vcombine.high %v2111, %v2111
  %v2120 = vcombine.high %v2118, %v2118
  %v2121 = vlaneseq
  %v2122 = vshrl.u32 %v2121, 7
  %v2123 = vsub.s32 0, %v2122
  %v2124 = vrot.slane %v2111, %v2123
  %v2125 = vlaneseq
  %v2126 = vshrl.u32 %v2125, 7
  %v2127 = vsub.s32 0, %v2126
  %v2128 = vrot.slane %v2118, %v2127
  %v2129 = vlaneseq
  %v2130 = vshrl.u32 %v2129, 7
  %v2131 = vsub.s32 0, %v2130
  %v2132 = vrot.slane %v2119, %v2131
  %v2133 = vlaneseq
  %v2134 = vshrl.u32 %v2133, 7
  %v2135 = vsub.s32 0, %v2134
  %v2136 = vrot.slane %v2120, %v2135
  %v2141 = vmul.f32 %v2124, %v1948
  %v2142 = vmul.f32 %v2128, %v1951
  %v2143 = vmul.f32 %v2132, %v1956
  %v2144 = vmul.f32 %v2136, %v1959
  %v2145 = vpack.c.bf16 %v2142, %v2141
  %v2146 = vpack.c.bf16 %v2144, %v2143
  %v2148 = vsel %vm77, %v2145, 0
  %v2151 = vsel %vm77, %v2146, 0
  %2153 = vmatprep.subr.bf16.mxu0 0
  %2154 = vmatpush1.bf16.msra.mxu0 0
  %2155 = vmatprep.subr.bf16.mxu0 0
  %2156 = vmatpush1.bf16.msra.mxu0 0
  %2157 = vmatprep.subr.bf16.mxu0 0
  %2158 = vmatpush1.bf16.msra.mxu0 0
  %2159 = vmatprep.subr.bf16.mxu0 0
  %2160 = vmatpush1.bf16.msra.mxu0 0
  %2161 = vmatprep.subr.bf16.mxu0 0
  %2162 = vmatpush1.bf16.msra.mxu0 0
  %2163 = vmatprep.subr.bf16.mxu0 0
  %2164 = vmatpush1.bf16.msra.mxu0 0
  %2165 = vmatprep.subr.bf16.mxu0 0
  %2166 = vmatpush1.bf16.msra.mxu0 %v1993
  %2167 = vmatprep.subr.bf16.mxu0 0
  %2168 = vmatpush1.bf16.msra.mxu0 %v1992
  %2169 = vmatprep.subr.bf16.mxu0 0
  %2170 = vmatpush2.bf16.msra.mxu0 0
  %2171 = vmatprep.subr.bf16.mxu0 0
  %2172 = vmatpush2.bf16.msra.mxu0 0
  %2173 = vmatprep.subr.bf16.mxu0 0
  %2174 = vmatpush2.bf16.msra.mxu0 0
  %2175 = vmatprep.subr.bf16.mxu0 0
  %2176 = vmatpush2.bf16.msra.mxu0 0
  %2177 = vmatprep.subr.bf16.mxu0 0
  %2178 = vmatpush2.bf16.msra.mxu0 0
  %2179 = vmatprep.subr.bf16.mxu0 0
  %2180 = vmatpush2.bf16.msra.mxu0 0
  %2181 = vmatprep.subr.bf16.mxu0 0
  %2182 = vmatpush2.bf16.msra.mxu0 0
  %2183 = vmatprep.subr.bf16.mxu0 0
  %2184 = vmatpush2.bf16.msra.mxu0 0
  %2185 = vmatprep.mubr.bf16.mxu0 0
  %2186 = vmatmul.mubr.bf16.gmra.mxu0 %v2148
  %v2187 = vpop.f32.mrf.mxu0
  %v2188 = vadd.f32 0.0, %v2187
  %v2189 = vpop.f32.mrf.mxu0
  %v2190 = vpop.f32.mrf.mxu0
  %v2191 = vadd.f32 0.0, %v2190
  %v2192 = vpop.f32.mrf.mxu0
  %2193 = vmatprep.mubr.bf16.mxu0 0
  %2194 = vmatmul.mubr.bf16.gmra.mxu0 %v2151
  %v2195 = vpop.f32.mrf.mxu0
  %v2196 = vadd.f32 0.0, %v2195
  %v2197 = vpop.f32.mrf.mxu0
  %v2198 = vpop.f32.mrf.mxu0
  %v2199 = vadd.f32 0.0, %v2198
  %v2200 = vpop.f32.mrf.mxu0
  %2201 = vdwg.mxu0
  %vm2202 = vcmask 31744
  %v2203 = vsel %vm2202, %v2188, -inf
  %v2204 = vrot.slane %v2203, 4
  %v2205 = vmax.f32 %v2203, %v2204
  %v2206 = vrot.slane %v2205, 2
  %v2207 = vmax.f32 %v2205, %v2206
  %v2208 = vrot.slane %v2207, 1
  %v2209 = vmax.f32 %v2207, %v2208
  %v2210 = vsel %vm2202, %v2191, -inf
  %v2211 = vrot.slane %v2210, 4
  %v2212 = vmax.f32 %v2210, %v2211
  %v2213 = vrot.slane %v2212, 2
  %v2214 = vmax.f32 %v2212, %v2213
  %v2215 = vrot.slane %v2214, 1
  %v2216 = vmax.f32 %v2214, %v2215
  %v2217 = vsel %vm2202, %v2196, -inf
  %v2218 = vrot.slane %v2217, 4
  %v2219 = vmax.f32 %v2217, %v2218
  %v2220 = vrot.slane %v2219, 2
  %v2221 = vmax.f32 %v2219, %v2220
  %v2222 = vrot.slane %v2221, 1
  %v2223 = vmax.f32 %v2221, %v2222
  %v2224 = vsel %vm2202, %v2199, -inf
  %v2225 = vrot.slane %v2224, 4
  %v2226 = vmax.f32 %v2224, %v2225
  %v2227 = vrot.slane %v2226, 2
  %v2228 = vmax.f32 %v2226, %v2227
  %v2229 = vrot.slane %v2228, 1
  %v2230 = vmax.f32 %v2228, %v2229
  %v2231 = vsub.f32 %v2188, %v2209
  %v2232 = vsub.f32 %v2191, %v2216
  %v2233 = vsub.f32 %v2196, %v2223
  %v2234 = vsub.f32 %v2199, %v2230
  %v2235 = vmul.f32 %v2231, 1.442695
  %v2236 = vpow.pop %v2235
  %v2237 = vmul.f32 %v2232, 1.442695
  %v2238 = vpow.pop %v2237
  %v2239 = vmul.f32 %v2233, 1.442695
  %v2240 = vpow.pop %v2239
  %v2241 = vmul.f32 %v2234, 1.442695
  %v2242 = vpow.pop %v2241
  %v2243 = vsel %vm2202, %v2236, 0.0
  %v2244 = vrot.slane %v2243, 4
  %v2245 = vadd.f32 %v2243, %v2244
  %v2246 = vrot.slane %v2245, 2
  %v2247 = vadd.f32 %v2245, %v2246
  %v2248 = vrot.slane %v2247, 1
  %v2249 = vadd.f32 %v2247, %v2248
  %v2250 = vsel %vm2202, %v2238, 0.0
  %v2251 = vrot.slane %v2250, 4
  %v2252 = vadd.f32 %v2250, %v2251
  %v2253 = vrot.slane %v2252, 2
  %v2254 = vadd.f32 %v2252, %v2253
  %v2255 = vrot.slane %v2254, 1
  %v2256 = vadd.f32 %v2254, %v2255
  %v2257 = vsel %vm2202, %v2240, 0.0
  %v2258 = vrot.slane %v2257, 4
  %v2259 = vadd.f32 %v2257, %v2258
  %v2260 = vrot.slane %v2259, 2
  %v2261 = vadd.f32 %v2259, %v2260
  %v2262 = vrot.slane %v2261, 1
  %v2263 = vadd.f32 %v2261, %v2262
  %v2264 = vsel %vm2202, %v2242, 0.0
  %v2265 = vrot.slane %v2264, 4
  %v2266 = vadd.f32 %v2264, %v2265
  %v2267 = vrot.slane %v2266, 2
  %v2268 = vadd.f32 %v2266, %v2267
  %v2269 = vrot.slane %v2268, 1
  %v2270 = vadd.f32 %v2268, %v2269
  %v2271 = vrcp.pop %v2249
  %v2272 = vrcp.pop %v2256
  %v2273 = vrcp.pop %v2263
  %v2274 = vrcp.pop %v2270
  %v2275 = vmul.f32 %v2236, %v2271
  %v2276 = vmul.f32 %v2238, %v2272
  %v2277 = vmul.f32 %v2240, %v2273
  %v2278 = vmul.f32 %v2242, %v2274
  %v2279 = vpack.c.bf16 %v2276, %v2275
  %v2280 = vpack.c.bf16 %v2278, %v2277
  %v2282 = vsel %vm2202, %v2279, 0
  %v2285 = vsel %vm2202, %v2280, 0
  %vm2287 = vcmask 1041408
  %v2289 = vsel %vm2287, %v2002, 0
  %2291 = vmatprep.subr.bf16.mxu0 0
  %2292 = vmatpush1.bf16.msra.mxu0 0
  %2293 = vmatprep.subr.bf16.mxu0 0
  %2294 = vmatpush1.bf16.msra.mxu0 0
  %2295 = vmatprep.subr.bf16.mxu0 0
  %2296 = vmatpush1.bf16.msra.mxu0 0
  %2297 = vmatprep.subr.bf16.mxu0 0
  %2298 = vmatpush1.bf16.msra.mxu0 0
  %2299 = vmatprep.subr.bf16.mxu0 0
  %2300 = vmatpush1.bf16.msra.mxu0 0
  %2301 = vmatprep.subr.bf16.mxu0 0
  %2302 = vmatpush1.bf16.msra.mxu0 0
  %2303 = vmatprep.subr.bf16.mxu0 0
  %2304 = vmatpush1.bf16.msra.mxu0 0
  %2305 = vmatprep.subr.bf16.mxu0 0
  %2306 = vmatpush1.bf16.msra.mxu0 %v2289
  %2307 = vmatprep.subr.bf16.mxu0 0
  %2308 = vmatpush2.bf16.msra.mxu0 0
  %2309 = vmatprep.subr.bf16.mxu0 0
  %2310 = vmatpush2.bf16.msra.mxu0 0
  %2311 = vmatprep.subr.bf16.mxu0 0
  %2312 = vmatpush2.bf16.msra.mxu0 0
  %2313 = vmatprep.subr.bf16.mxu0 0
  %2314 = vmatpush2.bf16.msra.mxu0 0
  %2315 = vmatprep.subr.bf16.mxu0 0
  %2316 = vmatpush2.bf16.msra.mxu0 0
  %2317 = vmatprep.subr.bf16.mxu0 0
  %2318 = vmatpush2.bf16.msra.mxu0 0
  %2319 = vmatprep.subr.bf16.mxu0 0
  %2320 = vmatpush2.bf16.msra.mxu0 0
  %2321 = vmatprep.subr.bf16.mxu0 0
  %2322 = vmatpush2.bf16.msra.mxu0 0
  %2323 = vmatprep.mubr.bf16.mxu0 0
  %2324 = vmatmul.mubr.bf16.gmra.mxu0 %v2282
  %v2325 = vpop.f32.mrf.mxu0
  %v2326 = vadd.f32 0.0, %v2325
  %v2327 = vpop.f32.mrf.mxu0
  %v2328 = vpop.f32.mrf.mxu0
  %v2329 = vadd.f32 0.0, %v2328
  %v2330 = vpop.f32.mrf.mxu0
  %2331 = vmatprep.mubr.bf16.mxu0 0
  %2332 = vmatmul.mubr.bf16.gmra.mxu0 %v2285
  %v2333 = vpop.f32.mrf.mxu0
  %v2334 = vadd.f32 0.0, %v2333
  %v2335 = vpop.f32.mrf.mxu0
  %v2336 = vpop.f32.mrf.mxu0
  %v2337 = vadd.f32 0.0, %v2336
  %v2338 = vpop.f32.mrf.mxu0
  %2339 = vdwg.mxu0
  %2344 = vrot.lane.b32.xlu0 %v1948, 96
  %v2345 = vpop.permute.xlu0 %2344
  %2346 = vrot.lane.b32.xlu0 %v1951, 96
  %v2347 = vpop.permute.xlu0 %2346
  %2348 = vrot.lane.b32.xlu0 %v1956, 96
  %v2349 = vpop.permute.xlu0 %2348
  %2350 = vrot.lane.b32.xlu0 %v1959, 96
  %v2351 = vpop.permute.xlu0 %2350
  %v2356 = vmul.f32 %v2326, %v2345
  %v2357 = vmul.f32 %v2329, %v2347
  %v2358 = vmul.f32 %v2334, %v2349
  %v2359 = vmul.f32 %v2337, %v2351
  %v2360 = vsel %vm77, %v2356, 0.0
  %v2361 = vrot.slane %v2360, 4
  %v2362 = vadd.f32 %v2360, %v2361
  %v2363 = vrot.slane %v2362, 2
  %v2364 = vadd.f32 %v2362, %v2363
  %v2365 = vrot.slane %v2364, 1
  %v2366 = vadd.f32 %v2364, %v2365
  %v2367 = vsel %vm77, %v2357, 0.0
  %v2368 = vrot.slane %v2367, 4
  %v2369 = vadd.f32 %v2367, %v2368
  %v2370 = vrot.slane %v2369, 2
  %v2371 = vadd.f32 %v2369, %v2370
  %v2372 = vrot.slane %v2371, 1
  %v2373 = vadd.f32 %v2371, %v2372
  %v2374 = vsel %vm77, %v2358, 0.0
  %v2375 = vrot.slane %v2374, 4
  %v2376 = vadd.f32 %v2374, %v2375
  %v2377 = vrot.slane %v2376, 2
  %v2378 = vadd.f32 %v2376, %v2377
  %v2379 = vrot.slane %v2378, 1
  %v2380 = vadd.f32 %v2378, %v2379
  %v2381 = vsel %vm77, %v2359, 0.0
  %v2382 = vrot.slane %v2381, 4
  %v2383 = vadd.f32 %v2381, %v2382
  %v2384 = vrot.slane %v2383, 2
  %v2385 = vadd.f32 %v2383, %v2384
  %v2386 = vrot.slane %v2385, 1
  %v2387 = vadd.f32 %v2385, %v2386
  %v2392 = vsel %vm338, %v2373, %v2366
  %v2393 = vsel %vm341, %v2380, %v2392
  %v2394 = vsel %vm344, %v2387, %v2393
  %2395 = vrot.lane.b32.xlu0 %v2394, 32
  %v2396 = vpop.permute.xlu0 %2395
  %v2398 = vrot.slane %v1853, 7
  %v2399 = vrot.slane %v1854, 6
  %v2400 = vsel %vm338, %v2399, %v2398
  %v2401 = vrot.slane %v1855, 5
  %v2402 = vsel %vm341, %v2401, %v2400
  %v2403 = vrot.slane %v1856, 4
  %v2404 = vsel %vm344, %v2403, %v2402
  %2405 = vrot.lane.b32.xlu0 %v2404, 96
  %v2406 = vpop.permute.xlu0 %2405
  %v2408 = vsel %vm77, %v2007, %v2396
  %vm2409 = vcmask 523264
  %v2410 = vsel %vm2409, %v2408, %v2406
  %v2411 = vpack.c.bf16 %v2410, %v2410
  %v2412 = vld [vmem:[%s9] sm:$0xf]
  %v2413 = vld [vmem:[%s9 + $0x4] sm:$0xf]
  %v2414 = vld [vmem:[%s9 + $0x8] sm:$0xf]
  %v2415 = vld [vmem:[%s9 + $0xc] sm:$0xf]
  %v2416 = vld [vmem:[%s9 + $0x10] sm:$0xf]
  %v2417 = vld [vmem:[%s9 + $0x14] sm:$0xf]
  %v2418 = vld [vmem:[%s9 + $0x18] sm:$0xf]
  %v2419 = vld [vmem:[%s9 + $0x1c] sm:$0xf]
  %v2420 = vld [vmem:[%s9 + $0x20] sm:$0xf]
  %v2421 = vld [vmem:[%s9 + $0x24] sm:$0xf]
  %v2422 = vld [vmem:[%s9 + $0x28] sm:$0xf]
  %v2423 = vld [vmem:[%s9 + $0x2c] sm:$0xf]
  %v2424 = vld [vmem:[%s10] sm:$0x1]
  %v2426 = vlaneseq
  %v2427 = vshrl.u32 %v2426, 7
  %v2428 = vsub.s32 0, %v2427
  %v2429 = vrot.slane %v2424, %v2428
  %v2443 = vunpack.c.l.b16 %v2412
  %v2444 = vunpack.c.l.b16 %v2413
  %v2445 = vunpack.c.l.b16 %v2414
  %v2446 = vunpack.c.l.b16 %v2415
  %v2447 = vunpack.c.l.b16 %v2416
  %v2448 = vunpack.c.l.b16 %v2417
  %v2449 = vunpack.c.l.b16 %v2418
  %v2450 = vunpack.c.l.b16 %v2419
  %v2451 = vunpack.c.l.b16 %v2420
  %v2452 = vunpack.c.l.b16 %v2421
  %v2453 = vunpack.c.l.b16 %v2422
  %v2454 = vunpack.c.l.b16 %v2423
  %v2455 = vpack.c.b16 %v2444, %v2443
  %v2456 = vpack.c.b16 %v2446, %v2445
  %v2457 = vpack.c.b16 %v2448, %v2447
  %v2458 = vpack.c.b16 %v2450, %v2449
  %v2459 = vpack.c.b16 %v2452, %v2451
  %v2460 = vpack.c.b16 %v2454, %v2453
  %vm2467 = vcmask 785408
  %v2469 = vsel %vm2467, %v2411, 0
  %2471 = vmatprep.subr.bf16.mxu0 0
  %2472 = vmatpush1.bf16.msra.mxu0 0
  %2473 = vmatprep.subr.bf16.mxu0 0
  %2474 = vmatpush1.bf16.msra.mxu0 0
  %2475 = vmatprep.subr.bf16.mxu0 0
  %2476 = vmatpush1.bf16.msra.mxu0 %v2460
  %2477 = vmatprep.subr.bf16.mxu0 0
  %2478 = vmatpush1.bf16.msra.mxu0 %v2459
  %2479 = vmatprep.subr.bf16.mxu0 0
  %2480 = vmatpush1.bf16.msra.mxu0 %v2458
  %2481 = vmatprep.subr.bf16.mxu0 0
  %2482 = vmatpush1.bf16.msra.mxu0 %v2457
  %2483 = vmatprep.subr.bf16.mxu0 0
  %2484 = vmatpush1.bf16.msra.mxu0 %v2456
  %2485 = vmatprep.subr.bf16.mxu0 0
  %2486 = vmatpush1.bf16.msra.mxu0 %v2455
  %2487 = vmatprep.subr.bf16.mxu0 0
  %2488 = vmatpush2.bf16.msra.mxu0 0
  %2489 = vmatprep.subr.bf16.mxu0 0
  %2490 = vmatpush2.bf16.msra.mxu0 0
  %2491 = vmatprep.subr.bf16.mxu0 0
  %2492 = vmatpush2.bf16.msra.mxu0 0
  %2493 = vmatprep.subr.bf16.mxu0 0
  %2494 = vmatpush2.bf16.msra.mxu0 0
  %2495 = vmatprep.subr.bf16.mxu0 0
  %2496 = vmatpush2.bf16.msra.mxu0 0
  %2497 = vmatprep.subr.bf16.mxu0 0
  %2498 = vmatpush2.bf16.msra.mxu0 0
  %2499 = vmatprep.subr.bf16.mxu0 0
  %2500 = vmatpush2.bf16.msra.mxu0 0
  %2501 = vmatprep.subr.bf16.mxu0 0
  %2502 = vmatpush2.bf16.msra.mxu0 0
  %2503 = vmatprep.mubr.bf16.mxu0 0
  %2504 = vmatmul.mubr.bf16.gmra.mxu0 %v2469
  %v2505 = vpop.f32.mrf.mxu0
  %v2506 = vadd.f32 %v2429, %v2505
  %v2507 = vpop.f32.mrf.mxu0
  %v2508 = vpop.f32.mrf.mxu0
  %v2509 = vpop.f32.mrf.mxu0
  %2510 = vdwg.mxu0
  %v2511 = vxor.u32 %v2506, 2147483648
  %v2512 = vmul.f32 %v2511, 1.442695
  %v2513 = vpow.pop %v2512
  %v2514 = vadd.f32 %v2513, 1.0
  %v2515 = vrcp.pop %v2514
  %v2516 = vmul.f32 1.0, %v2515
  %v2517 = vtanh.pop %v2506
  %v2522 = vrot.slane %v1829, 7
  %v2523 = vrot.slane %v1830, 6
  %v2524 = vsel %vm338, %v2523, %v2522
  %v2525 = vrot.slane %v1831, 5
  %v2526 = vsel %vm341, %v2525, %v2524
  %v2527 = vrot.slane %v1832, 4
  %v2528 = vsel %vm344, %v2527, %v2526
  %v2530 = vmul.f32 %v2516, %v2528
  %2532 = vrot.lane.b32.xlu0 %v2517, 64
  %v2533 = vpop.permute.xlu0 %2532
  %v2535 = vmul.f32 %v2516, %v2533
  %2537 = vrot.lane.b32.xlu0 %v2535, 32
  %v2538 = vpop.permute.xlu0 %2537
  %v2540 = vadd.f32 %v2530, %v2538
  %v2541 = vtanh.pop %v2540
  %2543 = vrot.lane.b32.xlu0 %v2541, 64
  %v2544 = vpop.permute.xlu0 %2543
  %v2546 = vmul.f32 %v2516, %v2544
  %2548 = vrot.lane.b32.xlu0 %v2546, 32
  %v2549 = vpop.permute.xlu0 %2548
  %v2551 = vsel %vm77, %v2549, %v2396
  %v2552 = vpack.c.bf16 %v2551, %v2551
  %v2553 = vld [vmem:[%s11] sm:$0xf]
  %v2554 = vld [vmem:[%s11 + $0x4] sm:$0xf]
  %v2555 = vld [vmem:[%s11 + $0x8] sm:$0xf]
  %v2556 = vld [vmem:[%s11 + $0xc] sm:$0xf]
  %v2557 = vld [vmem:[%s11 + $0x10] sm:$0xf]
  %v2558 = vld [vmem:[%s11 + $0x14] sm:$0xf]
  %v2559 = vld [vmem:[%s11 + $0x18] sm:$0xf]
  %v2560 = vld [vmem:[%s11 + $0x1c] sm:$0xf]
  %v2561 = vld [vmem:[%s12] sm:$0x1]
  %v2563 = vlaneseq
  %v2564 = vshrl.u32 %v2563, 7
  %v2565 = vsub.s32 0, %v2564
  %v2566 = vrot.slane %v2561, %v2565
  %v2576 = vunpack.c.l.b16 %v2553
  %v2577 = vunpack.c.l.b16 %v2554
  %v2578 = vunpack.c.l.b16 %v2555
  %v2579 = vunpack.c.l.b16 %v2556
  %v2580 = vunpack.c.l.b16 %v2557
  %v2581 = vunpack.c.l.b16 %v2558
  %v2582 = vunpack.c.l.b16 %v2559
  %v2583 = vunpack.c.l.b16 %v2560
  %v2584 = vpack.c.b16 %v2577, %v2576
  %v2585 = vpack.c.b16 %v2579, %v2578
  %v2586 = vpack.c.b16 %v2581, %v2580
  %v2587 = vpack.c.b16 %v2583, %v2582
  %v2593 = vsel %vm2409, %v2552, 0
  %2595 = vmatprep.subr.bf16.mxu0 0
  %2596 = vmatpush1.bf16.msra.mxu0 0
  %2597 = vmatprep.subr.bf16.mxu0 0
  %2598 = vmatpush1.bf16.msra.mxu0 0
  %2599 = vmatprep.subr.bf16.mxu0 0
  %2600 = vmatpush1.bf16.msra.mxu0 0
  %2601 = vmatprep.subr.bf16.mxu0 0
  %2602 = vmatpush1.bf16.msra.mxu0 0
  %2603 = vmatprep.subr.bf16.mxu0 0
  %2604 = vmatpush1.bf16.msra.mxu0 %v2587
  %2605 = vmatprep.subr.bf16.mxu0 0
  %2606 = vmatpush1.bf16.msra.mxu0 %v2586
  %2607 = vmatprep.subr.bf16.mxu0 0
  %2608 = vmatpush1.bf16.msra.mxu0 %v2585
  %2609 = vmatprep.subr.bf16.mxu0 0
  %2610 = vmatpush1.bf16.msra.mxu0 %v2584
  %2611 = vmatprep.subr.bf16.mxu0 0
  %2612 = vmatpush2.bf16.msra.mxu0 0
  %2613 = vmatprep.subr.bf16.mxu0 0
  %2614 = vmatpush2.bf16.msra.mxu0 0
  %2615 = vmatprep.subr.bf16.mxu0 0
  %2616 = vmatpush2.bf16.msra.mxu0 0
  %2617 = vmatprep.subr.bf16.mxu0 0
  %2618 = vmatpush2.bf16.msra.mxu0 0
  %2619 = vmatprep.subr.bf16.mxu0 0
  %2620 = vmatpush2.bf16.msra.mxu0 0
  %2621 = vmatprep.subr.bf16.mxu0 0
  %2622 = vmatpush2.bf16.msra.mxu0 0
  %2623 = vmatprep.subr.bf16.mxu0 0
  %2624 = vmatpush2.bf16.msra.mxu0 0
  %2625 = vmatprep.subr.bf16.mxu0 0
  %2626 = vmatpush2.bf16.msra.mxu0 0
  %2627 = vmatprep.mubr.bf16.mxu0 0
  %2628 = vmatmul.mubr.bf16.gmra.mxu0 %v2593
  %v2629 = vpop.f32.mrf.mxu0
  %v2630 = vadd.f32 %v2566, %v2629
  %v2631 = vpop.f32.mrf.mxu0
  %v2632 = vpop.f32.mrf.mxu0
  %v2633 = vpop.f32.mrf.mxu0
  %2634 = vdwg.mxu0
  %v2637 = vunpack.c.l.s4 1966171168
  %v2638 = vunpack.c.0.s8 %v2637
  %v2639 = vlaneseq
  %v2640 = vshrl.u32 %v2639, 7
  %v2641 = vsub.s32 %v2638, %v2640
  %v2642 = vrot.slane %v2630, %v2641
  %v2643 = vcombine.high %v2642, %v2642
  %v2645 = vunpack.c.l.s4 1966171168
  %v2646 = vunpack.c.0.s8 %v2645
  %v2647 = vlaneseq
  %v2648 = vshrl.u32 %v2647, 7
  %v2649 = vsub.s32 %v2646, %v2648
  %v2650 = vrot.slane %v2642, %v2649
  %v2652 = vunpack.c.l.s4 1966171168
  %v2653 = vunpack.c.0.s8 %v2652
  %v2654 = vlaneseq
  %v2655 = vshrl.u32 %v2654, 7
  %v2656 = vsub.s32 %v2653, %v2655
  %v2657 = vrot.slane %v2643, %v2656
  %v2658 = vcombine.high %v2650, %v2650
  %v2659 = vcombine.high %v2657, %v2657
  %2664 = vst [vmem:[%s14 + $0x1] sm:$0x1] %v2650
  %2665 = vst [vmem:[%s14 + $0x9] sm:$0x1] %v2657
  %2666 = vst [vmem:[%s14 + $0x11] sm:$0x1] %v2658
  %2667 = vst [vmem:[%s14 + $0x19] sm:$0x1] %v2659
  %vm2668 = vcmask 1043456
  %v2669 = vsel %vm2668, %v2630, -inf
  %2670 = vmax.xlane.f32.xlu0 %v2669
  %v2671 = vpop.xlane.xlu0 %2670
  %vm2672 = vcmp.eq.f32.partialorder %v2630, %v2671
  %v2673 = vsel %vm2672, %v1968, 128
  %v2674 = vsel %vm2668, %v2673, 2147483647
  %v2675 = vand.u32 %v2674, 65535
  %v2676 = vshra.s32 %v2674, 16
  %v2677 = vcvt.s32.f32 %v2675
  %v2678 = vcvt.s32.f32 %v2676
  %2679 = vmin.xlane.f32.xlu0 %v2678
  %v2680 = vpop.xlane.xlu0 %2679
  %vm2681 = vcmp.eq.f32.partialorder %v2678, %v2680
  %v2682 = vsel %vm2681, %v2677, inf
  %2683 = vmin.xlane.f32.xlu0 %v2682
  %v2684 = vpop.xlane.xlu0 %2683
  %v2685 = vcvt.f32.s32 %v2684
  %v2686 = vcvt.f32.s32 %v2680
  %v2687 = vshll.u32 %v2686, 16
  %v2688 = vadd.s32 %v2687, %v2685
  %vm2689 = vcmp.eq.s32.totalorder %v1968, %v2688
  %v2690 = vsel %vm2689, 1, 0
  %v2691 = vcvt.s32.f32 %v2690
  %v2692 = vpack.c.bf16 %v2691, %v2691
  %v2693 = vld [vmem:[%s13] sm:$0xf]
  %v2694 = vld [vmem:[%s13 + $0x4] sm:$0xf]
  %v2695 = vld [vmem:[%s13 + $0x8] sm:$0xf]
  %v2696 = vld [vmem:[%s13 + $0xc] sm:$0xf]
  %v2697 = vld [vmem:[%s13 + $0x10] sm:$0xf]
  %v2698 = vld [vmem:[%s13 + $0x14] sm:$0xf]
  %v2699 = vld [vmem:[%s13 + $0x18] sm:$0xf]
  %v2700 = vld [vmem:[%s13 + $0x1c] sm:$0xf]
  %v2701 = vld [vmem:[%s13 + $0x20] sm:$0xf]
  %v2702 = vld [vmem:[%s13 + $0x24] sm:$0xf]
  %v2703 = vld [vmem:[%s13 + $0x28] sm:$0xf]
  %v2704 = vld [vmem:[%s13 + $0x2c] sm:$0xf]
  %v2705 = vld [vmem:[%s13 + $0x30] sm:$0xf]
  %v2706 = vld [vmem:[%s13 + $0x34] sm:$0xf]
  %v2707 = vld [vmem:[%s13 + $0x38] sm:$0xf]
  %v2708 = vld [vmem:[%s13 + $0x3c] sm:$0xf]
  %v2725 = vunpack.c.l.b16 %v2693
  %v2726 = vunpack.c.l.b16 %v2694
  %v2727 = vunpack.c.l.b16 %v2695
  %v2728 = vunpack.c.l.b16 %v2696
  %v2729 = vunpack.c.l.b16 %v2697
  %v2730 = vunpack.c.l.b16 %v2698
  %v2731 = vunpack.c.l.b16 %v2699
  %v2732 = vunpack.c.l.b16 %v2700
  %v2733 = vunpack.c.l.b16 %v2701
  %v2734 = vunpack.c.l.b16 %v2702
  %v2735 = vunpack.c.l.b16 %v2703
  %v2736 = vunpack.c.l.b16 %v2704
  %v2737 = vunpack.c.l.b16 %v2705
  %v2738 = vunpack.c.l.b16 %v2706
  %v2739 = vunpack.c.l.b16 %v2707
  %v2740 = vunpack.c.l.b16 %v2708
  %v2741 = vpack.c.b16 %v2726, %v2725
  %v2742 = vpack.c.b16 %v2728, %v2727
  %v2743 = vpack.c.b16 %v2730, %v2729
  %v2744 = vpack.c.b16 %v2732, %v2731
  %v2745 = vpack.c.b16 %v2734, %v2733
  %v2746 = vpack.c.b16 %v2736, %v2735
  %v2747 = vpack.c.b16 %v2738, %v2737
  %v2748 = vpack.c.b16 %v2740, %v2739
  %2757 = vmatprep.subr.bf16.mxu0 0
  %2758 = vmatpush1.bf16.msra.mxu0 %v2748
  %2759 = vmatprep.subr.bf16.mxu0 0
  %2760 = vmatpush1.bf16.msra.mxu0 %v2747
  %2761 = vmatprep.subr.bf16.mxu0 0
  %2762 = vmatpush1.bf16.msra.mxu0 %v2746
  %2763 = vmatprep.subr.bf16.mxu0 0
  %2764 = vmatpush1.bf16.msra.mxu0 %v2745
  %2765 = vmatprep.subr.bf16.mxu0 0
  %2766 = vmatpush1.bf16.msra.mxu0 %v2744
  %2767 = vmatprep.subr.bf16.mxu0 0
  %2768 = vmatpush1.bf16.msra.mxu0 %v2743
  %2769 = vmatprep.subr.bf16.mxu0 0
  %2770 = vmatpush1.bf16.msra.mxu0 %v2742
  %2771 = vmatprep.subr.bf16.mxu0 0
  %2772 = vmatpush1.bf16.msra.mxu0 %v2741
  %2773 = vmatprep.subr.bf16.mxu0 0
  %2774 = vmatpush2.bf16.msra.mxu0 0
  %2775 = vmatprep.subr.bf16.mxu0 0
  %2776 = vmatpush2.bf16.msra.mxu0 0
  %2777 = vmatprep.subr.bf16.mxu0 0
  %2778 = vmatpush2.bf16.msra.mxu0 0
  %2779 = vmatprep.subr.bf16.mxu0 0
  %2780 = vmatpush2.bf16.msra.mxu0 0
  %2781 = vmatprep.subr.bf16.mxu0 0
  %2782 = vmatpush2.bf16.msra.mxu0 0
  %2783 = vmatprep.subr.bf16.mxu0 0
  %2784 = vmatpush2.bf16.msra.mxu0 0
  %2785 = vmatprep.subr.bf16.mxu0 0
  %2786 = vmatpush2.bf16.msra.mxu0 0
  %2787 = vmatprep.subr.bf16.mxu0 0
  %2788 = vmatpush2.bf16.msra.mxu0 0
  %2789 = vmatprep.mubr.bf16.mxu0 0
  %2790 = vmatmul.mubr.bf16.gmra.mxu0 %v2692
  %v2791 = vpop.f32.mrf.mxu0
  %v2792 = vadd.f32 0.0, %v2791
  %v2793 = vpop.f32.mrf.mxu0
  %v2794 = vpop.f32.mrf.mxu0
  %v2795 = vpop.f32.mrf.mxu0
  %2796 = vdwg.mxu0
  %v2797 = vpack.c.bf16 %v2546, %v2546
  %v2798 = vld [vmem:[%s5] sm:$0xf]
  %v2799 = vld [vmem:[%s5 + $0x4] sm:$0xf]
  %v2800 = vld [vmem:[%s5 + $0x8] sm:$0xf]
  %v2801 = vld [vmem:[%s5 + $0xc] sm:$0xf]
  %v2802 = vld [vmem:[%s6] sm:$0x1]
  %v2804 = vlaneseq
  %v2805 = vshrl.u32 %v2804, 7
  %v2806 = vsub.s32 0, %v2805
  %v2807 = vrot.slane %v2802, %v2806
  %2810 = vrot.lane.b32.xlu0 %v2797, 32
  %v2811 = vpop.permute.xlu0 %2810
  %v2816 = vunpack.c.l.b16 %v2798
  %v2817 = vunpack.c.l.b16 %v2799
  %v2818 = vunpack.c.l.b16 %v2800
  %v2819 = vunpack.c.l.b16 %v2801
  %v2820 = vpack.c.b16 %v2817, %v2816
  %v2821 = vpack.c.b16 %v2819, %v2818
  %v2825 = vsel %vm77, %v2811, 0
  %2827 = vmatprep.subr.bf16.mxu0 0
  %2828 = vmatpush1.bf16.msra.mxu0 0
  %2829 = vmatprep.subr.bf16.mxu0 0
  %2830 = vmatpush1.bf16.msra.mxu0 0
  %2831 = vmatprep.subr.bf16.mxu0 0
  %2832 = vmatpush1.bf16.msra.mxu0 0
  %2833 = vmatprep.subr.bf16.mxu0 0
  %2834 = vmatpush1.bf16.msra.mxu0 0
  %2835 = vmatprep.subr.bf16.mxu0 0
  %2836 = vmatpush1.bf16.msra.mxu0 0
  %2837 = vmatprep.subr.bf16.mxu0 0
  %2838 = vmatpush1.bf16.msra.mxu0 0
  %2839 = vmatprep.subr.bf16.mxu0 0
  %2840 = vmatpush1.bf16.msra.mxu0 %v2821
  %2841 = vmatprep.subr.bf16.mxu0 0
  %2842 = vmatpush1.bf16.msra.mxu0 %v2820
  %2843 = vmatprep.subr.bf16.mxu0 0
  %2844 = vmatpush2.bf16.msra.mxu0 0
  %2845 = vmatprep.subr.bf16.mxu0 0
  %2846 = vmatpush2.bf16.msra.mxu0 0
  %2847 = vmatprep.subr.bf16.mxu0 0
  %2848 = vmatpush2.bf16.msra.mxu0 0
  %2849 = vmatprep.subr.bf16.mxu0 0
  %2850 = vmatpush2.bf16.msra.mxu0 0
  %2851 = vmatprep.subr.bf16.mxu0 0
  %2852 = vmatpush2.bf16.msra.mxu0 0
  %2853 = vmatprep.subr.bf16.mxu0 0
  %2854 = vmatpush2.bf16.msra.mxu0 0
  %2855 = vmatprep.subr.bf16.mxu0 0
  %2856 = vmatpush2.bf16.msra.mxu0 0
  %2857 = vmatprep.subr.bf16.mxu0 0
  %2858 = vmatpush2.bf16.msra.mxu0 0
  %2859 = vmatprep.mubr.bf16.mxu0 0
  %2860 = vmatmul.mubr.bf16.gmra.mxu0 %v2825
  %v2861 = vpop.f32.mrf.mxu0
  %v2862 = vadd.f32 %v2807, %v2861
  %v2863 = vpop.f32.mrf.mxu0
  %v2864 = vpop.f32.mrf.mxu0
  %v2865 = vpop.f32.mrf.mxu0
  %2866 = vdwg.mxu0
  %v2869 = vunpack.c.l.s4 1966171168
  %v2870 = vunpack.c.0.s8 %v2869
  %v2871 = vlaneseq
  %v2872 = vshrl.u32 %v2871, 7
  %v2873 = vsub.s32 %v2870, %v2872
  %v2874 = vrot.slane %v2862, %v2873
  %v2875 = vcombine.high %v2874, %v2874
  %v2877 = vunpack.c.l.s4 1966171168
  %v2878 = vunpack.c.0.s8 %v2877
  %v2879 = vlaneseq
  %v2880 = vshrl.u32 %v2879, 7
  %v2881 = vsub.s32 %v2878, %v2880
  %v2882 = vrot.slane %v2874, %v2881
  %v2884 = vunpack.c.l.s4 1966171168
  %v2885 = vunpack.c.0.s8 %v2884
  %v2886 = vlaneseq
  %v2887 = vshrl.u32 %v2886, 7
  %v2888 = vsub.s32 %v2885, %v2887
  %v2889 = vrot.slane %v2875, %v2888
  %v2890 = vcombine.high %v2882, %v2882
  %v2891 = vcombine.high %v2889, %v2889
  %v2892 = vlaneseq
  %v2893 = vshrl.u32 %v2892, 7
  %v2894 = vsub.s32 0, %v2893
  %v2895 = vrot.slane %v2882, %v2894
  %v2896 = vlaneseq
  %v2897 = vshrl.u32 %v2896, 7
  %v2898 = vsub.s32 0, %v2897
  %v2899 = vrot.slane %v2889, %v2898
  %v2900 = vlaneseq
  %v2901 = vshrl.u32 %v2900, 7
  %v2902 = vsub.s32 0, %v2901
  %v2903 = vrot.slane %v2890, %v2902
  %v2904 = vlaneseq
  %v2905 = vshrl.u32 %v2904, 7
  %v2906 = vsub.s32 0, %v2905
  %v2907 = vrot.slane %v2891, %v2906
  %v2912 = vmul.f32 %v2895, %v1948
  %v2913 = vmul.f32 %v2899, %v1951
  %v2914 = vmul.f32 %v2903, %v1956
  %v2915 = vmul.f32 %v2907, %v1959
  %v2916 = vpack.c.bf16 %v2913, %v2912
  %v2917 = vpack.c.bf16 %v2915, %v2914
  %v2919 = vsel %vm77, %v2916, 0
  %v2922 = vsel %vm77, %v2917, 0
  %2924 = vmatprep.subr.bf16.mxu0 0
  %2925 = vmatpush1.bf16.msra.mxu0 0
  %2926 = vmatprep.subr.bf16.mxu0 0
  %2927 = vmatpush1.bf16.msra.mxu0 0
  %2928 = vmatprep.subr.bf16.mxu0 0
  %2929 = vmatpush1.bf16.msra.mxu0 0
  %2930 = vmatprep.subr.bf16.mxu0 0
  %2931 = vmatpush1.bf16.msra.mxu0 0
  %2932 = vmatprep.subr.bf16.mxu0 0
  %2933 = vmatpush1.bf16.msra.mxu0 0
  %2934 = vmatprep.subr.bf16.mxu0 0
  %2935 = vmatpush1.bf16.msra.mxu0 0
  %2936 = vmatprep.subr.bf16.mxu0 0
  %2937 = vmatpush1.bf16.msra.mxu0 %v1993
  %2938 = vmatprep.subr.bf16.mxu0 0
  %2939 = vmatpush1.bf16.msra.mxu0 %v1992
  %2940 = vmatprep.subr.bf16.mxu0 0
  %2941 = vmatpush2.bf16.msra.mxu0 0
  %2942 = vmatprep.subr.bf16.mxu0 0
  %2943 = vmatpush2.bf16.msra.mxu0 0
  %2944 = vmatprep.subr.bf16.mxu0 0
  %2945 = vmatpush2.bf16.msra.mxu0 0
  %2946 = vmatprep.subr.bf16.mxu0 0
  %2947 = vmatpush2.bf16.msra.mxu0 0
  %2948 = vmatprep.subr.bf16.mxu0 0
  %2949 = vmatpush2.bf16.msra.mxu0 0
  %2950 = vmatprep.subr.bf16.mxu0 0
  %2951 = vmatpush2.bf16.msra.mxu0 0
  %2952 = vmatprep.subr.bf16.mxu0 0
  %2953 = vmatpush2.bf16.msra.mxu0 0
  %2954 = vmatprep.subr.bf16.mxu0 0
  %2955 = vmatpush2.bf16.msra.mxu0 0
  %2956 = vmatprep.mubr.bf16.mxu0 0
  %2957 = vmatmul.mubr.bf16.gmra.mxu0 %v2919
  %v2958 = vpop.f32.mrf.mxu0
  %v2959 = vadd.f32 0.0, %v2958
  %v2960 = vpop.f32.mrf.mxu0
  %v2961 = vpop.f32.mrf.mxu0
  %v2962 = vadd.f32 0.0, %v2961
  %v2963 = vpop.f32.mrf.mxu0
  %2964 = vmatprep.mubr.bf16.mxu0 0
  %2965 = vmatmul.mubr.bf16.gmra.mxu0 %v2922
  %v2966 = vpop.f32.mrf.mxu0
  %v2967 = vadd.f32 0.0, %v2966
  %v2968 = vpop.f32.mrf.mxu0
  %v2969 = vpop.f32.mrf.mxu0
  %v2970 = vadd.f32 0.0, %v2969
  %v2971 = vpop.f32.mrf.mxu0
  %2972 = vdwg.mxu0
  %v2973 = vsel %vm2202, %v2959, -inf
  %v2974 = vrot.slane %v2973, 4
  %v2975 = vmax.f32 %v2973, %v2974
  %v2976 = vrot.slane %v2975, 2
  %v2977 = vmax.f32 %v2975, %v2976
  %v2978 = vrot.slane %v2977, 1
  %v2979 = vmax.f32 %v2977, %v2978
  %v2980 = vsel %vm2202, %v2962, -inf
  %v2981 = vrot.slane %v2980, 4
  %v2982 = vmax.f32 %v2980, %v2981
  %v2983 = vrot.slane %v2982, 2
  %v2984 = vmax.f32 %v2982, %v2983
  %v2985 = vrot.slane %v2984, 1
  %v2986 = vmax.f32 %v2984, %v2985
  %v2987 = vsel %vm2202, %v2967, -inf
  %v2988 = vrot.slane %v2987, 4
  %v2989 = vmax.f32 %v2987, %v2988
  %v2990 = vrot.slane %v2989, 2
  %v2991 = vmax.f32 %v2989, %v2990
  %v2992 = vrot.slane %v2991, 1
  %v2993 = vmax.f32 %v2991, %v2992
  %v2994 = vsel %vm2202, %v2970, -inf
  %v2995 = vrot.slane %v2994, 4
  %v2996 = vmax.f32 %v2994, %v2995
  %v2997 = vrot.slane %v2996, 2
  %v2998 = vmax.f32 %v2996, %v2997
  %v2999 = vrot.slane %v2998, 1
  %v3000 = vmax.f32 %v2998, %v2999
  %v3001 = vsub.f32 %v2959, %v2979
  %v3002 = vsub.f32 %v2962, %v2986
  %v3003 = vsub.f32 %v2967, %v2993
  %v3004 = vsub.f32 %v2970, %v3000
  %v3005 = vmul.f32 %v3001, 1.442695
  %v3006 = vpow.pop %v3005
  %v3007 = vmul.f32 %v3002, 1.442695
  %v3008 = vpow.pop %v3007
  %v3009 = vmul.f32 %v3003, 1.442695
  %v3010 = vpow.pop %v3009
  %v3011 = vmul.f32 %v3004, 1.442695
  %v3012 = vpow.pop %v3011
  %v3013 = vsel %vm2202, %v3006, 0.0
  %v3014 = vrot.slane %v3013, 4
  %v3015 = vadd.f32 %v3013, %v3014
  %v3016 = vrot.slane %v3015, 2
  %v3017 = vadd.f32 %v3015, %v3016
  %v3018 = vrot.slane %v3017, 1
  %v3019 = vadd.f32 %v3017, %v3018
  %v3020 = vsel %vm2202, %v3008, 0.0
  %v3021 = vrot.slane %v3020, 4
  %v3022 = vadd.f32 %v3020, %v3021
  %v3023 = vrot.slane %v3022, 2
  %v3024 = vadd.f32 %v3022, %v3023
  %v3025 = vrot.slane %v3024, 1
  %v3026 = vadd.f32 %v3024, %v3025
  %v3027 = vsel %vm2202, %v3010, 0.0
  %v3028 = vrot.slane %v3027, 4
  %v3029 = vadd.f32 %v3027, %v3028
  %v3030 = vrot.slane %v3029, 2
  %v3031 = vadd.f32 %v3029, %v3030
  %v3032 = vrot.slane %v3031, 1
  %v3033 = vadd.f32 %v3031, %v3032
  %v3034 = vsel %vm2202, %v3012, 0.0
  %v3035 = vrot.slane %v3034, 4
  %v3036 = vadd.f32 %v3034, %v3035
  %v3037 = vrot.slane %v3036, 2
  %v3038 = vadd.f32 %v3036, %v3037
  %v3039 = vrot.slane %v3038, 1
  %v3040 = vadd.f32 %v3038, %v3039
  %v3041 = vrcp.pop %v3019
  %v3042 = vrcp.pop %v3026
  %v3043 = vrcp.pop %v3033
  %v3044 = vrcp.pop %v3040
  %v3045 = vmul.f32 %v3006, %v3041
  %v3046 = vmul.f32 %v3008, %v3042
  %v3047 = vmul.f32 %v3010, %v3043
  %v3048 = vmul.f32 %v3012, %v3044
  %v3049 = vpack.c.bf16 %v3046, %v3045
  %v3050 = vpack.c.bf16 %v3048, %v3047
  %v3052 = vsel %vm2202, %v3049, 0
  %v3055 = vsel %vm2202, %v3050, 0
  %3057 = vmatprep.subr.bf16.mxu0 0
  %3058 = vmatpush1.bf16.msra.mxu0 0
  %3059 = vmatprep.subr.bf16.mxu0 0
  %3060 = vmatpush1.bf16.msra.mxu0 0
  %3061 = vmatprep.subr.bf16.mxu0 0
  %3062 = vmatpush1.bf16.msra.mxu0 0
  %3063 = vmatprep.subr.bf16.mxu0 0
  %3064 = vmatpush1.bf16.msra.mxu0 0
  %3065 = vmatprep.subr.bf16.mxu0 0
  %3066 = vmatpush1.bf16.msra.mxu0 0
  %3067 = vmatprep.subr.bf16.mxu0 0
  %3068 = vmatpush1.bf16.msra.mxu0 0
  %3069 = vmatprep.subr.bf16.mxu0 0
  %3070 = vmatpush1.bf16.msra.mxu0 0
  %3071 = vmatprep.subr.bf16.mxu0 0
  %3072 = vmatpush1.bf16.msra.mxu0 %v2289
  %3073 = vmatprep.subr.bf16.mxu0 0
  %3074 = vmatpush2.bf16.msra.mxu0 0
  %3075 = vmatprep.subr.bf16.mxu0 0
  %3076 = vmatpush2.bf16.msra.mxu0 0
  %3077 = vmatprep.subr.bf16.mxu0 0
  %3078 = vmatpush2.bf16.msra.mxu0 0
  %3079 = vmatprep.subr.bf16.mxu0 0
  %3080 = vmatpush2.bf16.msra.mxu0 0
  %3081 = vmatprep.subr.bf16.mxu0 0
  %3082 = vmatpush2.bf16.msra.mxu0 0
  %3083 = vmatprep.subr.bf16.mxu0 0
  %3084 = vmatpush2.bf16.msra.mxu0 0
  %3085 = vmatprep.subr.bf16.mxu0 0
  %3086 = vmatpush2.bf16.msra.mxu0 0
  %3087 = vmatprep.subr.bf16.mxu0 0
  %3088 = vmatpush2.bf16.msra.mxu0 0
  %3089 = vmatprep.mubr.bf16.mxu0 0
  %3090 = vmatmul.mubr.bf16.gmra.mxu0 %v3052
  %v3091 = vpop.f32.mrf.mxu0
  %v3092 = vadd.f32 0.0, %v3091
  %v3093 = vpop.f32.mrf.mxu0
  %v3094 = vpop.f32.mrf.mxu0
  %v3095 = vadd.f32 0.0, %v3094
  %v3096 = vpop.f32.mrf.mxu0
  %3097 = vmatprep.mubr.bf16.mxu0 0
  %3098 = vmatmul.mubr.bf16.gmra.mxu0 %v3055
  %v3099 = vpop.f32.mrf.mxu0
  %v3100 = vadd.f32 0.0, %v3099
  %v3101 = vpop.f32.mrf.mxu0
  %v3102 = vpop.f32.mrf.mxu0
  %v3103 = vadd.f32 0.0, %v3102
  %v3104 = vpop.f32.mrf.mxu0
  %3105 = vdwg.mxu0
  %v3106 = vmul.f32 %v3092, %v2345
  %v3107 = vmul.f32 %v3095, %v2347
  %v3108 = vmul.f32 %v3100, %v2349
  %v3109 = vmul.f32 %v3103, %v2351
  %v3110 = vsel %vm77, %v3106, 0.0
  %v3111 = vrot.slane %v3110, 4
  %v3112 = vadd.f32 %v3110, %v3111
  %v3113 = vrot.slane %v3112, 2
  %v3114 = vadd.f32 %v3112, %v3113
  %v3115 = vrot.slane %v3114, 1
  %v3116 = vadd.f32 %v3114, %v3115
  %v3117 = vsel %vm77, %v3107, 0.0
  %v3118 = vrot.slane %v3117, 4
  %v3119 = vadd.f32 %v3117, %v3118
  %v3120 = vrot.slane %v3119, 2
  %v3121 = vadd.f32 %v3119, %v3120
  %v3122 = vrot.slane %v3121, 1
  %v3123 = vadd.f32 %v3121, %v3122
  %v3124 = vsel %vm77, %v3108, 0.0
  %v3125 = vrot.slane %v3124, 4
  %v3126 = vadd.f32 %v3124, %v3125
  %v3127 = vrot.slane %v3126, 2
  %v3128 = vadd.f32 %v3126, %v3127
  %v3129 = vrot.slane %v3128, 1
  %v3130 = vadd.f32 %v3128, %v3129
  %v3131 = vsel %vm77, %v3109, 0.0
  %v3132 = vrot.slane %v3131, 4
  %v3133 = vadd.f32 %v3131, %v3132
  %v3134 = vrot.slane %v3133, 2
  %v3135 = vadd.f32 %v3133, %v3134
  %v3136 = vrot.slane %v3135, 1
  %v3137 = vadd.f32 %v3135, %v3136
  %v3142 = vsel %vm338, %v3123, %v3116
  %v3143 = vsel %vm341, %v3130, %v3142
  %v3144 = vsel %vm344, %v3137, %v3143
  %3145 = vrot.lane.b32.xlu0 %v3144, 32
  %v3146 = vpop.permute.xlu0 %3145
  %3148 = vrot.lane.b32.xlu0 %v2546, 96
  %v3149 = vpop.permute.xlu0 %3148
  %v3151 = vsel %vm77, %v2792, %v3146
  %v3152 = vsel %vm2409, %v3151, %v3149
  %v3153 = vpack.c.bf16 %v3152, %v3152
  %v3154 = vld [vmem:[%s9] sm:$0xf]
  %v3155 = vld [vmem:[%s9 + $0x4] sm:$0xf]
  %v3156 = vld [vmem:[%s9 + $0x8] sm:$0xf]
  %v3157 = vld [vmem:[%s9 + $0xc] sm:$0xf]
  %v3158 = vld [vmem:[%s9 + $0x10] sm:$0xf]
  %v3159 = vld [vmem:[%s9 + $0x14] sm:$0xf]
  %v3160 = vld [vmem:[%s9 + $0x18] sm:$0xf]
  %v3161 = vld [vmem:[%s9 + $0x1c] sm:$0xf]
  %v3162 = vld [vmem:[%s9 + $0x20] sm:$0xf]
  %v3163 = vld [vmem:[%s9 + $0x24] sm:$0xf]
  %v3164 = vld [vmem:[%s9 + $0x28] sm:$0xf]
  %v3165 = vld [vmem:[%s9 + $0x2c] sm:$0xf]
  %v3166 = vld [vmem:[%s10] sm:$0x1]
  %v3168 = vlaneseq
  %v3169 = vshrl.u32 %v3168, 7
  %v3170 = vsub.s32 0, %v3169
  %v3171 = vrot.slane %v3166, %v3170
  %v3185 = vunpack.c.l.b16 %v3154
  %v3186 = vunpack.c.l.b16 %v3155
  %v3187 = vunpack.c.l.b16 %v3156
  %v3188 = vunpack.c.l.b16 %v3157
  %v3189 = vunpack.c.l.b16 %v3158
  %v3190 = vunpack.c.l.b16 %v3159
  %v3191 = vunpack.c.l.b16 %v3160
  %v3192 = vunpack.c.l.b16 %v3161
  %v3193 = vunpack.c.l.b16 %v3162
  %v3194 = vunpack.c.l.b16 %v3163
  %v3195 = vunpack.c.l.b16 %v3164
  %v3196 = vunpack.c.l.b16 %v3165
  %v3197 = vpack.c.b16 %v3186, %v3185
  %v3198 = vpack.c.b16 %v3188, %v3187
  %v3199 = vpack.c.b16 %v3190, %v3189
  %v3200 = vpack.c.b16 %v3192, %v3191
  %v3201 = vpack.c.b16 %v3194, %v3193
  %v3202 = vpack.c.b16 %v3196, %v3195
  %v3210 = vsel %vm2467, %v3153, 0
  %3212 = vmatprep.subr.bf16.mxu0 0
  %3213 = vmatpush1.bf16.msra.mxu0 0
  %3214 = vmatprep.subr.bf16.mxu0 0
  %3215 = vmatpush1.bf16.msra.mxu0 0
  %3216 = vmatprep.subr.bf16.mxu0 0
  %3217 = vmatpush1.bf16.msra.mxu0 %v3202
  %3218 = vmatprep.subr.bf16.mxu0 0
  %3219 = vmatpush1.bf16.msra.mxu0 %v3201
  %3220 = vmatprep.subr.bf16.mxu0 0
  %3221 = vmatpush1.bf16.msra.mxu0 %v3200
  %3222 = vmatprep.subr.bf16.mxu0 0
  %3223 = vmatpush1.bf16.msra.mxu0 %v3199
  %3224 = vmatprep.subr.bf16.mxu0 0
  %3225 = vmatpush1.bf16.msra.mxu0 %v3198
  %3226 = vmatprep.subr.bf16.mxu0 0
  %3227 = vmatpush1.bf16.msra.mxu0 %v3197
  %3228 = vmatprep.subr.bf16.mxu0 0
  %3229 = vmatpush2.bf16.msra.mxu0 0
  %3230 = vmatprep.subr.bf16.mxu0 0
  %3231 = vmatpush2.bf16.msra.mxu0 0
  %3232 = vmatprep.subr.bf16.mxu0 0
  %3233 = vmatpush2.bf16.msra.mxu0 0
  %3234 = vmatprep.subr.bf16.mxu0 0
  %3235 = vmatpush2.bf16.msra.mxu0 0
  %3236 = vmatprep.subr.bf16.mxu0 0
  %3237 = vmatpush2.bf16.msra.mxu0 0
  %3238 = vmatprep.subr.bf16.mxu0 0
  %3239 = vmatpush2.bf16.msra.mxu0 0
  %3240 = vmatprep.subr.bf16.mxu0 0
  %3241 = vmatpush2.bf16.msra.mxu0 0
  %3242 = vmatprep.subr.bf16.mxu0 0
  %3243 = vmatpush2.bf16.msra.mxu0 0
  %3244 = vmatprep.mubr.bf16.mxu0 0
  %3245 = vmatmul.mubr.bf16.gmra.mxu0 %v3210
  %v3246 = vpop.f32.mrf.mxu0
  %v3247 = vadd.f32 %v3171, %v3246
  %v3248 = vpop.f32.mrf.mxu0
  %v3249 = vpop.f32.mrf.mxu0
  %v3250 = vpop.f32.mrf.mxu0
  %3251 = vdwg.mxu0
  %v3252 = vxor.u32 %v3247, 2147483648
  %v3253 = vmul.f32 %v3252, 1.442695
  %v3254 = vpow.pop %v3253
  %v3255 = vadd.f32 %v3254, 1.0
  %v3256 = vrcp.pop %v3255
  %v3257 = vmul.f32 1.0, %v3256
  %v3258 = vtanh.pop %v3247
  %v3259 = vmul.f32 %v3257, %v2540
  %3261 = vrot.lane.b32.xlu0 %v3258, 64
  %v3262 = vpop.permute.xlu0 %3261
  %v3264 = vmul.f32 %v3257, %v3262
  %3266 = vrot.lane.b32.xlu0 %v3264, 32
  %v3267 = vpop.permute.xlu0 %3266
  %v3269 = vadd.f32 %v3259, %v3267
  %v3270 = vtanh.pop %v3269
  %3272 = vrot.lane.b32.xlu0 %v3270, 64
  %v3273 = vpop.permute.xlu0 %3272
  %v3275 = vmul.f32 %v3257, %v3273
  %3277 = vrot.lane.b32.xlu0 %v3275, 32
  %v3278 = vpop.permute.xlu0 %3277
  %v3280 = vsel %vm77, %v3278, %v3146
  %v3281 = vpack.c.bf16 %v3280, %v3280
  %v3282 = vld [vmem:[%s11] sm:$0xf]
  %v3283 = vld [vmem:[%s11 + $0x4] sm:$0xf]
  %v3284 = vld [vmem:[%s11 + $0x8] sm:$0xf]
  %v3285 = vld [vmem:[%s11 + $0xc] sm:$0xf]
  %v3286 = vld [vmem:[%s11 + $0x10] sm:$0xf]
  %v3287 = vld [vmem:[%s11 + $0x14] sm:$0xf]
  %v3288 = vld [vmem:[%s11 + $0x18] sm:$0xf]
  %v3289 = vld [vmem:[%s11 + $0x1c] sm:$0xf]
  %v3290 = vld [vmem:[%s12] sm:$0x1]
  %v3292 = vlaneseq
  %v3293 = vshrl.u32 %v3292, 7
  %v3294 = vsub.s32 0, %v3293
  %v3295 = vrot.slane %v3290, %v3294
  %v3305 = vunpack.c.l.b16 %v3282
  %v3306 = vunpack.c.l.b16 %v3283
  %v3307 = vunpack.c.l.b16 %v3284
  %v3308 = vunpack.c.l.b16 %v3285
  %v3309 = vunpack.c.l.b16 %v3286
  %v3310 = vunpack.c.l.b16 %v3287
  %v3311 = vunpack.c.l.b16 %v3288
  %v3312 = vunpack.c.l.b16 %v3289
  %v3313 = vpack.c.b16 %v3306, %v3305
  %v3314 = vpack.c.b16 %v3308, %v3307
  %v3315 = vpack.c.b16 %v3310, %v3309
  %v3316 = vpack.c.b16 %v3312, %v3311
  %v3322 = vsel %vm2409, %v3281, 0
  %3324 = vmatprep.subr.bf16.mxu0 0
  %3325 = vmatpush1.bf16.msra.mxu0 0
  %3326 = vmatprep.subr.bf16.mxu0 0
  %3327 = vmatpush1.bf16.msra.mxu0 0
  %3328 = vmatprep.subr.bf16.mxu0 0
  %3329 = vmatpush1.bf16.msra.mxu0 0
  %3330 = vmatprep.subr.bf16.mxu0 0
  %3331 = vmatpush1.bf16.msra.mxu0 0
  %3332 = vmatprep.subr.bf16.mxu0 0
  %3333 = vmatpush1.bf16.msra.mxu0 %v3316
  %3334 = vmatprep.subr.bf16.mxu0 0
  %3335 = vmatpush1.bf16.msra.mxu0 %v3315
  %3336 = vmatprep.subr.bf16.mxu0 0
  %3337 = vmatpush1.bf16.msra.mxu0 %v3314
  %3338 = vmatprep.subr.bf16.mxu0 0
  %3339 = vmatpush1.bf16.msra.mxu0 %v3313
  %3340 = vmatprep.subr.bf16.mxu0 0
  %3341 = vmatpush2.bf16.msra.mxu0 0
  %3342 = vmatprep.subr.bf16.mxu0 0
  %3343 = vmatpush2.bf16.msra.mxu0 0
  %3344 = vmatprep.subr.bf16.mxu0 0
  %3345 = vmatpush2.bf16.msra.mxu0 0
  %3346 = vmatprep.subr.bf16.mxu0 0
  %3347 = vmatpush2.bf16.msra.mxu0 0
  %3348 = vmatprep.subr.bf16.mxu0 0
  %3349 = vmatpush2.bf16.msra.mxu0 0
  %3350 = vmatprep.subr.bf16.mxu0 0
  %3351 = vmatpush2.bf16.msra.mxu0 0
  %3352 = vmatprep.subr.bf16.mxu0 0
  %3353 = vmatpush2.bf16.msra.mxu0 0
  %3354 = vmatprep.subr.bf16.mxu0 0
  %3355 = vmatpush2.bf16.msra.mxu0 0
  %3356 = vmatprep.mubr.bf16.mxu0 0
  %3357 = vmatmul.mubr.bf16.gmra.mxu0 %v3322
  %v3358 = vpop.f32.mrf.mxu0
  %v3359 = vadd.f32 %v3295, %v3358
  %v3360 = vpop.f32.mrf.mxu0
  %v3361 = vpop.f32.mrf.mxu0
  %v3362 = vpop.f32.mrf.mxu0
  %3363 = vdwg.mxu0
  %v3366 = vunpack.c.l.s4 1966171168
  %v3367 = vunpack.c.0.s8 %v3366
  %v3368 = vlaneseq
  %v3369 = vshrl.u32 %v3368, 7
  %v3370 = vsub.s32 %v3367, %v3369
  %v3371 = vrot.slane %v3359, %v3370
  %v3372 = vcombine.high %v3371, %v3371
  %v3374 = vunpack.c.l.s4 1966171168
  %v3375 = vunpack.c.0.s8 %v3374
  %v3376 = vlaneseq
  %v3377 = vshrl.u32 %v3376, 7
  %v3378 = vsub.s32 %v3375, %v3377
  %v3379 = vrot.slane %v3371, %v3378
  %v3381 = vunpack.c.l.s4 1966171168
  %v3382 = vunpack.c.0.s8 %v3381
  %v3383 = vlaneseq
  %v3384 = vshrl.u32 %v3383, 7
  %v3385 = vsub.s32 %v3382, %v3384
  %v3386 = vrot.slane %v3372, %v3385
  %v3387 = vcombine.high %v3379, %v3379
  %v3388 = vcombine.high %v3386, %v3386
  %3393 = vst [vmem:[%s14 + $0x2] sm:$0x1] %v3379
  %3394 = vst [vmem:[%s14 + $0xa] sm:$0x1] %v3386
  %3395 = vst [vmem:[%s14 + $0x12] sm:$0x1] %v3387
  %3396 = vst [vmem:[%s14 + $0x1a] sm:$0x1] %v3388
  %v3397 = vsel %vm2668, %v3359, -inf
  %3398 = vmax.xlane.f32.xlu0 %v3397
  %v3399 = vpop.xlane.xlu0 %3398
  %vm3400 = vcmp.eq.f32.partialorder %v3359, %v3399
  %v3401 = vsel %vm3400, %v1968, 128
  %v3402 = vsel %vm2668, %v3401, 2147483647
  %v3403 = vand.u32 %v3402, 65535
  %v3404 = vshra.s32 %v3402, 16
  %v3405 = vcvt.s32.f32 %v3403
  %v3406 = vcvt.s32.f32 %v3404
  %3407 = vmin.xlane.f32.xlu0 %v3406
  %v3408 = vpop.xlane.xlu0 %3407
  %vm3409 = vcmp.eq.f32.partialorder %v3406, %v3408
  %v3410 = vsel %vm3409, %v3405, inf
  %3411 = vmin.xlane.f32.xlu0 %v3410
  %v3412 = vpop.xlane.xlu0 %3411
  %v3413 = vcvt.f32.s32 %v3412
  %v3414 = vcvt.f32.s32 %v3408
  %v3415 = vshll.u32 %v3414, 16
  %v3416 = vadd.s32 %v3415, %v3413
  %vm3417 = vcmp.eq.s32.totalorder %v1968, %v3416
  %v3418 = vsel %vm3417, 1, 0
  %v3419 = vcvt.s32.f32 %v3418
  %v3420 = vpack.c.bf16 %v3419, %v3419
  %v3421 = vld [vmem:[%s13] sm:$0xf]
  %v3422 = vld [vmem:[%s13 + $0x4] sm:$0xf]
  %v3423 = vld [vmem:[%s13 + $0x8] sm:$0xf]
  %v3424 = vld [vmem:[%s13 + $0xc] sm:$0xf]
  %v3425 = vld [vmem:[%s13 + $0x10] sm:$0xf]
  %v3426 = vld [vmem:[%s13 + $0x14] sm:$0xf]
  %v3427 = vld [vmem:[%s13 + $0x18] sm:$0xf]
  %v3428 = vld [vmem:[%s13 + $0x1c] sm:$0xf]
  %v3429 = vld [vmem:[%s13 + $0x20] sm:$0xf]
  %v3430 = vld [vmem:[%s13 + $0x24] sm:$0xf]
  %v3431 = vld [vmem:[%s13 + $0x28] sm:$0xf]
  %v3432 = vld [vmem:[%s13 + $0x2c] sm:$0xf]
  %v3433 = vld [vmem:[%s13 + $0x30] sm:$0xf]
  %v3434 = vld [vmem:[%s13 + $0x34] sm:$0xf]
  %v3435 = vld [vmem:[%s13 + $0x38] sm:$0xf]
  %v3436 = vld [vmem:[%s13 + $0x3c] sm:$0xf]
  %v3453 = vunpack.c.l.b16 %v3421
  %v3454 = vunpack.c.l.b16 %v3422
  %v3455 = vunpack.c.l.b16 %v3423
  %v3456 = vunpack.c.l.b16 %v3424
  %v3457 = vunpack.c.l.b16 %v3425
  %v3458 = vunpack.c.l.b16 %v3426
  %v3459 = vunpack.c.l.b16 %v3427
  %v3460 = vunpack.c.l.b16 %v3428
  %v3461 = vunpack.c.l.b16 %v3429
  %v3462 = vunpack.c.l.b16 %v3430
  %v3463 = vunpack.c.l.b16 %v3431
  %v3464 = vunpack.c.l.b16 %v3432
  %v3465 = vunpack.c.l.b16 %v3433
  %v3466 = vunpack.c.l.b16 %v3434
  %v3467 = vunpack.c.l.b16 %v3435
  %v3468 = vunpack.c.l.b16 %v3436
  %v3469 = vpack.c.b16 %v3454, %v3453
  %v3470 = vpack.c.b16 %v3456, %v3455
  %v3471 = vpack.c.b16 %v3458, %v3457
  %v3472 = vpack.c.b16 %v3460, %v3459
  %v3473 = vpack.c.b16 %v3462, %v3461
  %v3474 = vpack.c.b16 %v3464, %v3463
  %v3475 = vpack.c.b16 %v3466, %v3465
  %v3476 = vpack.c.b16 %v3468, %v3467
  %3485 = vmatprep.subr.bf16.mxu0 0
  %3486 = vmatpush1.bf16.msra.mxu0 %v3476
  %3487 = vmatprep.subr.bf16.mxu0 0
  %3488 = vmatpush1.bf16.msra.mxu0 %v3475
  %3489 = vmatprep.subr.bf16.mxu0 0
  %3490 = vmatpush1.bf16.msra.mxu0 %v3474
  %3491 = vmatprep.subr.bf16.mxu0 0
  %3492 = vmatpush1.bf16.msra.mxu0 %v3473
  %3493 = vmatprep.subr.bf16.mxu0 0
  %3494 = vmatpush1.bf16.msra.mxu0 %v3472
  %3495 = vmatprep.subr.bf16.mxu0 0
  %3496 = vmatpush1.bf16.msra.mxu0 %v3471
  %3497 = vmatprep.subr.bf16.mxu0 0
  %3498 = vmatpush1.bf16.msra.mxu0 %v3470
  %3499 = vmatprep.subr.bf16.mxu0 0
  %3500 = vmatpush1.bf16.msra.mxu0 %v3469
  %3501 = vmatprep.subr.bf16.mxu0 0
  %3502 = vmatpush2.bf16.msra.mxu0 0
  %3503 = vmatprep.subr.bf16.mxu0 0
  %3504 = vmatpush2.bf16.msra.mxu0 0
  %3505 = vmatprep.subr.bf16.mxu0 0
  %3506 = vmatpush2.bf16.msra.mxu0 0
  %3507 = vmatprep.subr.bf16.mxu0 0
  %3508 = vmatpush2.bf16.msra.mxu0 0
  %3509 = vmatprep.subr.bf16.mxu0 0
  %3510 = vmatpush2.bf16.msra.mxu0 0
  %3511 = vmatprep.subr.bf16.mxu0 0
  %3512 = vmatpush2.bf16.msra.mxu0 0
  %3513 = vmatprep.subr.bf16.mxu0 0
  %3514 = vmatpush2.bf16.msra.mxu0 0
  %3515 = vmatprep.subr.bf16.mxu0 0
  %3516 = vmatpush2.bf16.msra.mxu0 0
  %3517 = vmatprep.mubr.bf16.mxu0 0
  %3518 = vmatmul.mubr.bf16.gmra.mxu0 %v3420
  %v3519 = vpop.f32.mrf.mxu0
  %v3520 = vadd.f32 0.0, %v3519
  %v3521 = vpop.f32.mrf.mxu0
  %v3522 = vpop.f32.mrf.mxu0
  %v3523 = vpop.f32.mrf.mxu0
  %3524 = vdwg.mxu0
  %v3525 = vpack.c.bf16 %v3275, %v3275
  %v3526 = vld [vmem:[%s5] sm:$0xf]
  %v3527 = vld [vmem:[%s5 + $0x4] sm:$0xf]
  %v3528 = vld [vmem:[%s5 + $0x8] sm:$0xf]
  %v3529 = vld [vmem:[%s5 + $0xc] sm:$0xf]
  %v3530 = vld [vmem:[%s6] sm:$0x1]
  %v3532 = vlaneseq
  %v3533 = vshrl.u32 %v3532, 7
  %v3534 = vsub.s32 0, %v3533
  %v3535 = vrot.slane %v3530, %v3534
  %3538 = vrot.lane.b32.xlu0 %v3525, 32
  %v3539 = vpop.permute.xlu0 %3538
  %v3544 = vunpack.c.l.b16 %v3526
  %v3545 = vunpack.c.l.b16 %v3527
  %v3546 = vunpack.c.l.b16 %v3528
  %v3547 = vunpack.c.l.b16 %v3529
  %v3548 = vpack.c.b16 %v3545, %v3544
  %v3549 = vpack.c.b16 %v3547, %v3546
  %v3553 = vsel %vm77, %v3539, 0
  %3555 = vmatprep.subr.bf16.mxu0 0
  %3556 = vmatpush1.bf16.msra.mxu0 0
  %3557 = vmatprep.subr.bf16.mxu0 0
  %3558 = vmatpush1.bf16.msra.mxu0 0
  %3559 = vmatprep.subr.bf16.mxu0 0
  %3560 = vmatpush1.bf16.msra.mxu0 0
  %3561 = vmatprep.subr.bf16.mxu0 0
  %3562 = vmatpush1.bf16.msra.mxu0 0
  %3563 = vmatprep.subr.bf16.mxu0 0
  %3564 = vmatpush1.bf16.msra.mxu0 0
  %3565 = vmatprep.subr.bf16.mxu0 0
  %3566 = vmatpush1.bf16.msra.mxu0 0
  %3567 = vmatprep.subr.bf16.mxu0 0
  %3568 = vmatpush1.bf16.msra.mxu0 %v3549
  %3569 = vmatprep.subr.bf16.mxu0 0
  %3570 = vmatpush1.bf16.msra.mxu0 %v3548
  %3571 = vmatprep.subr.bf16.mxu0 0
  %3572 = vmatpush2.bf16.msra.mxu0 0
  %3573 = vmatprep.subr.bf16.mxu0 0
  %3574 = vmatpush2.bf16.msra.mxu0 0
  %3575 = vmatprep.subr.bf16.mxu0 0
  %3576 = vmatpush2.bf16.msra.mxu0 0
  %3577 = vmatprep.subr.bf16.mxu0 0
  %3578 = vmatpush2.bf16.msra.mxu0 0
  %3579 = vmatprep.subr.bf16.mxu0 0
  %3580 = vmatpush2.bf16.msra.mxu0 0
  %3581 = vmatprep.subr.bf16.mxu0 0
  %3582 = vmatpush2.bf16.msra.mxu0 0
  %3583 = vmatprep.subr.bf16.mxu0 0
  %3584 = vmatpush2.bf16.msra.mxu0 0
  %3585 = vmatprep.subr.bf16.mxu0 0
  %3586 = vmatpush2.bf16.msra.mxu0 0
  %3587 = vmatprep.mubr.bf16.mxu0 0
  %3588 = vmatmul.mubr.bf16.gmra.mxu0 %v3553
  %v3589 = vpop.f32.mrf.mxu0
  %v3590 = vadd.f32 %v3535, %v3589
  %v3591 = vpop.f32.mrf.mxu0
  %v3592 = vpop.f32.mrf.mxu0
  %v3593 = vpop.f32.mrf.mxu0
  %3594 = vdwg.mxu0
  %v3597 = vunpack.c.l.s4 1966171168
  %v3598 = vunpack.c.0.s8 %v3597
  %v3599 = vlaneseq
  %v3600 = vshrl.u32 %v3599, 7
  %v3601 = vsub.s32 %v3598, %v3600
  %v3602 = vrot.slane %v3590, %v3601
  %v3603 = vcombine.high %v3602, %v3602
  %v3605 = vunpack.c.l.s4 1966171168
  %v3606 = vunpack.c.0.s8 %v3605
  %v3607 = vlaneseq
  %v3608 = vshrl.u32 %v3607, 7
  %v3609 = vsub.s32 %v3606, %v3608
  %v3610 = vrot.slane %v3602, %v3609
  %v3612 = vunpack.c.l.s4 1966171168
  %v3613 = vunpack.c.0.s8 %v3612
  %v3614 = vlaneseq
  %v3615 = vshrl.u32 %v3614, 7
  %v3616 = vsub.s32 %v3613, %v3615
  %v3617 = vrot.slane %v3603, %v3616
  %v3618 = vcombine.high %v3610, %v3610
  %v3619 = vcombine.high %v3617, %v3617
  %v3620 = vlaneseq
  %v3621 = vshrl.u32 %v3620, 7
  %v3622 = vsub.s32 0, %v3621
  %v3623 = vrot.slane %v3610, %v3622
  %v3624 = vlaneseq
  %v3625 = vshrl.u32 %v3624, 7
  %v3626 = vsub.s32 0, %v3625
  %v3627 = vrot.slane %v3617, %v3626
  %v3628 = vlaneseq
  %v3629 = vshrl.u32 %v3628, 7
  %v3630 = vsub.s32 0, %v3629
  %v3631 = vrot.slane %v3618, %v3630
  %v3632 = vlaneseq
  %v3633 = vshrl.u32 %v3632, 7
  %v3634 = vsub.s32 0, %v3633
  %v3635 = vrot.slane %v3619, %v3634
  %v3640 = vmul.f32 %v3623, %v1948
  %v3641 = vmul.f32 %v3627, %v1951
  %v3642 = vmul.f32 %v3631, %v1956
  %v3643 = vmul.f32 %v3635, %v1959
  %v3644 = vpack.c.bf16 %v3641, %v3640
  %v3645 = vpack.c.bf16 %v3643, %v3642
  %v3647 = vsel %vm77, %v3644, 0
  %v3650 = vsel %vm77, %v3645, 0
  %3652 = vmatprep.subr.bf16.mxu0 0
  %3653 = vmatpush1.bf16.msra.mxu0 0
  %3654 = vmatprep.subr.bf16.mxu0 0
  %3655 = vmatpush1.bf16.msra.mxu0 0
  %3656 = vmatprep.subr.bf16.mxu0 0
  %3657 = vmatpush1.bf16.msra.mxu0 0
  %3658 = vmatprep.subr.bf16.mxu0 0
  %3659 = vmatpush1.bf16.msra.mxu0 0
  %3660 = vmatprep.subr.bf16.mxu0 0
  %3661 = vmatpush1.bf16.msra.mxu0 0
  %3662 = vmatprep.subr.bf16.mxu0 0
  %3663 = vmatpush1.bf16.msra.mxu0 0
  %3664 = vmatprep.subr.bf16.mxu0 0
  %3665 = vmatpush1.bf16.msra.mxu0 %v1993
  %3666 = vmatprep.subr.bf16.mxu0 0
  %3667 = vmatpush1.bf16.msra.mxu0 %v1992
  %3668 = vmatprep.subr.bf16.mxu0 0
  %3669 = vmatpush2.bf16.msra.mxu0 0
  %3670 = vmatprep.subr.bf16.mxu0 0
  %3671 = vmatpush2.bf16.msra.mxu0 0
  %3672 = vmatprep.subr.bf16.mxu0 0
  %3673 = vmatpush2.bf16.msra.mxu0 0
  %3674 = vmatprep.subr.bf16.mxu0 0
  %3675 = vmatpush2.bf16.msra.mxu0 0
  %3676 = vmatprep.subr.bf16.mxu0 0
  %3677 = vmatpush2.bf16.msra.mxu0 0
  %3678 = vmatprep.subr.bf16.mxu0 0
  %3679 = vmatpush2.bf16.msra.mxu0 0
  %3680 = vmatprep.subr.bf16.mxu0 0
  %3681 = vmatpush2.bf16.msra.mxu0 0
  %3682 = vmatprep.subr.bf16.mxu0 0
  %3683 = vmatpush2.bf16.msra.mxu0 0
  %3684 = vmatprep.mubr.bf16.mxu0 0
  %3685 = vmatmul.mubr.bf16.gmra.mxu0 %v3647
  %v3686 = vpop.f32.mrf.mxu0
  %v3687 = vadd.f32 0.0, %v3686
  %v3688 = vpop.f32.mrf.mxu0
  %v3689 = vpop.f32.mrf.mxu0
  %v3690 = vadd.f32 0.0, %v3689
  %v3691 = vpop.f32.mrf.mxu0
  %3692 = vmatprep.mubr.bf16.mxu0 0
  %3693 = vmatmul.mubr.bf16.gmra.mxu0 %v3650
  %v3694 = vpop.f32.mrf.mxu0
  %v3695 = vadd.f32 0.0, %v3694
  %v3696 = vpop.f32.mrf.mxu0
  %v3697 = vpop.f32.mrf.mxu0
  %v3698 = vadd.f32 0.0, %v3697
  %v3699 = vpop.f32.mrf.mxu0
  %3700 = vdwg.mxu0
  %v3701 = vsel %vm2202, %v3687, -inf
  %v3702 = vrot.slane %v3701, 4
  %v3703 = vmax.f32 %v3701, %v3702
  %v3704 = vrot.slane %v3703, 2
  %v3705 = vmax.f32 %v3703, %v3704
  %v3706 = vrot.slane %v3705, 1
  %v3707 = vmax.f32 %v3705, %v3706
  %v3708 = vsel %vm2202, %v3690, -inf
  %v3709 = vrot.slane %v3708, 4
  %v3710 = vmax.f32 %v3708, %v3709
  %v3711 = vrot.slane %v3710, 2
  %v3712 = vmax.f32 %v3710, %v3711
  %v3713 = vrot.slane %v3712, 1
  %v3714 = vmax.f32 %v3712, %v3713
  %v3715 = vsel %vm2202, %v3695, -inf
  %v3716 = vrot.slane %v3715, 4
  %v3717 = vmax.f32 %v3715, %v3716
  %v3718 = vrot.slane %v3717, 2
  %v3719 = vmax.f32 %v3717, %v3718
  %v3720 = vrot.slane %v3719, 1
  %v3721 = vmax.f32 %v3719, %v3720
  %v3722 = vsel %vm2202, %v3698, -inf
  %v3723 = vrot.slane %v3722, 4
  %v3724 = vmax.f32 %v3722, %v3723
  %v3725 = vrot.slane %v3724, 2
  %v3726 = vmax.f32 %v3724, %v3725
  %v3727 = vrot.slane %v3726, 1
  %v3728 = vmax.f32 %v3726, %v3727
  %v3729 = vsub.f32 %v3687, %v3707
  %v3730 = vsub.f32 %v3690, %v3714
  %v3731 = vsub.f32 %v3695, %v3721
  %v3732 = vsub.f32 %v3698, %v3728
  %v3733 = vmul.f32 %v3729, 1.442695
  %v3734 = vpow.pop %v3733
  %v3735 = vmul.f32 %v3730, 1.442695
  %v3736 = vpow.pop %v3735
  %v3737 = vmul.f32 %v3731, 1.442695
  %v3738 = vpow.pop %v3737
  %v3739 = vmul.f32 %v3732, 1.442695
  %v3740 = vpow.pop %v3739
  %v3741 = vsel %vm2202, %v3734, 0.0
  %v3742 = vrot.slane %v3741, 4
  %v3743 = vadd.f32 %v3741, %v3742
  %v3744 = vrot.slane %v3743, 2
  %v3745 = vadd.f32 %v3743, %v3744
  %v3746 = vrot.slane %v3745, 1
  %v3747 = vadd.f32 %v3745, %v3746
  %v3748 = vsel %vm2202, %v3736, 0.0
  %v3749 = vrot.slane %v3748, 4
  %v3750 = vadd.f32 %v3748, %v3749
  %v3751 = vrot.slane %v3750, 2
  %v3752 = vadd.f32 %v3750, %v3751
  %v3753 = vrot.slane %v3752, 1
  %v3754 = vadd.f32 %v3752, %v3753
  %v3755 = vsel %vm2202, %v3738, 0.0
  %v3756 = vrot.slane %v3755, 4
  %v3757 = vadd.f32 %v3755, %v3756
  %v3758 = vrot.slane %v3757, 2
  %v3759 = vadd.f32 %v3757, %v3758
  %v3760 = vrot.slane %v3759, 1
  %v3761 = vadd.f32 %v3759, %v3760
  %v3762 = vsel %vm2202, %v3740, 0.0
  %v3763 = vrot.slane %v3762, 4
  %v3764 = vadd.f32 %v3762, %v3763
  %v3765 = vrot.slane %v3764, 2
  %v3766 = vadd.f32 %v3764, %v3765
  %v3767 = vrot.slane %v3766, 1
  %v3768 = vadd.f32 %v3766, %v3767
  %v3769 = vrcp.pop %v3747
  %v3770 = vrcp.pop %v3754
  %v3771 = vrcp.pop %v3761
  %v3772 = vrcp.pop %v3768
  %v3773 = vmul.f32 %v3734, %v3769
  %v3774 = vmul.f32 %v3736, %v3770
  %v3775 = vmul.f32 %v3738, %v3771
  %v3776 = vmul.f32 %v3740, %v3772
  %v3777 = vpack.c.bf16 %v3774, %v3773
  %v3778 = vpack.c.bf16 %v3776, %v3775
  %v3780 = vsel %vm2202, %v3777, 0
  %v3783 = vsel %vm2202, %v3778, 0
  %3785 = vmatprep.subr.bf16.mxu0 0
  %3786 = vmatpush1.bf16.msra.mxu0 0
  %3787 = vmatprep.subr.bf16.mxu0 0
  %3788 = vmatpush1.bf16.msra.mxu0 0
  %3789 = vmatprep.subr.bf16.mxu0 0
  %3790 = vmatpush1.bf16.msra.mxu0 0
  %3791 = vmatprep.subr.bf16.mxu0 0
  %3792 = vmatpush1.bf16.msra.mxu0 0
  %3793 = vmatprep.subr.bf16.mxu0 0
  %3794 = vmatpush1.bf16.msra.mxu0 0
  %3795 = vmatprep.subr.bf16.mxu0 0
  %3796 = vmatpush1.bf16.msra.mxu0 0
  %3797 = vmatprep.subr.bf16.mxu0 0
  %3798 = vmatpush1.bf16.msra.mxu0 0
  %3799 = vmatprep.subr.bf16.mxu0 0
  %3800 = vmatpush1.bf16.msra.mxu0 %v2289
  %3801 = vmatprep.subr.bf16.mxu0 0
  %3802 = vmatpush2.bf16.msra.mxu0 0
  %3803 = vmatprep.subr.bf16.mxu0 0
  %3804 = vmatpush2.bf16.msra.mxu0 0
  %3805 = vmatprep.subr.bf16.mxu0 0
  %3806 = vmatpush2.bf16.msra.mxu0 0
  %3807 = vmatprep.subr.bf16.mxu0 0
  %3808 = vmatpush2.bf16.msra.mxu0 0
  %3809 = vmatprep.subr.bf16.mxu0 0
  %3810 = vmatpush2.bf16.msra.mxu0 0
  %3811 = vmatprep.subr.bf16.mxu0 0
  %3812 = vmatpush2.bf16.msra.mxu0 0
  %3813 = vmatprep.subr.bf16.mxu0 0
  %3814 = vmatpush2.bf16.msra.mxu0 0
  %3815 = vmatprep.subr.bf16.mxu0 0
  %3816 = vmatpush2.bf16.msra.mxu0 0
  %3817 = vmatprep.mubr.bf16.mxu0 0
  %3818 = vmatmul.mubr.bf16.gmra.mxu0 %v3780
  %v3819 = vpop.f32.mrf.mxu0
  %v3820 = vadd.f32 0.0, %v3819
  %v3821 = vpop.f32.mrf.mxu0
  %v3822 = vpop.f32.mrf.mxu0
  %v3823 = vadd.f32 0.0, %v3822
  %v3824 = vpop.f32.mrf.mxu0
  %3825 = vmatprep.mubr.bf16.mxu0 0
  %3826 = vmatmul.mubr.bf16.gmra.mxu0 %v3783
  %v3827 = vpop.f32.mrf.mxu0
  %v3828 = vadd.f32 0.0, %v3827
  %v3829 = vpop.f32.mrf.mxu0
  %v3830 = vpop.f32.mrf.mxu0
  %v3831 = vadd.f32 0.0, %v3830
  %v3832 = vpop.f32.mrf.mxu0
  %3833 = vdwg.mxu0
  %v3834 = vmul.f32 %v3820, %v2345
  %v3835 = vmul.f32 %v3823, %v2347
  %v3836 = vmul.f32 %v3828, %v2349
  %v3837 = vmul.f32 %v3831, %v2351
  %v3838 = vsel %vm77, %v3834, 0.0
  %v3839 = vrot.slane %v3838, 4
  %v3840 = vadd.f32 %v3838, %v3839
  %v3841 = vrot.slane %v3840, 2
  %v3842 = vadd.f32 %v3840, %v3841
  %v3843 = vrot.slane %v3842, 1
  %v3844 = vadd.f32 %v3842, %v3843
  %v3845 = vsel %vm77, %v3835, 0.0
  %v3846 = vrot.slane %v3845, 4
  %v3847 = vadd.f32 %v3845, %v3846
  %v3848 = vrot.slane %v3847, 2
  %v3849 = vadd.f32 %v3847, %v3848
  %v3850 = vrot.slane %v3849, 1
  %v3851 = vadd.f32 %v3849, %v3850
  %v3852 = vsel %vm77, %v3836, 0.0
  %v3853 = vrot.slane %v3852, 4
  %v3854 = vadd.f32 %v3852, %v3853
  %v3855 = vrot.slane %v3854, 2
  %v3856 = vadd.f32 %v3854, %v3855
  %v3857 = vrot.slane %v3856, 1
  %v3858 = vadd.f32 %v3856, %v3857
  %v3859 = vsel %vm77, %v3837, 0.0
  %v3860 = vrot.slane %v3859, 4
  %v3861 = vadd.f32 %v3859, %v3860
  %v3862 = vrot.slane %v3861, 2
  %v3863 = vadd.f32 %v3861, %v3862
  %v3864 = vrot.slane %v3863, 1
  %v3865 = vadd.f32 %v3863, %v3864
  %v3870 = vsel %vm338, %v3851, %v3844
  %v3871 = vsel %vm341, %v3858, %v3870
  %v3872 = vsel %vm344, %v3865, %v3871
  %3873 = vrot.lane.b32.xlu0 %v3872, 32
  %v3874 = vpop.permute.xlu0 %3873
  %3876 = vrot.lane.b32.xlu0 %v3275, 96
  %v3877 = vpop.permute.xlu0 %3876
  %v3879 = vsel %vm77, %v3520, %v3874
  %v3880 = vsel %vm2409, %v3879, %v3877
  %v3881 = vpack.c.bf16 %v3880, %v3880
  %v3882 = vld [vmem:[%s9] sm:$0xf]
  %v3883 = vld [vmem:[%s9 + $0x4] sm:$0xf]
  %v3884 = vld [vmem:[%s9 + $0x8] sm:$0xf]
  %v3885 = vld [vmem:[%s9 + $0xc] sm:$0xf]
  %v3886 = vld [vmem:[%s9 + $0x10] sm:$0xf]
  %v3887 = vld [vmem:[%s9 + $0x14] sm:$0xf]
  %v3888 = vld [vmem:[%s9 + $0x18] sm:$0xf]
  %v3889 = vld [vmem:[%s9 + $0x1c] sm:$0xf]
  %v3890 = vld [vmem:[%s9 + $0x20] sm:$0xf]
  %v3891 = vld [vmem:[%s9 + $0x24] sm:$0xf]
  %v3892 = vld [vmem:[%s9 + $0x28] sm:$0xf]
  %v3893 = vld [vmem:[%s9 + $0x2c] sm:$0xf]
  %v3894 = vld [vmem:[%s10] sm:$0x1]
  %v3896 = vlaneseq
  %v3897 = vshrl.u32 %v3896, 7
  %v3898 = vsub.s32 0, %v3897
  %v3899 = vrot.slane %v3894, %v3898
  %v3913 = vunpack.c.l.b16 %v3882
  %v3914 = vunpack.c.l.b16 %v3883
  %v3915 = vunpack.c.l.b16 %v3884
  %v3916 = vunpack.c.l.b16 %v3885
  %v3917 = vunpack.c.l.b16 %v3886
  %v3918 = vunpack.c.l.b16 %v3887
  %v3919 = vunpack.c.l.b16 %v3888
  %v3920 = vunpack.c.l.b16 %v3889
  %v3921 = vunpack.c.l.b16 %v3890
  %v3922 = vunpack.c.l.b16 %v3891
  %v3923 = vunpack.c.l.b16 %v3892
  %v3924 = vunpack.c.l.b16 %v3893
  %v3925 = vpack.c.b16 %v3914, %v3913
  %v3926 = vpack.c.b16 %v3916, %v3915
  %v3927 = vpack.c.b16 %v3918, %v3917
  %v3928 = vpack.c.b16 %v3920, %v3919
  %v3929 = vpack.c.b16 %v3922, %v3921
  %v3930 = vpack.c.b16 %v3924, %v3923
  %v3938 = vsel %vm2467, %v3881, 0
  %3940 = vmatprep.subr.bf16.mxu0 0
  %3941 = vmatpush1.bf16.msra.mxu0 0
  %3942 = vmatprep.subr.bf16.mxu0 0
  %3943 = vmatpush1.bf16.msra.mxu0 0
  %3944 = vmatprep.subr.bf16.mxu0 0
  %3945 = vmatpush1.bf16.msra.mxu0 %v3930
  %3946 = vmatprep.subr.bf16.mxu0 0
  %3947 = vmatpush1.bf16.msra.mxu0 %v3929
  %3948 = vmatprep.subr.bf16.mxu0 0
  %3949 = vmatpush1.bf16.msra.mxu0 %v3928
  %3950 = vmatprep.subr.bf16.mxu0 0
  %3951 = vmatpush1.bf16.msra.mxu0 %v3927
  %3952 = vmatprep.subr.bf16.mxu0 0
  %3953 = vmatpush1.bf16.msra.mxu0 %v3926
  %3954 = vmatprep.subr.bf16.mxu0 0
  %3955 = vmatpush1.bf16.msra.mxu0 %v3925
  %3956 = vmatprep.subr.bf16.mxu0 0
  %3957 = vmatpush2.bf16.msra.mxu0 0
  %3958 = vmatprep.subr.bf16.mxu0 0
  %3959 = vmatpush2.bf16.msra.mxu0 0
  %3960 = vmatprep.subr.bf16.mxu0 0
  %3961 = vmatpush2.bf16.msra.mxu0 0
  %3962 = vmatprep.subr.bf16.mxu0 0
  %3963 = vmatpush2.bf16.msra.mxu0 0
  %3964 = vmatprep.subr.bf16.mxu0 0
  %3965 = vmatpush2.bf16.msra.mxu0 0
  %3966 = vmatprep.subr.bf16.mxu0 0
  %3967 = vmatpush2.bf16.msra.mxu0 0
  %3968 = vmatprep.subr.bf16.mxu0 0
  %3969 = vmatpush2.bf16.msra.mxu0 0
  %3970 = vmatprep.subr.bf16.mxu0 0
  %3971 = vmatpush2.bf16.msra.mxu0 0
  %3972 = vmatprep.mubr.bf16.mxu0 0
  %3973 = vmatmul.mubr.bf16.gmra.mxu0 %v3938
  %v3974 = vpop.f32.mrf.mxu0
  %v3975 = vadd.f32 %v3899, %v3974
  %v3976 = vpop.f32.mrf.mxu0
  %v3977 = vpop.f32.mrf.mxu0
  %v3978 = vpop.f32.mrf.mxu0
  %3979 = vdwg.mxu0
  %v3980 = vxor.u32 %v3975, 2147483648
  %v3981 = vmul.f32 %v3980, 1.442695
  %v3982 = vpow.pop %v3981
  %v3983 = vadd.f32 %v3982, 1.0
  %v3984 = vrcp.pop %v3983
  %v3985 = vmul.f32 1.0, %v3984
  %v3986 = vtanh.pop %v3975
  %v3987 = vmul.f32 %v3985, %v3269
  %3989 = vrot.lane.b32.xlu0 %v3986, 64
  %v3990 = vpop.permute.xlu0 %3989
  %v3992 = vmul.f32 %v3985, %v3990
  %3994 = vrot.lane.b32.xlu0 %v3992, 32
  %v3995 = vpop.permute.xlu0 %3994
  %v3997 = vadd.f32 %v3987, %v3995
  %v3998 = vtanh.pop %v3997
  %4000 = vrot.lane.b32.xlu0 %v3998, 64
  %v4001 = vpop.permute.xlu0 %4000
  %v4003 = vmul.f32 %v3985, %v4001
  %4005 = vrot.lane.b32.xlu0 %v4003, 32
  %v4006 = vpop.permute.xlu0 %4005
  %v4008 = vsel %vm77, %v4006, %v3874
  %v4009 = vpack.c.bf16 %v4008, %v4008
  %v4010 = vld [vmem:[%s11] sm:$0xf]
  %v4011 = vld [vmem:[%s11 + $0x4] sm:$0xf]
  %v4012 = vld [vmem:[%s11 + $0x8] sm:$0xf]
  %v4013 = vld [vmem:[%s11 + $0xc] sm:$0xf]
  %v4014 = vld [vmem:[%s11 + $0x10] sm:$0xf]
  %v4015 = vld [vmem:[%s11 + $0x14] sm:$0xf]
  %v4016 = vld [vmem:[%s11 + $0x18] sm:$0xf]
  %v4017 = vld [vmem:[%s11 + $0x1c] sm:$0xf]
  %v4018 = vld [vmem:[%s12] sm:$0x1]
  %v4020 = vlaneseq
  %v4021 = vshrl.u32 %v4020, 7
  %v4022 = vsub.s32 0, %v4021
  %v4023 = vrot.slane %v4018, %v4022
  %v4033 = vunpack.c.l.b16 %v4010
  %v4034 = vunpack.c.l.b16 %v4011
  %v4035 = vunpack.c.l.b16 %v4012
  %v4036 = vunpack.c.l.b16 %v4013
  %v4037 = vunpack.c.l.b16 %v4014
  %v4038 = vunpack.c.l.b16 %v4015
  %v4039 = vunpack.c.l.b16 %v4016
  %v4040 = vunpack.c.l.b16 %v4017
  %v4041 = vpack.c.b16 %v4034, %v4033
  %v4042 = vpack.c.b16 %v4036, %v4035
  %v4043 = vpack.c.b16 %v4038, %v4037
  %v4044 = vpack.c.b16 %v4040, %v4039
  %v4050 = vsel %vm2409, %v4009, 0
  %4052 = vmatprep.subr.bf16.mxu0 0
  %4053 = vmatpush1.bf16.msra.mxu0 0
  %4054 = vmatprep.subr.bf16.mxu0 0
  %4055 = vmatpush1.bf16.msra.mxu0 0
  %4056 = vmatprep.subr.bf16.mxu0 0
  %4057 = vmatpush1.bf16.msra.mxu0 0
  %4058 = vmatprep.subr.bf16.mxu0 0
  %4059 = vmatpush1.bf16.msra.mxu0 0
  %4060 = vmatprep.subr.bf16.mxu0 0
  %4061 = vmatpush1.bf16.msra.mxu0 %v4044
  %4062 = vmatprep.subr.bf16.mxu0 0
  %4063 = vmatpush1.bf16.msra.mxu0 %v4043
  %4064 = vmatprep.subr.bf16.mxu0 0
  %4065 = vmatpush1.bf16.msra.mxu0 %v4042
  %4066 = vmatprep.subr.bf16.mxu0 0
  %4067 = vmatpush1.bf16.msra.mxu0 %v4041
  %4068 = vmatprep.subr.bf16.mxu0 0
  %4069 = vmatpush2.bf16.msra.mxu0 0
  %4070 = vmatprep.subr.bf16.mxu0 0
  %4071 = vmatpush2.bf16.msra.mxu0 0
  %4072 = vmatprep.subr.bf16.mxu0 0
  %4073 = vmatpush2.bf16.msra.mxu0 0
  %4074 = vmatprep.subr.bf16.mxu0 0
  %4075 = vmatpush2.bf16.msra.mxu0 0
  %4076 = vmatprep.subr.bf16.mxu0 0
  %4077 = vmatpush2.bf16.msra.mxu0 0
  %4078 = vmatprep.subr.bf16.mxu0 0
  %4079 = vmatpush2.bf16.msra.mxu0 0
  %4080 = vmatprep.subr.bf16.mxu0 0
  %4081 = vmatpush2.bf16.msra.mxu0 0
  %4082 = vmatprep.subr.bf16.mxu0 0
  %4083 = vmatpush2.bf16.msra.mxu0 0
  %4084 = vmatprep.mubr.bf16.mxu0 0
  %4085 = vmatmul.mubr.bf16.gmra.mxu0 %v4050
  %v4086 = vpop.f32.mrf.mxu0
  %v4087 = vadd.f32 %v4023, %v4086
  %v4088 = vpop.f32.mrf.mxu0
  %v4089 = vpop.f32.mrf.mxu0
  %v4090 = vpop.f32.mrf.mxu0
  %4091 = vdwg.mxu0
  %v4094 = vunpack.c.l.s4 1966171168
  %v4095 = vunpack.c.0.s8 %v4094
  %v4096 = vlaneseq
  %v4097 = vshrl.u32 %v4096, 7
  %v4098 = vsub.s32 %v4095, %v4097
  %v4099 = vrot.slane %v4087, %v4098
  %v4100 = vcombine.high %v4099, %v4099
  %v4102 = vunpack.c.l.s4 1966171168
  %v4103 = vunpack.c.0.s8 %v4102
  %v4104 = vlaneseq
  %v4105 = vshrl.u32 %v4104, 7
  %v4106 = vsub.s32 %v4103, %v4105
  %v4107 = vrot.slane %v4099, %v4106
  %v4109 = vunpack.c.l.s4 1966171168
  %v4110 = vunpack.c.0.s8 %v4109
  %v4111 = vlaneseq
  %v4112 = vshrl.u32 %v4111, 7
  %v4113 = vsub.s32 %v4110, %v4112
  %v4114 = vrot.slane %v4100, %v4113
  %v4115 = vcombine.high %v4107, %v4107
  %v4116 = vcombine.high %v4114, %v4114
  %4121 = vst [vmem:[%s14 + $0x3] sm:$0x1] %v4107
  %4122 = vst [vmem:[%s14 + $0xb] sm:$0x1] %v4114
  %4123 = vst [vmem:[%s14 + $0x13] sm:$0x1] %v4115
  %4124 = vst [vmem:[%s14 + $0x1b] sm:$0x1] %v4116
  %v4125 = vsel %vm2668, %v4087, -inf
  %4126 = vmax.xlane.f32.xlu0 %v4125
  %v4127 = vpop.xlane.xlu0 %4126
  %vm4128 = vcmp.eq.f32.partialorder %v4087, %v4127
  %v4129 = vsel %vm4128, %v1968, 128
  %v4130 = vsel %vm2668, %v4129, 2147483647
  %v4131 = vand.u32 %v4130, 65535
  %v4132 = vshra.s32 %v4130, 16
  %v4133 = vcvt.s32.f32 %v4131
  %v4134 = vcvt.s32.f32 %v4132
  %4135 = vmin.xlane.f32.xlu0 %v4134
  %v4136 = vpop.xlane.xlu0 %4135
  %vm4137 = vcmp.eq.f32.partialorder %v4134, %v4136
  %v4138 = vsel %vm4137, %v4133, inf
  %4139 = vmin.xlane.f32.xlu0 %v4138
  %v4140 = vpop.xlane.xlu0 %4139
  %v4141 = vcvt.f32.s32 %v4140
  %v4142 = vcvt.f32.s32 %v4136
  %v4143 = vshll.u32 %v4142, 16
  %v4144 = vadd.s32 %v4143, %v4141
  %vm4145 = vcmp.eq.s32.totalorder %v1968, %v4144
  %v4146 = vsel %vm4145, 1, 0
  %v4147 = vcvt.s32.f32 %v4146
  %v4148 = vpack.c.bf16 %v4147, %v4147
  %v4149 = vld [vmem:[%s13] sm:$0xf]
  %v4150 = vld [vmem:[%s13 + $0x4] sm:$0xf]
  %v4151 = vld [vmem:[%s13 + $0x8] sm:$0xf]
  %v4152 = vld [vmem:[%s13 + $0xc] sm:$0xf]
  %v4153 = vld [vmem:[%s13 + $0x10] sm:$0xf]
  %v4154 = vld [vmem:[%s13 + $0x14] sm:$0xf]
  %v4155 = vld [vmem:[%s13 + $0x18] sm:$0xf]
  %v4156 = vld [vmem:[%s13 + $0x1c] sm:$0xf]
  %v4157 = vld [vmem:[%s13 + $0x20] sm:$0xf]
  %v4158 = vld [vmem:[%s13 + $0x24] sm:$0xf]
  %v4159 = vld [vmem:[%s13 + $0x28] sm:$0xf]
  %v4160 = vld [vmem:[%s13 + $0x2c] sm:$0xf]
  %v4161 = vld [vmem:[%s13 + $0x30] sm:$0xf]
  %v4162 = vld [vmem:[%s13 + $0x34] sm:$0xf]
  %v4163 = vld [vmem:[%s13 + $0x38] sm:$0xf]
  %v4164 = vld [vmem:[%s13 + $0x3c] sm:$0xf]
  %v4181 = vunpack.c.l.b16 %v4149
  %v4182 = vunpack.c.l.b16 %v4150
  %v4183 = vunpack.c.l.b16 %v4151
  %v4184 = vunpack.c.l.b16 %v4152
  %v4185 = vunpack.c.l.b16 %v4153
  %v4186 = vunpack.c.l.b16 %v4154
  %v4187 = vunpack.c.l.b16 %v4155
  %v4188 = vunpack.c.l.b16 %v4156
  %v4189 = vunpack.c.l.b16 %v4157
  %v4190 = vunpack.c.l.b16 %v4158
  %v4191 = vunpack.c.l.b16 %v4159
  %v4192 = vunpack.c.l.b16 %v4160
  %v4193 = vunpack.c.l.b16 %v4161
  %v4194 = vunpack.c.l.b16 %v4162
  %v4195 = vunpack.c.l.b16 %v4163
  %v4196 = vunpack.c.l.b16 %v4164
  %v4197 = vpack.c.b16 %v4182, %v4181
  %v4198 = vpack.c.b16 %v4184, %v4183
  %v4199 = vpack.c.b16 %v4186, %v4185
  %v4200 = vpack.c.b16 %v4188, %v4187
  %v4201 = vpack.c.b16 %v4190, %v4189
  %v4202 = vpack.c.b16 %v4192, %v4191
  %v4203 = vpack.c.b16 %v4194, %v4193
  %v4204 = vpack.c.b16 %v4196, %v4195
  %4213 = vmatprep.subr.bf16.mxu0 0
  %4214 = vmatpush1.bf16.msra.mxu0 %v4204
  %4215 = vmatprep.subr.bf16.mxu0 0
  %4216 = vmatpush1.bf16.msra.mxu0 %v4203
  %4217 = vmatprep.subr.bf16.mxu0 0
  %4218 = vmatpush1.bf16.msra.mxu0 %v4202
  %4219 = vmatprep.subr.bf16.mxu0 0
  %4220 = vmatpush1.bf16.msra.mxu0 %v4201
  %4221 = vmatprep.subr.bf16.mxu0 0
  %4222 = vmatpush1.bf16.msra.mxu0 %v4200
  %4223 = vmatprep.subr.bf16.mxu0 0
  %4224 = vmatpush1.bf16.msra.mxu0 %v4199
  %4225 = vmatprep.subr.bf16.mxu0 0
  %4226 = vmatpush1.bf16.msra.mxu0 %v4198
  %4227 = vmatprep.subr.bf16.mxu0 0
  %4228 = vmatpush1.bf16.msra.mxu0 %v4197
  %4229 = vmatprep.subr.bf16.mxu0 0
  %4230 = vmatpush2.bf16.msra.mxu0 0
  %4231 = vmatprep.subr.bf16.mxu0 0
  %4232 = vmatpush2.bf16.msra.mxu0 0
  %4233 = vmatprep.subr.bf16.mxu0 0
  %4234 = vmatpush2.bf16.msra.mxu0 0
  %4235 = vmatprep.subr.bf16.mxu0 0
  %4236 = vmatpush2.bf16.msra.mxu0 0
  %4237 = vmatprep.subr.bf16.mxu0 0
  %4238 = vmatpush2.bf16.msra.mxu0 0
  %4239 = vmatprep.subr.bf16.mxu0 0
  %4240 = vmatpush2.bf16.msra.mxu0 0
  %4241 = vmatprep.subr.bf16.mxu0 0
  %4242 = vmatpush2.bf16.msra.mxu0 0
  %4243 = vmatprep.subr.bf16.mxu0 0
  %4244 = vmatpush2.bf16.msra.mxu0 0
  %4245 = vmatprep.mubr.bf16.mxu0 0
  %4246 = vmatmul.mubr.bf16.gmra.mxu0 %v4148
  %v4247 = vpop.f32.mrf.mxu0
  %v4248 = vadd.f32 0.0, %v4247
  %v4249 = vpop.f32.mrf.mxu0
  %v4250 = vpop.f32.mrf.mxu0
  %v4251 = vpop.f32.mrf.mxu0
  %4252 = vdwg.mxu0
  %v4253 = vpack.c.bf16 %v4003, %v4003
  %v4254 = vld [vmem:[%s5] sm:$0xf]
  %v4255 = vld [vmem:[%s5 + $0x4] sm:$0xf]
  %v4256 = vld [vmem:[%s5 + $0x8] sm:$0xf]
  %v4257 = vld [vmem:[%s5 + $0xc] sm:$0xf]
  %v4258 = vld [vmem:[%s6] sm:$0x1]
  %v4260 = vlaneseq
  %v4261 = vshrl.u32 %v4260, 7
  %v4262 = vsub.s32 0, %v4261
  %v4263 = vrot.slane %v4258, %v4262
  %4266 = vrot.lane.b32.xlu0 %v4253, 32
  %v4267 = vpop.permute.xlu0 %4266
  %v4272 = vunpack.c.l.b16 %v4254
  %v4273 = vunpack.c.l.b16 %v4255
  %v4274 = vunpack.c.l.b16 %v4256
  %v4275 = vunpack.c.l.b16 %v4257
  %v4276 = vpack.c.b16 %v4273, %v4272
  %v4277 = vpack.c.b16 %v4275, %v4274
  %v4281 = vsel %vm77, %v4267, 0
  %4283 = vmatprep.subr.bf16.mxu0 0
  %4284 = vmatpush1.bf16.msra.mxu0 0
  %4285 = vmatprep.subr.bf16.mxu0 0
  %4286 = vmatpush1.bf16.msra.mxu0 0
  %4287 = vmatprep.subr.bf16.mxu0 0
  %4288 = vmatpush1.bf16.msra.mxu0 0
  %4289 = vmatprep.subr.bf16.mxu0 0
  %4290 = vmatpush1.bf16.msra.mxu0 0
  %4291 = vmatprep.subr.bf16.mxu0 0
  %4292 = vmatpush1.bf16.msra.mxu0 0
  %4293 = vmatprep.subr.bf16.mxu0 0
  %4294 = vmatpush1.bf16.msra.mxu0 0
  %4295 = vmatprep.subr.bf16.mxu0 0
  %4296 = vmatpush1.bf16.msra.mxu0 %v4277
  %4297 = vmatprep.subr.bf16.mxu0 0
  %4298 = vmatpush1.bf16.msra.mxu0 %v4276
  %4299 = vmatprep.subr.bf16.mxu0 0
  %4300 = vmatpush2.bf16.msra.mxu0 0
  %4301 = vmatprep.subr.bf16.mxu0 0
  %4302 = vmatpush2.bf16.msra.mxu0 0
  %4303 = vmatprep.subr.bf16.mxu0 0
  %4304 = vmatpush2.bf16.msra.mxu0 0
  %4305 = vmatprep.subr.bf16.mxu0 0
  %4306 = vmatpush2.bf16.msra.mxu0 0
  %4307 = vmatprep.subr.bf16.mxu0 0
  %4308 = vmatpush2.bf16.msra.mxu0 0
  %4309 = vmatprep.subr.bf16.mxu0 0
  %4310 = vmatpush2.bf16.msra.mxu0 0
  %4311 = vmatprep.subr.bf16.mxu0 0
  %4312 = vmatpush2.bf16.msra.mxu0 0
  %4313 = vmatprep.subr.bf16.mxu0 0
  %4314 = vmatpush2.bf16.msra.mxu0 0
  %4315 = vmatprep.mubr.bf16.mxu0 0
  %4316 = vmatmul.mubr.bf16.gmra.mxu0 %v4281
  %v4317 = vpop.f32.mrf.mxu0
  %v4318 = vadd.f32 %v4263, %v4317
  %v4319 = vpop.f32.mrf.mxu0
  %v4320 = vpop.f32.mrf.mxu0
  %v4321 = vpop.f32.mrf.mxu0
  %4322 = vdwg.mxu0
  %v4325 = vunpack.c.l.s4 1966171168
  %v4326 = vunpack.c.0.s8 %v4325
  %v4327 = vlaneseq
  %v4328 = vshrl.u32 %v4327, 7
  %v4329 = vsub.s32 %v4326, %v4328
  %v4330 = vrot.slane %v4318, %v4329
  %v4331 = vcombine.high %v4330, %v4330
  %v4333 = vunpack.c.l.s4 1966171168
  %v4334 = vunpack.c.0.s8 %v4333
  %v4335 = vlaneseq
  %v4336 = vshrl.u32 %v4335, 7
  %v4337 = vsub.s32 %v4334, %v4336
  %v4338 = vrot.slane %v4330, %v4337
  %v4340 = vunpack.c.l.s4 1966171168
  %v4341 = vunpack.c.0.s8 %v4340
  %v4342 = vlaneseq
  %v4343 = vshrl.u32 %v4342, 7
  %v4344 = vsub.s32 %v4341, %v4343
  %v4345 = vrot.slane %v4331, %v4344
  %v4346 = vcombine.high %v4338, %v4338
  %v4347 = vcombine.high %v4345, %v4345
  %v4348 = vlaneseq
  %v4349 = vshrl.u32 %v4348, 7
  %v4350 = vsub.s32 0, %v4349
  %v4351 = vrot.slane %v4338, %v4350
  %v4352 = vlaneseq
  %v4353 = vshrl.u32 %v4352, 7
  %v4354 = vsub.s32 0, %v4353
  %v4355 = vrot.slane %v4345, %v4354
  %v4356 = vlaneseq
  %v4357 = vshrl.u32 %v4356, 7
  %v4358 = vsub.s32 0, %v4357
  %v4359 = vrot.slane %v4346, %v4358
  %v4360 = vlaneseq
  %v4361 = vshrl.u32 %v4360, 7
  %v4362 = vsub.s32 0, %v4361
  %v4363 = vrot.slane %v4347, %v4362
  %v4368 = vmul.f32 %v4351, %v1948
  %v4369 = vmul.f32 %v4355, %v1951
  %v4370 = vmul.f32 %v4359, %v1956
  %v4371 = vmul.f32 %v4363, %v1959
  %v4372 = vpack.c.bf16 %v4369, %v4368
  %v4373 = vpack.c.bf16 %v4371, %v4370
  %v4375 = vsel %vm77, %v4372, 0
  %v4378 = vsel %vm77, %v4373, 0
  %4380 = vmatprep.subr.bf16.mxu0 0
  %4381 = vmatpush1.bf16.msra.mxu0 0
  %4382 = vmatprep.subr.bf16.mxu0 0
  %4383 = vmatpush1.bf16.msra.mxu0 0
  %4384 = vmatprep.subr.bf16.mxu0 0
  %4385 = vmatpush1.bf16.msra.mxu0 0
  %4386 = vmatprep.subr.bf16.mxu0 0
  %4387 = vmatpush1.bf16.msra.mxu0 0
  %4388 = vmatprep.subr.bf16.mxu0 0
  %4389 = vmatpush1.bf16.msra.mxu0 0
  %4390 = vmatprep.subr.bf16.mxu0 0
  %4391 = vmatpush1.bf16.msra.mxu0 0
  %4392 = vmatprep.subr.bf16.mxu0 0
  %4393 = vmatpush1.bf16.msra.mxu0 %v1993
  %4394 = vmatprep.subr.bf16.mxu0 0
  %4395 = vmatpush1.bf16.msra.mxu0 %v1992
  %4396 = vmatprep.subr.bf16.mxu0 0
  %4397 = vmatpush2.bf16.msra.mxu0 0
  %4398 = vmatprep.subr.bf16.mxu0 0
  %4399 = vmatpush2.bf16.msra.mxu0 0
  %4400 = vmatprep.subr.bf16.mxu0 0
  %4401 = vmatpush2.bf16.msra.mxu0 0
  %4402 = vmatprep.subr.bf16.mxu0 0
  %4403 = vmatpush2.bf16.msra.mxu0 0
  %4404 = vmatprep.subr.bf16.mxu0 0
  %4405 = vmatpush2.bf16.msra.mxu0 0
  %4406 = vmatprep.subr.bf16.mxu0 0
  %4407 = vmatpush2.bf16.msra.mxu0 0
  %4408 = vmatprep.subr.bf16.mxu0 0
  %4409 = vmatpush2.bf16.msra.mxu0 0
  %4410 = vmatprep.subr.bf16.mxu0 0
  %4411 = vmatpush2.bf16.msra.mxu0 0
  %4412 = vmatprep.mubr.bf16.mxu0 0
  %4413 = vmatmul.mubr.bf16.gmra.mxu0 %v4375
  %v4414 = vpop.f32.mrf.mxu0
  %v4415 = vadd.f32 0.0, %v4414
  %v4416 = vpop.f32.mrf.mxu0
  %v4417 = vpop.f32.mrf.mxu0
  %v4418 = vadd.f32 0.0, %v4417
  %v4419 = vpop.f32.mrf.mxu0
  %4420 = vmatprep.mubr.bf16.mxu0 0
  %4421 = vmatmul.mubr.bf16.gmra.mxu0 %v4378
  %v4422 = vpop.f32.mrf.mxu0
  %v4423 = vadd.f32 0.0, %v4422
  %v4424 = vpop.f32.mrf.mxu0
  %v4425 = vpop.f32.mrf.mxu0
  %v4426 = vadd.f32 0.0, %v4425
  %v4427 = vpop.f32.mrf.mxu0
  %4428 = vdwg.mxu0
  %v4429 = vsel %vm2202, %v4415, -inf
  %v4430 = vrot.slane %v4429, 4
  %v4431 = vmax.f32 %v4429, %v4430
  %v4432 = vrot.slane %v4431, 2
  %v4433 = vmax.f32 %v4431, %v4432
  %v4434 = vrot.slane %v4433, 1
  %v4435 = vmax.f32 %v4433, %v4434
  %v4436 = vsel %vm2202, %v4418, -inf
  %v4437 = vrot.slane %v4436, 4
  %v4438 = vmax.f32 %v4436, %v4437
  %v4439 = vrot.slane %v4438, 2
  %v4440 = vmax.f32 %v4438, %v4439
  %v4441 = vrot.slane %v4440, 1
  %v4442 = vmax.f32 %v4440, %v4441
  %v4443 = vsel %vm2202, %v4423, -inf
  %v4444 = vrot.slane %v4443, 4
  %v4445 = vmax.f32 %v4443, %v4444
  %v4446 = vrot.slane %v4445, 2
  %v4447 = vmax.f32 %v4445, %v4446
  %v4448 = vrot.slane %v4447, 1
  %v4449 = vmax.f32 %v4447, %v4448
  %v4450 = vsel %vm2202, %v4426, -inf
  %v4451 = vrot.slane %v4450, 4
  %v4452 = vmax.f32 %v4450, %v4451
  %v4453 = vrot.slane %v4452, 2
  %v4454 = vmax.f32 %v4452, %v4453
  %v4455 = vrot.slane %v4454, 1
  %v4456 = vmax.f32 %v4454, %v4455
  %v4457 = vsub.f32 %v4415, %v4435
  %v4458 = vsub.f32 %v4418, %v4442
  %v4459 = vsub.f32 %v4423, %v4449
  %v4460 = vsub.f32 %v4426, %v4456
  %v4461 = vmul.f32 %v4457, 1.442695
  %v4462 = vpow.pop %v4461
  %v4463 = vmul.f32 %v4458, 1.442695
  %v4464 = vpow.pop %v4463
  %v4465 = vmul.f32 %v4459, 1.442695
  %v4466 = vpow.pop %v4465
  %v4467 = vmul.f32 %v4460, 1.442695
  %v4468 = vpow.pop %v4467
  %v4469 = vsel %vm2202, %v4462, 0.0
  %v4470 = vrot.slane %v4469, 4
  %v4471 = vadd.f32 %v4469, %v4470
  %v4472 = vrot.slane %v4471, 2
  %v4473 = vadd.f32 %v4471, %v4472
  %v4474 = vrot.slane %v4473, 1
  %v4475 = vadd.f32 %v4473, %v4474
  %v4476 = vsel %vm2202, %v4464, 0.0
  %v4477 = vrot.slane %v4476, 4
  %v4478 = vadd.f32 %v4476, %v4477
  %v4479 = vrot.slane %v4478, 2
  %v4480 = vadd.f32 %v4478, %v4479
  %v4481 = vrot.slane %v4480, 1
  %v4482 = vadd.f32 %v4480, %v4481
  %v4483 = vsel %vm2202, %v4466, 0.0
  %v4484 = vrot.slane %v4483, 4
  %v4485 = vadd.f32 %v4483, %v4484
  %v4486 = vrot.slane %v4485, 2
  %v4487 = vadd.f32 %v4485, %v4486
  %v4488 = vrot.slane %v4487, 1
  %v4489 = vadd.f32 %v4487, %v4488
  %v4490 = vsel %vm2202, %v4468, 0.0
  %v4491 = vrot.slane %v4490, 4
  %v4492 = vadd.f32 %v4490, %v4491
  %v4493 = vrot.slane %v4492, 2
  %v4494 = vadd.f32 %v4492, %v4493
  %v4495 = vrot.slane %v4494, 1
  %v4496 = vadd.f32 %v4494, %v4495
  %v4497 = vrcp.pop %v4475
  %v4498 = vrcp.pop %v4482
  %v4499 = vrcp.pop %v4489
  %v4500 = vrcp.pop %v4496
  %v4501 = vmul.f32 %v4462, %v4497
  %v4502 = vmul.f32 %v4464, %v4498
  %v4503 = vmul.f32 %v4466, %v4499
  %v4504 = vmul.f32 %v4468, %v4500
  %v4505 = vpack.c.bf16 %v4502, %v4501
  %v4506 = vpack.c.bf16 %v4504, %v4503
  %v4508 = vsel %vm2202, %v4505, 0
  %v4511 = vsel %vm2202, %v4506, 0
  %4513 = vmatprep.subr.bf16.mxu0 0
  %4514 = vmatpush1.bf16.msra.mxu0 0
  %4515 = vmatprep.subr.bf16.mxu0 0
  %4516 = vmatpush1.bf16.msra.mxu0 0
  %4517 = vmatprep.subr.bf16.mxu0 0
  %4518 = vmatpush1.bf16.msra.mxu0 0
  %4519 = vmatprep.subr.bf16.mxu0 0
  %4520 = vmatpush1.bf16.msra.mxu0 0
  %4521 = vmatprep.subr.bf16.mxu0 0
  %4522 = vmatpush1.bf16.msra.mxu0 0
  %4523 = vmatprep.subr.bf16.mxu0 0
  %4524 = vmatpush1.bf16.msra.mxu0 0
  %4525 = vmatprep.subr.bf16.mxu0 0
  %4526 = vmatpush1.bf16.msra.mxu0 0
  %4527 = vmatprep.subr.bf16.mxu0 0
  %4528 = vmatpush1.bf16.msra.mxu0 %v2289
  %4529 = vmatprep.subr.bf16.mxu0 0
  %4530 = vmatpush2.bf16.msra.mxu0 0
  %4531 = vmatprep.subr.bf16.mxu0 0
  %4532 = vmatpush2.bf16.msra.mxu0 0
  %4533 = vmatprep.subr.bf16.mxu0 0
  %4534 = vmatpush2.bf16.msra.mxu0 0
  %4535 = vmatprep.subr.bf16.mxu0 0
  %4536 = vmatpush2.bf16.msra.mxu0 0
  %4537 = vmatprep.subr.bf16.mxu0 0
  %4538 = vmatpush2.bf16.msra.mxu0 0
  %4539 = vmatprep.subr.bf16.mxu0 0
  %4540 = vmatpush2.bf16.msra.mxu0 0
  %4541 = vmatprep.subr.bf16.mxu0 0
  %4542 = vmatpush2.bf16.msra.mxu0 0
  %4543 = vmatprep.subr.bf16.mxu0 0
  %4544 = vmatpush2.bf16.msra.mxu0 0
  %4545 = vmatprep.mubr.bf16.mxu0 0
  %4546 = vmatmul.mubr.bf16.gmra.mxu0 %v4508
  %v4547 = vpop.f32.mrf.mxu0
  %v4548 = vadd.f32 0.0, %v4547
  %v4549 = vpop.f32.mrf.mxu0
  %v4550 = vpop.f32.mrf.mxu0
  %v4551 = vadd.f32 0.0, %v4550
  %v4552 = vpop.f32.mrf.mxu0
  %4553 = vmatprep.mubr.bf16.mxu0 0
  %4554 = vmatmul.mubr.bf16.gmra.mxu0 %v4511
  %v4555 = vpop.f32.mrf.mxu0
  %v4556 = vadd.f32 0.0, %v4555
  %v4557 = vpop.f32.mrf.mxu0
  %v4558 = vpop.f32.mrf.mxu0
  %v4559 = vadd.f32 0.0, %v4558
  %v4560 = vpop.f32.mrf.mxu0
  %4561 = vdwg.mxu0
  %v4562 = vmul.f32 %v4548, %v2345
  %v4563 = vmul.f32 %v4551, %v2347
  %v4564 = vmul.f32 %v4556, %v2349
  %v4565 = vmul.f32 %v4559, %v2351
  %v4566 = vsel %vm77, %v4562, 0.0
  %v4567 = vrot.slane %v4566, 4
  %v4568 = vadd.f32 %v4566, %v4567
  %v4569 = vrot.slane %v4568, 2
  %v4570 = vadd.f32 %v4568, %v4569
  %v4571 = vrot.slane %v4570, 1
  %v4572 = vadd.f32 %v4570, %v4571
  %v4573 = vsel %vm77, %v4563, 0.0
  %v4574 = vrot.slane %v4573, 4
  %v4575 = vadd.f32 %v4573, %v4574
  %v4576 = vrot.slane %v4575, 2
  %v4577 = vadd.f32 %v4575, %v4576
  %v4578 = vrot.slane %v4577, 1
  %v4579 = vadd.f32 %v4577, %v4578
  %v4580 = vsel %vm77, %v4564, 0.0
  %v4581 = vrot.slane %v4580, 4
  %v4582 = vadd.f32 %v4580, %v4581
  %v4583 = vrot.slane %v4582, 2
  %v4584 = vadd.f32 %v4582, %v4583
  %v4585 = vrot.slane %v4584, 1
  %v4586 = vadd.f32 %v4584, %v4585
  %v4587 = vsel %vm77, %v4565, 0.0
  %v4588 = vrot.slane %v4587, 4
  %v4589 = vadd.f32 %v4587, %v4588
  %v4590 = vrot.slane %v4589, 2
  %v4591 = vadd.f32 %v4589, %v4590
  %v4592 = vrot.slane %v4591, 1
  %v4593 = vadd.f32 %v4591, %v4592
  %v4598 = vsel %vm338, %v4579, %v4572
  %v4599 = vsel %vm341, %v4586, %v4598
  %v4600 = vsel %vm344, %v4593, %v4599
  %4601 = vrot.lane.b32.xlu0 %v4600, 32
  %v4602 = vpop.permute.xlu0 %4601
  %4604 = vrot.lane.b32.xlu0 %v4003, 96
  %v4605 = vpop.permute.xlu0 %4604
  %v4607 = vsel %vm77, %v4248, %v4602
  %v4608 = vsel %vm2409, %v4607, %v4605
  %v4609 = vpack.c.bf16 %v4608, %v4608
  %v4610 = vld [vmem:[%s9] sm:$0xf]
  %v4611 = vld [vmem:[%s9 + $0x4] sm:$0xf]
  %v4612 = vld [vmem:[%s9 + $0x8] sm:$0xf]
  %v4613 = vld [vmem:[%s9 + $0xc] sm:$0xf]
  %v4614 = vld [vmem:[%s9 + $0x10] sm:$0xf]
  %v4615 = vld [vmem:[%s9 + $0x14] sm:$0xf]
  %v4616 = vld [vmem:[%s9 + $0x18] sm:$0xf]
  %v4617 = vld [vmem:[%s9 + $0x1c] sm:$0xf]
  %v4618 = vld [vmem:[%s9 + $0x20] sm:$0xf]
  %v4619 = vld [vmem:[%s9 + $0x24] sm:$0xf]
  %v4620 = vld [vmem:[%s9 + $0x28] sm:$0xf]
  %v4621 = vld [vmem:[%s9 + $0x2c] sm:$0xf]
  %v4622 = vld [vmem:[%s10] sm:$0x1]
  %v4624 = vlaneseq
  %v4625 = vshrl.u32 %v4624, 7
  %v4626 = vsub.s32 0, %v4625
  %v4627 = vrot.slane %v4622, %v4626
  %v4641 = vunpack.c.l.b16 %v4610
  %v4642 = vunpack.c.l.b16 %v4611
  %v4643 = vunpack.c.l.b16 %v4612
  %v4644 = vunpack.c.l.b16 %v4613
  %v4645 = vunpack.c.l.b16 %v4614
  %v4646 = vunpack.c.l.b16 %v4615
  %v4647 = vunpack.c.l.b16 %v4616
  %v4648 = vunpack.c.l.b16 %v4617
  %v4649 = vunpack.c.l.b16 %v4618
  %v4650 = vunpack.c.l.b16 %v4619
  %v4651 = vunpack.c.l.b16 %v4620
  %v4652 = vunpack.c.l.b16 %v4621
  %v4653 = vpack.c.b16 %v4642, %v4641
  %v4654 = vpack.c.b16 %v4644, %v4643
  %v4655 = vpack.c.b16 %v4646, %v4645
  %v4656 = vpack.c.b16 %v4648, %v4647
  %v4657 = vpack.c.b16 %v4650, %v4649
  %v4658 = vpack.c.b16 %v4652, %v4651
  %v4666 = vsel %vm2467, %v4609, 0
  %4668 = vmatprep.subr.bf16.mxu0 0
  %4669 = vmatpush1.bf16.msra.mxu0 0
  %4670 = vmatprep.subr.bf16.mxu0 0
  %4671 = vmatpush1.bf16.msra.mxu0 0
  %4672 = vmatprep.subr.bf16.mxu0 0
  %4673 = vmatpush1.bf16.msra.mxu0 %v4658
  %4674 = vmatprep.subr.bf16.mxu0 0
  %4675 = vmatpush1.bf16.msra.mxu0 %v4657
  %4676 = vmatprep.subr.bf16.mxu0 0
  %4677 = vmatpush1.bf16.msra.mxu0 %v4656
  %4678 = vmatprep.subr.bf16.mxu0 0
  %4679 = vmatpush1.bf16.msra.mxu0 %v4655
  %4680 = vmatprep.subr.bf16.mxu0 0
  %4681 = vmatpush1.bf16.msra.mxu0 %v4654
  %4682 = vmatprep.subr.bf16.mxu0 0
  %4683 = vmatpush1.bf16.msra.mxu0 %v4653
  %4684 = vmatprep.subr.bf16.mxu0 0
  %4685 = vmatpush2.bf16.msra.mxu0 0
  %4686 = vmatprep.subr.bf16.mxu0 0
  %4687 = vmatpush2.bf16.msra.mxu0 0
  %4688 = vmatprep.subr.bf16.mxu0 0
  %4689 = vmatpush2.bf16.msra.mxu0 0
  %4690 = vmatprep.subr.bf16.mxu0 0
  %4691 = vmatpush2.bf16.msra.mxu0 0
  %4692 = vmatprep.subr.bf16.mxu0 0
  %4693 = vmatpush2.bf16.msra.mxu0 0
  %4694 = vmatprep.subr.bf16.mxu0 0
  %4695 = vmatpush2.bf16.msra.mxu0 0
  %4696 = vmatprep.subr.bf16.mxu0 0
  %4697 = vmatpush2.bf16.msra.mxu0 0
  %4698 = vmatprep.subr.bf16.mxu0 0
  %4699 = vmatpush2.bf16.msra.mxu0 0
  %4700 = vmatprep.mubr.bf16.mxu0 0
  %4701 = vmatmul.mubr.bf16.gmra.mxu0 %v4666
  %v4702 = vpop.f32.mrf.mxu0
  %v4703 = vadd.f32 %v4627, %v4702
  %v4704 = vpop.f32.mrf.mxu0
  %v4705 = vpop.f32.mrf.mxu0
  %v4706 = vpop.f32.mrf.mxu0
  %4707 = vdwg.mxu0
  %v4708 = vxor.u32 %v4703, 2147483648
  %v4709 = vmul.f32 %v4708, 1.442695
  %v4710 = vpow.pop %v4709
  %v4711 = vadd.f32 %v4710, 1.0
  %v4712 = vrcp.pop %v4711
  %v4713 = vmul.f32 1.0, %v4712
  %v4714 = vtanh.pop %v4703
  %v4715 = vmul.f32 %v4713, %v3997
  %4717 = vrot.lane.b32.xlu0 %v4714, 64
  %v4718 = vpop.permute.xlu0 %4717
  %v4720 = vmul.f32 %v4713, %v4718
  %4722 = vrot.lane.b32.xlu0 %v4720, 32
  %v4723 = vpop.permute.xlu0 %4722
  %v4725 = vadd.f32 %v4715, %v4723
  %v4726 = vtanh.pop %v4725
  %4728 = vrot.lane.b32.xlu0 %v4726, 64
  %v4729 = vpop.permute.xlu0 %4728
  %v4731 = vmul.f32 %v4713, %v4729
  %4733 = vrot.lane.b32.xlu0 %v4731, 32
  %v4734 = vpop.permute.xlu0 %4733
  %v4736 = vsel %vm77, %v4734, %v4602
  %v4737 = vpack.c.bf16 %v4736, %v4736
  %v4738 = vld [vmem:[%s11] sm:$0xf]
  %v4739 = vld [vmem:[%s11 + $0x4] sm:$0xf]
  %v4740 = vld [vmem:[%s11 + $0x8] sm:$0xf]
  %v4741 = vld [vmem:[%s11 + $0xc] sm:$0xf]
  %v4742 = vld [vmem:[%s11 + $0x10] sm:$0xf]
  %v4743 = vld [vmem:[%s11 + $0x14] sm:$0xf]
  %v4744 = vld [vmem:[%s11 + $0x18] sm:$0xf]
  %v4745 = vld [vmem:[%s11 + $0x1c] sm:$0xf]
  %v4746 = vld [vmem:[%s12] sm:$0x1]
  %v4748 = vlaneseq
  %v4749 = vshrl.u32 %v4748, 7
  %v4750 = vsub.s32 0, %v4749
  %v4751 = vrot.slane %v4746, %v4750
  %v4761 = vunpack.c.l.b16 %v4738
  %v4762 = vunpack.c.l.b16 %v4739
  %v4763 = vunpack.c.l.b16 %v4740
  %v4764 = vunpack.c.l.b16 %v4741
  %v4765 = vunpack.c.l.b16 %v4742
  %v4766 = vunpack.c.l.b16 %v4743
  %v4767 = vunpack.c.l.b16 %v4744
  %v4768 = vunpack.c.l.b16 %v4745
  %v4769 = vpack.c.b16 %v4762, %v4761
  %v4770 = vpack.c.b16 %v4764, %v4763
  %v4771 = vpack.c.b16 %v4766, %v4765
  %v4772 = vpack.c.b16 %v4768, %v4767
  %v4778 = vsel %vm2409, %v4737, 0
  %4780 = vmatprep.subr.bf16.mxu0 0
  %4781 = vmatpush1.bf16.msra.mxu0 0
  %4782 = vmatprep.subr.bf16.mxu0 0
  %4783 = vmatpush1.bf16.msra.mxu0 0
  %4784 = vmatprep.subr.bf16.mxu0 0
  %4785 = vmatpush1.bf16.msra.mxu0 0
  %4786 = vmatprep.subr.bf16.mxu0 0
  %4787 = vmatpush1.bf16.msra.mxu0 0
  %4788 = vmatprep.subr.bf16.mxu0 0
  %4789 = vmatpush1.bf16.msra.mxu0 %v4772
  %4790 = vmatprep.subr.bf16.mxu0 0
  %4791 = vmatpush1.bf16.msra.mxu0 %v4771
  %4792 = vmatprep.subr.bf16.mxu0 0
  %4793 = vmatpush1.bf16.msra.mxu0 %v4770
  %4794 = vmatprep.subr.bf16.mxu0 0
  %4795 = vmatpush1.bf16.msra.mxu0 %v4769
  %4796 = vmatprep.subr.bf16.mxu0 0
  %4797 = vmatpush2.bf16.msra.mxu0 0
  %4798 = vmatprep.subr.bf16.mxu0 0
  %4799 = vmatpush2.bf16.msra.mxu0 0
  %4800 = vmatprep.subr.bf16.mxu0 0
  %4801 = vmatpush2.bf16.msra.mxu0 0
  %4802 = vmatprep.subr.bf16.mxu0 0
  %4803 = vmatpush2.bf16.msra.mxu0 0
  %4804 = vmatprep.subr.bf16.mxu0 0
  %4805 = vmatpush2.bf16.msra.mxu0 0
  %4806 = vmatprep.subr.bf16.mxu0 0
  %4807 = vmatpush2.bf16.msra.mxu0 0
  %4808 = vmatprep.subr.bf16.mxu0 0
  %4809 = vmatpush2.bf16.msra.mxu0 0
  %4810 = vmatprep.subr.bf16.mxu0 0
  %4811 = vmatpush2.bf16.msra.mxu0 0
  %4812 = vmatprep.mubr.bf16.mxu0 0
  %4813 = vmatmul.mubr.bf16.gmra.mxu0 %v4778
  %v4814 = vpop.f32.mrf.mxu0
  %v4815 = vadd.f32 %v4751, %v4814
  %v4816 = vpop.f32.mrf.mxu0
  %v4817 = vpop.f32.mrf.mxu0
  %v4818 = vpop.f32.mrf.mxu0
  %4819 = vdwg.mxu0
  %v4822 = vunpack.c.l.s4 1966171168
  %v4823 = vunpack.c.0.s8 %v4822
  %v4824 = vlaneseq
  %v4825 = vshrl.u32 %v4824, 7
  %v4826 = vsub.s32 %v4823, %v4825
  %v4827 = vrot.slane %v4815, %v4826
  %v4828 = vcombine.high %v4827, %v4827
  %v4830 = vunpack.c.l.s4 1966171168
  %v4831 = vunpack.c.0.s8 %v4830
  %v4832 = vlaneseq
  %v4833 = vshrl.u32 %v4832, 7
  %v4834 = vsub.s32 %v4831, %v4833
  %v4835 = vrot.slane %v4827, %v4834
  %v4837 = vunpack.c.l.s4 1966171168
  %v4838 = vunpack.c.0.s8 %v4837
  %v4839 = vlaneseq
  %v4840 = vshrl.u32 %v4839, 7
  %v4841 = vsub.s32 %v4838, %v4840
  %v4842 = vrot.slane %v4828, %v4841
  %v4843 = vcombine.high %v4835, %v4835
  %v4844 = vcombine.high %v4842, %v4842
  %4849 = vst [vmem:[%s14 + $0x4] sm:$0x1] %v4835
  %4850 = vst [vmem:[%s14 + $0xc] sm:$0x1] %v4842
  %4851 = vst [vmem:[%s14 + $0x14] sm:$0x1] %v4843
  %4852 = vst [vmem:[%s14 + $0x1c] sm:$0x1] %v4844
  %v4853 = vsel %vm2668, %v4815, -inf
  %4854 = vmax.xlane.f32.xlu0 %v4853
  %v4855 = vpop.xlane.xlu0 %4854
  %vm4856 = vcmp.eq.f32.partialorder %v4815, %v4855
  %v4857 = vsel %vm4856, %v1968, 128
  %v4858 = vsel %vm2668, %v4857, 2147483647
  %v4859 = vand.u32 %v4858, 65535
  %v4860 = vshra.s32 %v4858, 16
  %v4861 = vcvt.s32.f32 %v4859
  %v4862 = vcvt.s32.f32 %v4860
  %4863 = vmin.xlane.f32.xlu0 %v4862
  %v4864 = vpop.xlane.xlu0 %4863
  %vm4865 = vcmp.eq.f32.partialorder %v4862, %v4864
  %v4866 = vsel %vm4865, %v4861, inf
  %4867 = vmin.xlane.f32.xlu0 %v4866
  %v4868 = vpop.xlane.xlu0 %4867
  %v4869 = vcvt.f32.s32 %v4868
  %v4870 = vcvt.f32.s32 %v4864
  %v4871 = vshll.u32 %v4870, 16
  %v4872 = vadd.s32 %v4871, %v4869
  %vm4873 = vcmp.eq.s32.totalorder %v1968, %v4872
  %v4874 = vsel %vm4873, 1, 0
  %v4875 = vcvt.s32.f32 %v4874
  %v4876 = vpack.c.bf16 %v4875, %v4875
  %v4877 = vld [vmem:[%s13] sm:$0xf]
  %v4878 = vld [vmem:[%s13 + $0x4] sm:$0xf]
  %v4879 = vld [vmem:[%s13 + $0x8] sm:$0xf]
  %v4880 = vld [vmem:[%s13 + $0xc] sm:$0xf]
  %v4881 = vld [vmem:[%s13 + $0x10] sm:$0xf]
  %v4882 = vld [vmem:[%s13 + $0x14] sm:$0xf]
  %v4883 = vld [vmem:[%s13 + $0x18] sm:$0xf]
  %v4884 = vld [vmem:[%s13 + $0x1c] sm:$0xf]
  %v4885 = vld [vmem:[%s13 + $0x20] sm:$0xf]
  %v4886 = vld [vmem:[%s13 + $0x24] sm:$0xf]
  %v4887 = vld [vmem:[%s13 + $0x28] sm:$0xf]
  %v4888 = vld [vmem:[%s13 + $0x2c] sm:$0xf]
  %v4889 = vld [vmem:[%s13 + $0x30] sm:$0xf]
  %v4890 = vld [vmem:[%s13 + $0x34] sm:$0xf]
  %v4891 = vld [vmem:[%s13 + $0x38] sm:$0xf]
  %v4892 = vld [vmem:[%s13 + $0x3c] sm:$0xf]
  %v4909 = vunpack.c.l.b16 %v4877
  %v4910 = vunpack.c.l.b16 %v4878
  %v4911 = vunpack.c.l.b16 %v4879
  %v4912 = vunpack.c.l.b16 %v4880
  %v4913 = vunpack.c.l.b16 %v4881
  %v4914 = vunpack.c.l.b16 %v4882
  %v4915 = vunpack.c.l.b16 %v4883
  %v4916 = vunpack.c.l.b16 %v4884
  %v4917 = vunpack.c.l.b16 %v4885
  %v4918 = vunpack.c.l.b16 %v4886
  %v4919 = vunpack.c.l.b16 %v4887
  %v4920 = vunpack.c.l.b16 %v4888
  %v4921 = vunpack.c.l.b16 %v4889
  %v4922 = vunpack.c.l.b16 %v4890
  %v4923 = vunpack.c.l.b16 %v4891
  %v4924 = vunpack.c.l.b16 %v4892
  %v4925 = vpack.c.b16 %v4910, %v4909
  %v4926 = vpack.c.b16 %v4912, %v4911
  %v4927 = vpack.c.b16 %v4914, %v4913
  %v4928 = vpack.c.b16 %v4916, %v4915
  %v4929 = vpack.c.b16 %v4918, %v4917
  %v4930 = vpack.c.b16 %v4920, %v4919
  %v4931 = vpack.c.b16 %v4922, %v4921
  %v4932 = vpack.c.b16 %v4924, %v4923
  %4941 = vmatprep.subr.bf16.mxu0 0
  %4942 = vmatpush1.bf16.msra.mxu0 %v4932
  %4943 = vmatprep.subr.bf16.mxu0 0
  %4944 = vmatpush1.bf16.msra.mxu0 %v4931
  %4945 = vmatprep.subr.bf16.mxu0 0
  %4946 = vmatpush1.bf16.msra.mxu0 %v4930
  %4947 = vmatprep.subr.bf16.mxu0 0
  %4948 = vmatpush1.bf16.msra.mxu0 %v4929
  %4949 = vmatprep.subr.bf16.mxu0 0
  %4950 = vmatpush1.bf16.msra.mxu0 %v4928
  %4951 = vmatprep.subr.bf16.mxu0 0
  %4952 = vmatpush1.bf16.msra.mxu0 %v4927
  %4953 = vmatprep.subr.bf16.mxu0 0
  %4954 = vmatpush1.bf16.msra.mxu0 %v4926
  %4955 = vmatprep.subr.bf16.mxu0 0
  %4956 = vmatpush1.bf16.msra.mxu0 %v4925
  %4957 = vmatprep.subr.bf16.mxu0 0
  %4958 = vmatpush2.bf16.msra.mxu0 0
  %4959 = vmatprep.subr.bf16.mxu0 0
  %4960 = vmatpush2.bf16.msra.mxu0 0
  %4961 = vmatprep.subr.bf16.mxu0 0
  %4962 = vmatpush2.bf16.msra.mxu0 0
  %4963 = vmatprep.subr.bf16.mxu0 0
  %4964 = vmatpush2.bf16.msra.mxu0 0
  %4965 = vmatprep.subr.bf16.mxu0 0
  %4966 = vmatpush2.bf16.msra.mxu0 0
  %4967 = vmatprep.subr.bf16.mxu0 0
  %4968 = vmatpush2.bf16.msra.mxu0 0
  %4969 = vmatprep.subr.bf16.mxu0 0
  %4970 = vmatpush2.bf16.msra.mxu0 0
  %4971 = vmatprep.subr.bf16.mxu0 0
  %4972 = vmatpush2.bf16.msra.mxu0 0
  %4973 = vmatprep.mubr.bf16.mxu0 0
  %4974 = vmatmul.mubr.bf16.gmra.mxu0 %v4876
  %v4975 = vpop.f32.mrf.mxu0
  %v4976 = vadd.f32 0.0, %v4975
  %v4977 = vpop.f32.mrf.mxu0
  %v4978 = vpop.f32.mrf.mxu0
  %v4979 = vpop.f32.mrf.mxu0
  %4980 = vdwg.mxu0
  %v4981 = vpack.c.bf16 %v4731, %v4731
  %v4982 = vld [vmem:[%s5] sm:$0xf]
  %v4983 = vld [vmem:[%s5 + $0x4] sm:$0xf]
  %v4984 = vld [vmem:[%s5 + $0x8] sm:$0xf]
  %v4985 = vld [vmem:[%s5 + $0xc] sm:$0xf]
  %v4986 = vld [vmem:[%s6] sm:$0x1]
  %v4988 = vlaneseq
  %v4989 = vshrl.u32 %v4988, 7
  %v4990 = vsub.s32 0, %v4989
  %v4991 = vrot.slane %v4986, %v4990
  %4994 = vrot.lane.b32.xlu0 %v4981, 32
  %v4995 = vpop.permute.xlu0 %4994
  %v5000 = vunpack.c.l.b16 %v4982
  %v5001 = vunpack.c.l.b16 %v4983
  %v5002 = vunpack.c.l.b16 %v4984
  %v5003 = vunpack.c.l.b16 %v4985
  %v5004 = vpack.c.b16 %v5001, %v5000
  %v5005 = vpack.c.b16 %v5003, %v5002
  %v5009 = vsel %vm77, %v4995, 0
  %5011 = vmatprep.subr.bf16.mxu0 0
  %5012 = vmatpush1.bf16.msra.mxu0 0
  %5013 = vmatprep.subr.bf16.mxu0 0
  %5014 = vmatpush1.bf16.msra.mxu0 0
  %5015 = vmatprep.subr.bf16.mxu0 0
  %5016 = vmatpush1.bf16.msra.mxu0 0
  %5017 = vmatprep.subr.bf16.mxu0 0
  %5018 = vmatpush1.bf16.msra.mxu0 0
  %5019 = vmatprep.subr.bf16.mxu0 0
  %5020 = vmatpush1.bf16.msra.mxu0 0
  %5021 = vmatprep.subr.bf16.mxu0 0
  %5022 = vmatpush1.bf16.msra.mxu0 0
  %5023 = vmatprep.subr.bf16.mxu0 0
  %5024 = vmatpush1.bf16.msra.mxu0 %v5005
  %5025 = vmatprep.subr.bf16.mxu0 0
  %5026 = vmatpush1.bf16.msra.mxu0 %v5004
  %5027 = vmatprep.subr.bf16.mxu0 0
  %5028 = vmatpush2.bf16.msra.mxu0 0
  %5029 = vmatprep.subr.bf16.mxu0 0
  %5030 = vmatpush2.bf16.msra.mxu0 0
  %5031 = vmatprep.subr.bf16.mxu0 0
  %5032 = vmatpush2.bf16.msra.mxu0 0
  %5033 = vmatprep.subr.bf16.mxu0 0
  %5034 = vmatpush2.bf16.msra.mxu0 0
  %5035 = vmatprep.subr.bf16.mxu0 0
  %5036 = vmatpush2.bf16.msra.mxu0 0
  %5037 = vmatprep.subr.bf16.mxu0 0
  %5038 = vmatpush2.bf16.msra.mxu0 0
  %5039 = vmatprep.subr.bf16.mxu0 0
  %5040 = vmatpush2.bf16.msra.mxu0 0
  %5041 = vmatprep.subr.bf16.mxu0 0
  %5042 = vmatpush2.bf16.msra.mxu0 0
  %5043 = vmatprep.mubr.bf16.mxu0 0
  %5044 = vmatmul.mubr.bf16.gmra.mxu0 %v5009
  %v5045 = vpop.f32.mrf.mxu0
  %v5046 = vadd.f32 %v4991, %v5045
  %v5047 = vpop.f32.mrf.mxu0
  %v5048 = vpop.f32.mrf.mxu0
  %v5049 = vpop.f32.mrf.mxu0
  %5050 = vdwg.mxu0
  %v5053 = vunpack.c.l.s4 1966171168
  %v5054 = vunpack.c.0.s8 %v5053
  %v5055 = vlaneseq
  %v5056 = vshrl.u32 %v5055, 7
  %v5057 = vsub.s32 %v5054, %v5056
  %v5058 = vrot.slane %v5046, %v5057
  %v5059 = vcombine.high %v5058, %v5058
  %v5061 = vunpack.c.l.s4 1966171168
  %v5062 = vunpack.c.0.s8 %v5061
  %v5063 = vlaneseq
  %v5064 = vshrl.u32 %v5063, 7
  %v5065 = vsub.s32 %v5062, %v5064
  %v5066 = vrot.slane %v5058, %v5065
  %v5068 = vunpack.c.l.s4 1966171168
  %v5069 = vunpack.c.0.s8 %v5068
  %v5070 = vlaneseq
  %v5071 = vshrl.u32 %v5070, 7
  %v5072 = vsub.s32 %v5069, %v5071
  %v5073 = vrot.slane %v5059, %v5072
  %v5074 = vcombine.high %v5066, %v5066
  %v5075 = vcombine.high %v5073, %v5073
  %v5076 = vlaneseq
  %v5077 = vshrl.u32 %v5076, 7
  %v5078 = vsub.s32 0, %v5077
  %v5079 = vrot.slane %v5066, %v5078
  %v5080 = vlaneseq
  %v5081 = vshrl.u32 %v5080, 7
  %v5082 = vsub.s32 0, %v5081
  %v5083 = vrot.slane %v5073, %v5082
  %v5084 = vlaneseq
  %v5085 = vshrl.u32 %v5084, 7
  %v5086 = vsub.s32 0, %v5085
  %v5087 = vrot.slane %v5074, %v5086
  %v5088 = vlaneseq
  %v5089 = vshrl.u32 %v5088, 7
  %v5090 = vsub.s32 0, %v5089
  %v5091 = vrot.slane %v5075, %v5090
  %v5096 = vmul.f32 %v5079, %v1948
  %v5097 = vmul.f32 %v5083, %v1951
  %v5098 = vmul.f32 %v5087, %v1956
  %v5099 = vmul.f32 %v5091, %v1959
  %v5100 = vpack.c.bf16 %v5097, %v5096
  %v5101 = vpack.c.bf16 %v5099, %v5098
  %v5103 = vsel %vm77, %v5100, 0
  %v5106 = vsel %vm77, %v5101, 0
  %5108 = vmatprep.subr.bf16.mxu0 0
  %5109 = vmatpush1.bf16.msra.mxu0 0
  %5110 = vmatprep.subr.bf16.mxu0 0
  %5111 = vmatpush1.bf16.msra.mxu0 0
  %5112 = vmatprep.subr.bf16.mxu0 0
  %5113 = vmatpush1.bf16.msra.mxu0 0
  %5114 = vmatprep.subr.bf16.mxu0 0
  %5115 = vmatpush1.bf16.msra.mxu0 0
  %5116 = vmatprep.subr.bf16.mxu0 0
  %5117 = vmatpush1.bf16.msra.mxu0 0
  %5118 = vmatprep.subr.bf16.mxu0 0
  %5119 = vmatpush1.bf16.msra.mxu0 0
  %5120 = vmatprep.subr.bf16.mxu0 0
  %5121 = vmatpush1.bf16.msra.mxu0 %v1993
  %5122 = vmatprep.subr.bf16.mxu0 0
  %5123 = vmatpush1.bf16.msra.mxu0 %v1992
  %5124 = vmatprep.subr.bf16.mxu0 0
  %5125 = vmatpush2.bf16.msra.mxu0 0
  %5126 = vmatprep.subr.bf16.mxu0 0
  %5127 = vmatpush2.bf16.msra.mxu0 0
  %5128 = vmatprep.subr.bf16.mxu0 0
  %5129 = vmatpush2.bf16.msra.mxu0 0
  %5130 = vmatprep.subr.bf16.mxu0 0
  %5131 = vmatpush2.bf16.msra.mxu0 0
  %5132 = vmatprep.subr.bf16.mxu0 0
  %5133 = vmatpush2.bf16.msra.mxu0 0
  %5134 = vmatprep.subr.bf16.mxu0 0
  %5135 = vmatpush2.bf16.msra.mxu0 0
  %5136 = vmatprep.subr.bf16.mxu0 0
  %5137 = vmatpush2.bf16.msra.mxu0 0
  %5138 = vmatprep.subr.bf16.mxu0 0
  %5139 = vmatpush2.bf16.msra.mxu0 0
  %5140 = vmatprep.mubr.bf16.mxu0 0
  %5141 = vmatmul.mubr.bf16.gmra.mxu0 %v5103
  %v5142 = vpop.f32.mrf.mxu0
  %v5143 = vadd.f32 0.0, %v5142
  %v5144 = vpop.f32.mrf.mxu0
  %v5145 = vpop.f32.mrf.mxu0
  %v5146 = vadd.f32 0.0, %v5145
  %v5147 = vpop.f32.mrf.mxu0
  %5148 = vmatprep.mubr.bf16.mxu0 0
  %5149 = vmatmul.mubr.bf16.gmra.mxu0 %v5106
  %v5150 = vpop.f32.mrf.mxu0
  %v5151 = vadd.f32 0.0, %v5150
  %v5152 = vpop.f32.mrf.mxu0
  %v5153 = vpop.f32.mrf.mxu0
  %v5154 = vadd.f32 0.0, %v5153
  %v5155 = vpop.f32.mrf.mxu0
  %5156 = vdwg.mxu0
  %v5157 = vsel %vm2202, %v5143, -inf
  %v5158 = vrot.slane %v5157, 4
  %v5159 = vmax.f32 %v5157, %v5158
  %v5160 = vrot.slane %v5159, 2
  %v5161 = vmax.f32 %v5159, %v5160
  %v5162 = vrot.slane %v5161, 1
  %v5163 = vmax.f32 %v5161, %v5162
  %v5164 = vsel %vm2202, %v5146, -inf
  %v5165 = vrot.slane %v5164, 4
  %v5166 = vmax.f32 %v5164, %v5165
  %v5167 = vrot.slane %v5166, 2
  %v5168 = vmax.f32 %v5166, %v5167
  %v5169 = vrot.slane %v5168, 1
  %v5170 = vmax.f32 %v5168, %v5169
  %v5171 = vsel %vm2202, %v5151, -inf
  %v5172 = vrot.slane %v5171, 4
  %v5173 = vmax.f32 %v5171, %v5172
  %v5174 = vrot.slane %v5173, 2
  %v5175 = vmax.f32 %v5173, %v5174
  %v5176 = vrot.slane %v5175, 1
  %v5177 = vmax.f32 %v5175, %v5176
  %v5178 = vsel %vm2202, %v5154, -inf
  %v5179 = vrot.slane %v5178, 4
  %v5180 = vmax.f32 %v5178, %v5179
  %v5181 = vrot.slane %v5180, 2
  %v5182 = vmax.f32 %v5180, %v5181
  %v5183 = vrot.slane %v5182, 1
  %v5184 = vmax.f32 %v5182, %v5183
  %v5185 = vsub.f32 %v5143, %v5163
  %v5186 = vsub.f32 %v5146, %v5170
  %v5187 = vsub.f32 %v5151, %v5177
  %v5188 = vsub.f32 %v5154, %v5184
  %v5189 = vmul.f32 %v5185, 1.442695
  %v5190 = vpow.pop %v5189
  %v5191 = vmul.f32 %v5186, 1.442695
  %v5192 = vpow.pop %v5191
  %v5193 = vmul.f32 %v5187, 1.442695
  %v5194 = vpow.pop %v5193
  %v5195 = vmul.f32 %v5188, 1.442695
  %v5196 = vpow.pop %v5195
  %v5197 = vsel %vm2202, %v5190, 0.0
  %v5198 = vrot.slane %v5197, 4
  %v5199 = vadd.f32 %v5197, %v5198
  %v5200 = vrot.slane %v5199, 2
  %v5201 = vadd.f32 %v5199, %v5200
  %v5202 = vrot.slane %v5201, 1
  %v5203 = vadd.f32 %v5201, %v5202
  %v5204 = vsel %vm2202, %v5192, 0.0
  %v5205 = vrot.slane %v5204, 4
  %v5206 = vadd.f32 %v5204, %v5205
  %v5207 = vrot.slane %v5206, 2
  %v5208 = vadd.f32 %v5206, %v5207
  %v5209 = vrot.slane %v5208, 1
  %v5210 = vadd.f32 %v5208, %v5209
  %v5211 = vsel %vm2202, %v5194, 0.0
  %v5212 = vrot.slane %v5211, 4
  %v5213 = vadd.f32 %v5211, %v5212
  %v5214 = vrot.slane %v5213, 2
  %v5215 = vadd.f32 %v5213, %v5214
  %v5216 = vrot.slane %v5215, 1
  %v5217 = vadd.f32 %v5215, %v5216
  %v5218 = vsel %vm2202, %v5196, 0.0
  %v5219 = vrot.slane %v5218, 4
  %v5220 = vadd.f32 %v5218, %v5219
  %v5221 = vrot.slane %v5220, 2
  %v5222 = vadd.f32 %v5220, %v5221
  %v5223 = vrot.slane %v5222, 1
  %v5224 = vadd.f32 %v5222, %v5223
  %v5225 = vrcp.pop %v5203
  %v5226 = vrcp.pop %v5210
  %v5227 = vrcp.pop %v5217
  %v5228 = vrcp.pop %v5224
  %v5229 = vmul.f32 %v5190, %v5225
  %v5230 = vmul.f32 %v5192, %v5226
  %v5231 = vmul.f32 %v5194, %v5227
  %v5232 = vmul.f32 %v5196, %v5228
  %v5233 = vpack.c.bf16 %v5230, %v5229
  %v5234 = vpack.c.bf16 %v5232, %v5231
  %v5236 = vsel %vm2202, %v5233, 0
  %v5239 = vsel %vm2202, %v5234, 0
  %5241 = vmatprep.subr.bf16.mxu0 0
  %5242 = vmatpush1.bf16.msra.mxu0 0
  %5243 = vmatprep.subr.bf16.mxu0 0
  %5244 = vmatpush1.bf16.msra.mxu0 0
  %5245 = vmatprep.subr.bf16.mxu0 0
  %5246 = vmatpush1.bf16.msra.mxu0 0
  %5247 = vmatprep.subr.bf16.mxu0 0
  %5248 = vmatpush1.bf16.msra.mxu0 0
  %5249 = vmatprep.subr.bf16.mxu0 0
  %5250 = vmatpush1.bf16.msra.mxu0 0
  %5251 = vmatprep.subr.bf16.mxu0 0
  %5252 = vmatpush1.bf16.msra.mxu0 0
  %5253 = vmatprep.subr.bf16.mxu0 0
  %5254 = vmatpush1.bf16.msra.mxu0 0
  %5255 = vmatprep.subr.bf16.mxu0 0
  %5256 = vmatpush1.bf16.msra.mxu0 %v2289
  %5257 = vmatprep.subr.bf16.mxu0 0
  %5258 = vmatpush2.bf16.msra.mxu0 0
  %5259 = vmatprep.subr.bf16.mxu0 0
  %5260 = vmatpush2.bf16.msra.mxu0 0
  %5261 = vmatprep.subr.bf16.mxu0 0
  %5262 = vmatpush2.bf16.msra.mxu0 0
  %5263 = vmatprep.subr.bf16.mxu0 0
  %5264 = vmatpush2.bf16.msra.mxu0 0
  %5265 = vmatprep.subr.bf16.mxu0 0
  %5266 = vmatpush2.bf16.msra.mxu0 0
  %5267 = vmatprep.subr.bf16.mxu0 0
  %5268 = vmatpush2.bf16.msra.mxu0 0
  %5269 = vmatprep.subr.bf16.mxu0 0
  %5270 = vmatpush2.bf16.msra.mxu0 0
  %5271 = vmatprep.subr.bf16.mxu0 0
  %5272 = vmatpush2.bf16.msra.mxu0 0
  %5273 = vmatprep.mubr.bf16.mxu0 0
  %5274 = vmatmul.mubr.bf16.gmra.mxu0 %v5236
  %v5275 = vpop.f32.mrf.mxu0
  %v5276 = vadd.f32 0.0, %v5275
  %v5277 = vpop.f32.mrf.mxu0
  %v5278 = vpop.f32.mrf.mxu0
  %v5279 = vadd.f32 0.0, %v5278
  %v5280 = vpop.f32.mrf.mxu0
  %5281 = vmatprep.mubr.bf16.mxu0 0
  %5282 = vmatmul.mubr.bf16.gmra.mxu0 %v5239
  %v5283 = vpop.f32.mrf.mxu0
  %v5284 = vadd.f32 0.0, %v5283
  %v5285 = vpop.f32.mrf.mxu0
  %v5286 = vpop.f32.mrf.mxu0
  %v5287 = vadd.f32 0.0, %v5286
  %v5288 = vpop.f32.mrf.mxu0
  %5289 = vdwg.mxu0
  %v5290 = vmul.f32 %v5276, %v2345
  %v5291 = vmul.f32 %v5279, %v2347
  %v5292 = vmul.f32 %v5284, %v2349
  %v5293 = vmul.f32 %v5287, %v2351
  %v5294 = vsel %vm77, %v5290, 0.0
  %v5295 = vrot.slane %v5294, 4
  %v5296 = vadd.f32 %v5294, %v5295
  %v5297 = vrot.slane %v5296, 2
  %v5298 = vadd.f32 %v5296, %v5297
  %v5299 = vrot.slane %v5298, 1
  %v5300 = vadd.f32 %v5298, %v5299
  %v5301 = vsel %vm77, %v5291, 0.0
  %v5302 = vrot.slane %v5301, 4
  %v5303 = vadd.f32 %v5301, %v5302
  %v5304 = vrot.slane %v5303, 2
  %v5305 = vadd.f32 %v5303, %v5304
  %v5306 = vrot.slane %v5305, 1
  %v5307 = vadd.f32 %v5305, %v5306
  %v5308 = vsel %vm77, %v5292, 0.0
  %v5309 = vrot.slane %v5308, 4
  %v5310 = vadd.f32 %v5308, %v5309
  %v5311 = vrot.slane %v5310, 2
  %v5312 = vadd.f32 %v5310, %v5311
  %v5313 = vrot.slane %v5312, 1
  %v5314 = vadd.f32 %v5312, %v5313
  %v5315 = vsel %vm77, %v5293, 0.0
  %v5316 = vrot.slane %v5315, 4
  %v5317 = vadd.f32 %v5315, %v5316
  %v5318 = vrot.slane %v5317, 2
  %v5319 = vadd.f32 %v5317, %v5318
  %v5320 = vrot.slane %v5319, 1
  %v5321 = vadd.f32 %v5319, %v5320
  %v5326 = vsel %vm338, %v5307, %v5300
  %v5327 = vsel %vm341, %v5314, %v5326
  %v5328 = vsel %vm344, %v5321, %v5327
  %5329 = vrot.lane.b32.xlu0 %v5328, 32
  %v5330 = vpop.permute.xlu0 %5329
  %5332 = vrot.lane.b32.xlu0 %v4731, 96
  %v5333 = vpop.permute.xlu0 %5332
  %v5335 = vsel %vm77, %v4976, %v5330
  %v5336 = vsel %vm2409, %v5335, %v5333
  %v5337 = vpack.c.bf16 %v5336, %v5336
  %v5338 = vld [vmem:[%s9] sm:$0xf]
  %v5339 = vld [vmem:[%s9 + $0x4] sm:$0xf]
  %v5340 = vld [vmem:[%s9 + $0x8] sm:$0xf]
  %v5341 = vld [vmem:[%s9 + $0xc] sm:$0xf]
  %v5342 = vld [vmem:[%s9 + $0x10] sm:$0xf]
  %v5343 = vld [vmem:[%s9 + $0x14] sm:$0xf]
  %v5344 = vld [vmem:[%s9 + $0x18] sm:$0xf]
  %v5345 = vld [vmem:[%s9 + $0x1c] sm:$0xf]
  %v5346 = vld [vmem:[%s9 + $0x20] sm:$0xf]
  %v5347 = vld [vmem:[%s9 + $0x24] sm:$0xf]
  %v5348 = vld [vmem:[%s9 + $0x28] sm:$0xf]
  %v5349 = vld [vmem:[%s9 + $0x2c] sm:$0xf]
  %v5350 = vld [vmem:[%s10] sm:$0x1]
  %v5352 = vlaneseq
  %v5353 = vshrl.u32 %v5352, 7
  %v5354 = vsub.s32 0, %v5353
  %v5355 = vrot.slane %v5350, %v5354
  %v5369 = vunpack.c.l.b16 %v5338
  %v5370 = vunpack.c.l.b16 %v5339
  %v5371 = vunpack.c.l.b16 %v5340
  %v5372 = vunpack.c.l.b16 %v5341
  %v5373 = vunpack.c.l.b16 %v5342
  %v5374 = vunpack.c.l.b16 %v5343
  %v5375 = vunpack.c.l.b16 %v5344
  %v5376 = vunpack.c.l.b16 %v5345
  %v5377 = vunpack.c.l.b16 %v5346
  %v5378 = vunpack.c.l.b16 %v5347
  %v5379 = vunpack.c.l.b16 %v5348
  %v5380 = vunpack.c.l.b16 %v5349
  %v5381 = vpack.c.b16 %v5370, %v5369
  %v5382 = vpack.c.b16 %v5372, %v5371
  %v5383 = vpack.c.b16 %v5374, %v5373
  %v5384 = vpack.c.b16 %v5376, %v5375
  %v5385 = vpack.c.b16 %v5378, %v5377
  %v5386 = vpack.c.b16 %v5380, %v5379
  %v5394 = vsel %vm2467, %v5337, 0
  %5396 = vmatprep.subr.bf16.mxu0 0
  %5397 = vmatpush1.bf16.msra.mxu0 0
  %5398 = vmatprep.subr.bf16.mxu0 0
  %5399 = vmatpush1.bf16.msra.mxu0 0
  %5400 = vmatprep.subr.bf16.mxu0 0
  %5401 = vmatpush1.bf16.msra.mxu0 %v5386
  %5402 = vmatprep.subr.bf16.mxu0 0
  %5403 = vmatpush1.bf16.msra.mxu0 %v5385
  %5404 = vmatprep.subr.bf16.mxu0 0
  %5405 = vmatpush1.bf16.msra.mxu0 %v5384
  %5406 = vmatprep.subr.bf16.mxu0 0
  %5407 = vmatpush1.bf16.msra.mxu0 %v5383
  %5408 = vmatprep.subr.bf16.mxu0 0
  %5409 = vmatpush1.bf16.msra.mxu0 %v5382
  %5410 = vmatprep.subr.bf16.mxu0 0
  %5411 = vmatpush1.bf16.msra.mxu0 %v5381
  %5412 = vmatprep.subr.bf16.mxu0 0
  %5413 = vmatpush2.bf16.msra.mxu0 0
  %5414 = vmatprep.subr.bf16.mxu0 0
  %5415 = vmatpush2.bf16.msra.mxu0 0
  %5416 = vmatprep.subr.bf16.mxu0 0
  %5417 = vmatpush2.bf16.msra.mxu0 0
  %5418 = vmatprep.subr.bf16.mxu0 0
  %5419 = vmatpush2.bf16.msra.mxu0 0
  %5420 = vmatprep.subr.bf16.mxu0 0
  %5421 = vmatpush2.bf16.msra.mxu0 0
  %5422 = vmatprep.subr.bf16.mxu0 0
  %5423 = vmatpush2.bf16.msra.mxu0 0
  %5424 = vmatprep.subr.bf16.mxu0 0
  %5425 = vmatpush2.bf16.msra.mxu0 0
  %5426 = vmatprep.subr.bf16.mxu0 0
  %5427 = vmatpush2.bf16.msra.mxu0 0
  %5428 = vmatprep.mubr.bf16.mxu0 0
  %5429 = vmatmul.mubr.bf16.gmra.mxu0 %v5394
  %v5430 = vpop.f32.mrf.mxu0
  %v5431 = vadd.f32 %v5355, %v5430
  %v5432 = vpop.f32.mrf.mxu0
  %v5433 = vpop.f32.mrf.mxu0
  %v5434 = vpop.f32.mrf.mxu0
  %5435 = vdwg.mxu0
  %v5436 = vxor.u32 %v5431, 2147483648
  %v5437 = vmul.f32 %v5436, 1.442695
  %v5438 = vpow.pop %v5437
  %v5439 = vadd.f32 %v5438, 1.0
  %v5440 = vrcp.pop %v5439
  %v5441 = vmul.f32 1.0, %v5440
  %v5442 = vtanh.pop %v5431
  %v5443 = vmul.f32 %v5441, %v4725
  %5445 = vrot.lane.b32.xlu0 %v5442, 64
  %v5446 = vpop.permute.xlu0 %5445
  %v5448 = vmul.f32 %v5441, %v5446
  %5450 = vrot.lane.b32.xlu0 %v5448, 32
  %v5451 = vpop.permute.xlu0 %5450
  %v5453 = vadd.f32 %v5443, %v5451
  %v5454 = vtanh.pop %v5453
  %5456 = vrot.lane.b32.xlu0 %v5454, 64
  %v5457 = vpop.permute.xlu0 %5456
  %v5459 = vmul.f32 %v5441, %v5457
  %5461 = vrot.lane.b32.xlu0 %v5459, 32
  %v5462 = vpop.permute.xlu0 %5461
  %v5464 = vsel %vm77, %v5462, %v5330
  %v5465 = vpack.c.bf16 %v5464, %v5464
  %v5466 = vld [vmem:[%s11] sm:$0xf]
  %v5467 = vld [vmem:[%s11 + $0x4] sm:$0xf]
  %v5468 = vld [vmem:[%s11 + $0x8] sm:$0xf]
  %v5469 = vld [vmem:[%s11 + $0xc] sm:$0xf]
  %v5470 = vld [vmem:[%s11 + $0x10] sm:$0xf]
  %v5471 = vld [vmem:[%s11 + $0x14] sm:$0xf]
  %v5472 = vld [vmem:[%s11 + $0x18] sm:$0xf]
  %v5473 = vld [vmem:[%s11 + $0x1c] sm:$0xf]
  %v5474 = vld [vmem:[%s12] sm:$0x1]
  %v5476 = vlaneseq
  %v5477 = vshrl.u32 %v5476, 7
  %v5478 = vsub.s32 0, %v5477
  %v5479 = vrot.slane %v5474, %v5478
  %v5489 = vunpack.c.l.b16 %v5466
  %v5490 = vunpack.c.l.b16 %v5467
  %v5491 = vunpack.c.l.b16 %v5468
  %v5492 = vunpack.c.l.b16 %v5469
  %v5493 = vunpack.c.l.b16 %v5470
  %v5494 = vunpack.c.l.b16 %v5471
  %v5495 = vunpack.c.l.b16 %v5472
  %v5496 = vunpack.c.l.b16 %v5473
  %v5497 = vpack.c.b16 %v5490, %v5489
  %v5498 = vpack.c.b16 %v5492, %v5491
  %v5499 = vpack.c.b16 %v5494, %v5493
  %v5500 = vpack.c.b16 %v5496, %v5495
  %v5506 = vsel %vm2409, %v5465, 0
  %5508 = vmatprep.subr.bf16.mxu0 0
  %5509 = vmatpush1.bf16.msra.mxu0 0
  %5510 = vmatprep.subr.bf16.mxu0 0
  %5511 = vmatpush1.bf16.msra.mxu0 0
  %5512 = vmatprep.subr.bf16.mxu0 0
  %5513 = vmatpush1.bf16.msra.mxu0 0
  %5514 = vmatprep.subr.bf16.mxu0 0
  %5515 = vmatpush1.bf16.msra.mxu0 0
  %5516 = vmatprep.subr.bf16.mxu0 0
  %5517 = vmatpush1.bf16.msra.mxu0 %v5500
  %5518 = vmatprep.subr.bf16.mxu0 0
  %5519 = vmatpush1.bf16.msra.mxu0 %v5499
  %5520 = vmatprep.subr.bf16.mxu0 0
  %5521 = vmatpush1.bf16.msra.mxu0 %v5498
  %5522 = vmatprep.subr.bf16.mxu0 0
  %5523 = vmatpush1.bf16.msra.mxu0 %v5497
  %5524 = vmatprep.subr.bf16.mxu0 0
  %5525 = vmatpush2.bf16.msra.mxu0 0
  %5526 = vmatprep.subr.bf16.mxu0 0
  %5527 = vmatpush2.bf16.msra.mxu0 0
  %5528 = vmatprep.subr.bf16.mxu0 0
  %5529 = vmatpush2.bf16.msra.mxu0 0
  %5530 = vmatprep.subr.bf16.mxu0 0
  %5531 = vmatpush2.bf16.msra.mxu0 0
  %5532 = vmatprep.subr.bf16.mxu0 0
  %5533 = vmatpush2.bf16.msra.mxu0 0
  %5534 = vmatprep.subr.bf16.mxu0 0
  %5535 = vmatpush2.bf16.msra.mxu0 0
  %5536 = vmatprep.subr.bf16.mxu0 0
  %5537 = vmatpush2.bf16.msra.mxu0 0
  %5538 = vmatprep.subr.bf16.mxu0 0
  %5539 = vmatpush2.bf16.msra.mxu0 0
  %5540 = vmatprep.mubr.bf16.mxu0 0
  %5541 = vmatmul.mubr.bf16.gmra.mxu0 %v5506
  %v5542 = vpop.f32.mrf.mxu0
  %v5543 = vadd.f32 %v5479, %v5542
  %v5544 = vpop.f32.mrf.mxu0
  %v5545 = vpop.f32.mrf.mxu0
  %v5546 = vpop.f32.mrf.mxu0
  %5547 = vdwg.mxu0
  %v5550 = vunpack.c.l.s4 1966171168
  %v5551 = vunpack.c.0.s8 %v5550
  %v5552 = vlaneseq
  %v5553 = vshrl.u32 %v5552, 7
  %v5554 = vsub.s32 %v5551, %v5553
  %v5555 = vrot.slane %v5543, %v5554
  %v5556 = vcombine.high %v5555, %v5555
  %v5558 = vunpack.c.l.s4 1966171168
  %v5559 = vunpack.c.0.s8 %v5558
  %v5560 = vlaneseq
  %v5561 = vshrl.u32 %v5560, 7
  %v5562 = vsub.s32 %v5559, %v5561
  %v5563 = vrot.slane %v5555, %v5562
  %v5565 = vunpack.c.l.s4 1966171168
  %v5566 = vunpack.c.0.s8 %v5565
  %v5567 = vlaneseq
  %v5568 = vshrl.u32 %v5567, 7
  %v5569 = vsub.s32 %v5566, %v5568
  %v5570 = vrot.slane %v5556, %v5569
  %v5571 = vcombine.high %v5563, %v5563
  %v5572 = vcombine.high %v5570, %v5570
  %5577 = vst [vmem:[%s14 + $0x5] sm:$0x1] %v5563
  %5578 = vst [vmem:[%s14 + $0xd] sm:$0x1] %v5570
  %5579 = vst [vmem:[%s14 + $0x15] sm:$0x1] %v5571
  %5580 = vst [vmem:[%s14 + $0x1d] sm:$0x1] %v5572
  // Predicated region
  $region58: #{seq2seq_forward.1} parent=0 // pred_check
    _
  $region59: #{seq2seq_forward.1} parent=0 // pred_check_branch
    %5582 = sbr.rel (0) target = $region61
  $region60: #{seq2seq_forward.1} parent=0 // pred_region
    _
  $region61: #{seq2seq_forward.1} parent=0 // pred_fallthru
    _
  // Predicated region
  $region62: #{seq2seq_forward.1} parent=0 // pred_check
    _
  $region63: #{seq2seq_forward.1} parent=0 // pred_check_branch
    %5584 = sbr.rel (0) target = $region65
  $region64: #{seq2seq_forward.1} parent=0 // pred_region
    _
  $region65: #{seq2seq_forward.1} parent=0 // pred_fallthru
    _

</llo_original>
